<compile_context>
chip_gen: v6e
topology: v6e:2x2x1
jax: 0.10.0
libtpu: 0.0.40
codegen_flags: <defaults>
</compile_context>

<pallas_src>
import functools

import jax
import jax.numpy as jnp
from jax.experimental import pallas as pl
from jax.experimental.pallas import tpu as pltpu


def _round_up(x, m):
    return ((x + m - 1) // m) * m


_VMEM_BUDGET = 40 * (1 << 20)   # headroom under v7x's 64 MiB physical VMEM


def _vmem_bytes(tb, tn, d, k_chunk, itemsize):
    """Rough per-grid-step VMEM working set."""
    x_b = 2 * tb * d * itemsize            # double-buffered input batch tile
    o_b = 2 * tb * tn * itemsize           # double-buffered output tile
    p_b = 2 * tn * 4                       # perm index tile
    acc = tb * tn * 4                      # f32 accumulator
    slab = 2 * min(d, k_chunk) * tn * 4    # iota + one-hot chunk
    return x_b + o_b + p_b + acc + slab


def _permute_kernel(perm_ref, x_ref, o_ref, *, k_chunk):
    """One (batch-tile, output-column-tile) block of y[:, i] = x[:, perm[i]].

    perm_ref: (1, tn) int32  -- global source-column index per output column
    x_ref:    (tb, D)        -- all input columns for this batch tile
    o_ref:    (tb, tn)
    """
    tb, tn = o_ref.shape
    d = x_ref.shape[1]
    perm = perm_ref[...]                                      # (1, tn)
    acc = jnp.zeros((tb, tn), jnp.float32)
    # Chunk the contraction so the one-hot slab stays small in VMEM and can
    # overlap the previous chunk's MXU work. Static Python loop: all slices are
    # static, nk is a trace-time constant.
    for k0 in range(0, d, k_chunk):
        kw = min(k_chunk, d - k0)
        xk = x_ref[:, k0:k0 + kw]                             # static slice
        row = jax.lax.broadcasted_iota(jnp.int32, (kw, tn), 0) + k0
        # P_T[j, i] = (j == perm[i])  =>  (x @ P_T)[:, i] = x[:, perm[i]]
        p_t = (row == perm).astype(xk.dtype)                  # built on VPU
        acc = acc + jax.lax.dot_general(
            xk, p_t,
            dimension_numbers=(((1,), (0,)), ((), ())),
            preferred_element_type=jnp.float32,
            precision=jax.lax.Precision.HIGHEST)              # exact f32 select
    o_ref[...] = acc.astype(o_ref.dtype)


def permutations_forward(x, permutation, dim=1, *, block_b=256, block_d=512,
                         k_chunk=512, force_pallas=False):
    """Pallas equivalent of Permutations.forward(x)."""
    permutation = jnp.asarray(permutation).astype(jnp.int32)
    if permutation.ndim != 1:
        raise ValueError("Permutation must be a 1D tensor.")
    if dim >= x.ndim:
        raise ValueError(f"No dimension {dim} in inputs.")
    if x.shape[dim] != permutation.shape[0]:
        raise ValueError(
            f"Dimension {dim} in inputs must be of size {permutation.shape[0]}.")

    D = permutation.shape[0]
    itemsize = jnp.dtype(x.dtype).itemsize

    # Exact-gather fallbacks: non-2D / non-feature-dim layouts, dtypes the MXU
    # one-hot path cannot represent exactly (ints, f64, ...), and shapes too
    # small to amortize a Pallas call (the liesvf-typical case).
    small = D < 256 or (x.size * itemsize) < (1 << 20)
    if (x.ndim != 2 or dim != 1
            or x.dtype not in (jnp.float32, jnp.bfloat16)
            or (small and not force_pallas)):
        return jnp.take(x, permutation, axis=dim)

    B, _ = x.shape

    # ---- tile derivation (padding waste bounded to < 128 columns) ----------
    d_pad = _round_up(D, 128)
    g_max = d_pad // 128
    g = 1
    for cand in range(min(g_max, max(block_d // 128, 1)), 0, -1):
        if g_max % cand == 0:               # tn must divide d_pad
            g = cand
            break
    tn = 128 * g
    nd = d_pad // tn                        # == cdiv(D, tn): no empty out tiles

    tb = min(block_b, B)
    if tb < B:
        tb = max(8, (tb // 8) * 8)
    # Shrink the batch tile until the working set fits the VMEM budget.
    while tb > 8 and _vmem_bytes(tb, tn, D, k_chunk, itemsize) > _VMEM_BUDGET:
        new_tb = max(8, ((tb // 2) // 8) * 8)
        if new_tb == tb:
            break
        tb = new_tb
    nb = pl.cdiv(B, tb)
    # v7x has 2 TensorCores: give a "parallel" axis >= 2 tiles when possible.
    if nb == 1 and nd == 1 and B >= 16:
        tb = max(8, _round_up(pl.cdiv(B, 2), 8))
        nb = pl.cdiv(B, tb)

    # Only the tiny int32 index vector is padded (pad ids -> column 0; the
    # corresponding output columns fall outside (B, D) and are dropped).
    perm_p = permutation
    if d_pad != D:
        perm_p = jnp.pad(permutation, (0, d_pad - D))
    perm_p = perm_p.reshape(1, d_pad)

    vmem_limit = int(min(
        max(_vmem_bytes(tb, tn, D, k_chunk, itemsize) * 5 // 4 + (2 << 20),
            16 << 20),
        64 << 20))

    kernel = functools.partial(_permute_kernel, k_chunk=k_chunk)

    out = pl.pallas_call(
        kernel,
        out_shape=jax.ShapeDtypeStruct((B, D), x.dtype),
        grid_spec=pltpu.PrefetchScalarGridSpec(
            num_scalar_prefetch=0,
            grid=(nb, nd),
            in_specs=[
                # perm tile: 4*tn bytes per step.
                pl.BlockSpec((1, tn), lambda i, j: (0, j)),
                # x batch tile, full (unpadded) feature width; block index is
                # constant over the inner j axis so it is fetched once per i.
                pl.BlockSpec((tb, D), lambda i, j: (i, 0)),
            ],
            out_specs=pl.BlockSpec((tb, tn), lambda i, j: (i, j)),
        ),
        compiler_params=pltpu.CompilerParams(
            dimension_semantics=("parallel", "parallel"),
            vmem_limit_bytes=vmem_limit,
        ),
        cost_estimate=pl.CostEstimate(
            flops=2 * B * D * d_pad,
            bytes_accessed=2 * B * D * itemsize + 4 * d_pad,
            transcendentals=0,
        ),
    )(perm_p, x)

    return out


if __name__ == "__main__":
    key = jax.random.PRNGKey(0)

    def check(B, D, force_pallas):
        k = jax.random.fold_in(key, D * 10007 + B)
        kp, kx = jax.random.split(k)
        perm = jax.random.permutation(kp, jnp.arange(D, dtype=jnp.int32))
        x = jax.random.normal(kx, (B, D), dtype=jnp.float32)
        y = jax.block_until_ready(
            permutations_forward(x, perm, force_pallas=force_pallas))
        y_ref = jnp.take(x, perm, axis=1)
        assert y.shape == (B, D)
        assert jnp.allclose(y, y_ref, rtol=2e-7, atol=0.0), (
            f"Pallas permutation mismatch vs reference (B={B}, D={D})")

    # liesvf-typical tiny shape: routed to the exact jnp.take fast path.
    check(16, 32, force_pallas=False)
    # Pallas MXU one-hot path, lane-aligned D: no padding or slicing anywhere.
    check(16, 384, force_pallas=True)
    # Pallas path with ragged D: only the int32 perm vector is padded; the
    # output's last column tile is a masked store (no HBM pad/slice of x or y).
    check(16, 200, force_pallas=True)

    # TODO(synk): jacobian() (perm-matrix repeat) and _inverse_permutation
    # (argsort) are not part of forward() and are left to plain JAX.
    print("KERNEL_OK")
</pallas_src>

<mosaic_0001>
module attributes {stable_mosaic.version = 11 : i64} {
  func.func @_permute_kernel(%arg0: i32, %arg1: i32, %arg2: memref<1x384xi32, #tpu.memory_space<vmem>>, %arg3: memref<8x384xf32, #tpu.memory_space<vmem>>, %arg4: memref<8x384xf32, #tpu.memory_space<vmem>>) attributes {dimension_semantics = [#tpu.dimension_semantics<parallel>, #tpu.dimension_semantics<parallel>], iteration_bounds = array<i64: 2, 1>, scalar_prefetch = 0 : i64, scratch_operands = 0 : i64, tpu.core_type = #tpu.core_type<tc>, window_params = [{transform_indices = @transform_0, window_bounds = array<i64: 1, 384>}, {transform_indices = @transform_1, window_bounds = array<i64: 8, 384>}, {transform_indices = @transform_2, window_bounds = array<i64: 8, 384>}]} {
    %c0 = arith.constant 0 : index
    %c0_0 = arith.constant 0 : index
    %0 = vector.load %arg2[%c0, %c0_0] : memref<1x384xi32, #tpu.memory_space<vmem>>, vector<1x384xi32>
    %cst = arith.constant 0.000000e+00 : f32
    %1 = vector.broadcast %cst : f32 to vector<8x384xf32>
    %c0_1 = arith.constant 0 : index
    %c0_2 = arith.constant 0 : index
    %2 = vector.load %arg3[%c0_1, %c0_2] : memref<8x384xf32, #tpu.memory_space<vmem>>, vector<8x384xf32>
    %3 = tpu.iota {dimensions = array<i32: 0>} : vector<384x384xi32>
    %c0_i32 = arith.constant 0 : i32
    %4 = vector.broadcast %c0_i32 : i32 to vector<384x384xi32>
    %5 = arith.addi %3, %4 : vector<384x384xi32>
    %6 = vector.broadcast %0 : vector<1x384xi32> to vector<384x384xi32>
    %7 = arith.cmpi eq, %5, %6 : vector<384x384xi32>
    %8 = arith.extui %7 : vector<384x384xi1> to vector<384x384xi32>
    %9 = arith.sitofp %8 : vector<384x384xi32> to vector<384x384xf32>
    %cst_3 = arith.constant dense<0.000000e+00> : vector<8x384xf32>
    %10 = tpu.matmul %2, %9, %cst_3 {dimension_numbers = #tpu.dot_dimension_numbers<[1], [0], [0], [1], [0, 0, 1, 1], [], []>, precision = #tpu.contract_precision<fp32>} : vector<8x384xf32>, vector<384x384xf32>, vector<8x384xf32> -> vector<8x384xf32>
    %11 = arith.addf %1, %10 : vector<8x384xf32>
    %c0_4 = arith.constant 0 : index
    %c0_5 = arith.constant 0 : index
    %12 = vector.load %arg4[%c0_4, %c0_5] : memref<8x384xf32, #tpu.memory_space<vmem>>, vector<8x384xf32>
    tpu.vector_store %arg4[%c0_4, %c0_5], %11 {strides = array<i32>} : memref<8x384xf32, #tpu.memory_space<vmem>>, vector<8x384xf32>,
    return
  }
  func.func @transform_0(%arg0: i32, %arg1: i32) -> (i32, i32) {
    %c0_i32 = arith.constant 0 : i32
    %c0_i32_0 = arith.constant 0 : i32
    return %c0_i32, %arg1 : i32, i32
  }
  func.func @transform_1(%arg0: i32, %arg1: i32) -> (i32, i32) {
    %c0_i32 = arith.constant 0 : i32
    %c0_i32_0 = arith.constant 0 : i32
    return %arg0, %c0_i32 : i32, i32
  }
  func.func @transform_2(%arg0: i32, %arg1: i32) -> (i32, i32) {
    %c0_i32 = arith.constant 0 : i32
    return %arg0, %arg1 : i32, i32
  }
}

</mosaic_0001>

<llo_original>
// kernel: tpu_custom_call.1
$region0: #{tpu_custom_call.1}
  #allocation0 [shape = 'u32[]', space=smem, size = 0x4, offset = 0x4, fixed_abs, tag = 'smem constant byte address 0x4 - core index']
  #allocation1 [shape = 'u32[144,128]{1,0:T(1,128)}', space=vmem, size = 0x12000, scoped, tag = 'internal scratch']
  %s0 = inlined_call_operand.hbm [shape: s32[1,384], index: 0, kind: input, shape index: {}]
  %s1 = inlined_call_operand.hbm [shape: f32[16,384], index: 1, kind: input, shape index: {}]
  %s2 = inlined_call_operand.hbm [shape: f32[16,384], index: 2, kind: output, shape index: {}]
  %s3 = sld [smem:[#allocation0]]
  $region49: #{tpu_custom_call.1} parent=0
    _
  %s5 = ssub.s32 1, %s3
  %s6 = scalar_select 0, %s5, %s3
  $region1: #{tpu_custom_call.1} parent=0
    #allocation2 [shape = 'u8[1536]{0}', space=vmem, size = 0x800, scoped, tag = 'input window, operand 0, single buffered']
    #allocation3 [shape = 's32[2]{0}', space=sflag, size = 0x8, scoped, tag = 'scoped memory for tpu_custom_call.1']
    #allocation4 [shape = 's32[2]{0}', space=sflag, size = 0x8, scoped, tag = 'scoped memory for tpu_custom_call.1']
    #allocation5 [shape = 'u8[24576]{0}', space=vmem, size = 0x6000, scoped, tag = 'input window, operand 1']
    #allocation6 [shape = 's32[2]{0}', space=sflag, size = 0x8, scoped, tag = 'scoped memory for tpu_custom_call.1']
    #allocation7 [shape = 'u8[24576]{0}', space=vmem, size = 0x6000, scoped, tag = 'output window, operand 0']
    %7 = vsyncpa [#allocation3], 0
    %8 = vsyncpa [#allocation6], 0
    %s9 = scalar_lea.sflag [#allocation6], 1
    %10 = vsyncpa %s9, 0
    %11 = vsyncpa [#allocation4], 0
    %s12 = scalar_lea.sflag [#allocation4], 1
    %13 = vsyncpa %s12, 0
    loop: start=0, step=1, limit=4
    $region2: #{tpu_custom_call.1} parent=1 // loop_pre_header
      _
    $region3: #{tpu_custom_call.1} parent=1 // loop_header
      %s15 = sphi 0, %s19
      %p16 = scmp.ge.s32.totalorder %s15, 4
      %s22 = sphi 0, %s34
      %s23 = sphi 0, %s30
      %s24 = sphi 0, %s22
      %s25 = sphi 0, %s23
      %s26 = sphi 0, %s24
      %s27 = sphi 0, %s25
      %s37 = sphi 0, %s39
      %s40 = sphi 0, %s37
      %s41 = sphi 0, %s40
      %s57 = sphi 0, %s41
      %s63 = sphi 0, %s65
      %s66 = sphi 0, %s63
      %s67 = sphi 0, %s66
      %s83 = sphi 0, %s67
      %s91 = sphi 0, %s93
      %s94 = sphi 0, %s91
      %s95 = sphi 0, %s94
      %s111 = sphi 0, %s95
    $region4: #{tpu_custom_call.1} parent=1 // loop_header_branch
      %18 = sbr.rel (%p16) target = $region8
    $region5: #{tpu_custom_call.1} parent=1 // loop_body
      %s20 = ssub.s32 %s15, 1
      %s21 = ssub.s32 %s15, 2
      %s28 = sadd.s32 1, %s23
      %p29 = scmp.ge.s32.totalorder %s28, 1
      %s30 = scalar_select %p29, 0, %s28
      %s31 = sadd.s32 1, %s22
      %s32 = scalar_select %p29, %s31, %s22
      %p33 = scmp.ge.s32.totalorder %s32, 2
      %s34 = scalar_select %p33, 0, %s32
      %s35 = ssub.s32 %s23, %s30
      %p36 = scmp.eq.s32.totalorder %s35, 0
      %s38 = sadd.s32 %s37, 1
      %s39 = scalar_select %p36, %s37, %s38
      %p42 = pneg %p36
      %p43 = scmp.eq.s32.totalorder %s15, 1
      %p44 = por %p42, %p43
      %p45 = scmp.ne.s32.totalorder %s37, %s40
      %p46 = scmp.eq.s32.totalorder %s15, 0
      %p47 = por %p45, %p46
      %p48 = scmp.ne.s32.totalorder %s37, %s40
      %p49 = scmp.eq.s32.totalorder %s20, 1
      %p50 = por %p48, %p49
      %p51 = scmp.ne.s32.totalorder %s40, %s41
      %p52 = scmp.eq.s32.totalorder %s20, 0
      %p53 = por %p51, %p52
      %p54 = scmp.ne.s32.totalorder %s40, %s41
      %p55 = scmp.eq.s32.totalorder %s21, 1
      %p56 = por %p54, %p55
      %p58 = scmp.ne.s32.totalorder %s41, %s57
      %p59 = scmp.eq.s32.totalorder %s21, 0
      %p60 = por %p58, %p59
      %s61 = ssub.s32 %s22, %s34
      %p62 = scmp.eq.s32.totalorder %s61, 0
      %s64 = sadd.s32 %s63, 1
      %s65 = scalar_select %p62, %s63, %s64
      %p68 = pneg %p62
      %p69 = scmp.eq.s32.totalorder %s15, 1
      %p70 = por %p68, %p69
      %p71 = scmp.ne.s32.totalorder %s63, %s66
      %p72 = scmp.eq.s32.totalorder %s15, 0
      %p73 = por %p71, %p72
      %p74 = scmp.ne.s32.totalorder %s63, %s66
      %p75 = scmp.eq.s32.totalorder %s20, 1
      %p76 = por %p74, %p75
      %p77 = scmp.ne.s32.totalorder %s66, %s67
      %p78 = scmp.eq.s32.totalorder %s20, 0
      %p79 = por %p77, %p78
      %p80 = scmp.ne.s32.totalorder %s66, %s67
      %p81 = scmp.eq.s32.totalorder %s21, 1
      %p82 = por %p80, %p81
      %p84 = scmp.ne.s32.totalorder %s67, %s83
      %p85 = scmp.eq.s32.totalorder %s21, 0
      %p86 = por %p84, %p85
      %s87 = ssub.s32 %s22, %s34
      %s88 = ssub.s32 %s23, %s30
      %s89 = sor.u32 %s87, %s88
      %p90 = scmp.eq.s32.totalorder %s89, 0
      %s92 = sadd.s32 %s91, 1
      %s93 = scalar_select %p90, %s91, %s92
      %p96 = pneg %p90
      %p97 = scmp.eq.s32.totalorder %s15, 1
      %p98 = por %p96, %p97
      %p99 = scmp.ne.s32.totalorder %s91, %s94
      %p100 = scmp.eq.s32.totalorder %s15, 0
      %p101 = por %p99, %p100
      %p102 = scmp.ne.s32.totalorder %s91, %s94
      %p103 = scmp.eq.s32.totalorder %s20, 1
      %p104 = por %p102, %p103
      %p105 = scmp.ne.s32.totalorder %s94, %s95
      %p106 = scmp.eq.s32.totalorder %s20, 0
      %p107 = por %p105, %p106
      %p108 = scmp.ne.s32.totalorder %s94, %s95
      %p109 = scmp.eq.s32.totalorder %s21, 1
      %p110 = por %p108, %p109
      %p112 = scmp.ne.s32.totalorder %s95, %s111
      %p113 = scmp.eq.s32.totalorder %s21, 0
      %p114 = por %p112, %p113
      %p115 = scmp.le.s32.totalorder 1, %s15
      %p116 = scmp.lt.s32.totalorder %s15, 3
      %p117 = pnand %p115, %p116
      %p118 = pneg %p117
      // Predicated region
      $region9: #{tpu_custom_call.1} parent=5 // pred_check
        _
      $region10: #{tpu_custom_call.1} parent=5 // pred_check_branch
        %120 = sbr.rel (%p117) target = $region12
      $region11: #{tpu_custom_call.1} parent=5 // pred_region
        %s121 = ssub.s32 %s15, 1
        // Predicated region
        $region13: #{tpu_custom_call.1} parent=11 // pred_check
          %p122 = pneg %p53
        $region14: #{tpu_custom_call.1} parent=11 // pred_check_branch
          %124 = sbr.rel (%p122) target = $region16
        $region15: #{tpu_custom_call.1} parent=11 // pred_region
          %s125 = smul.u32 3, %s25
          %s127 = ssub.s32 48, 48
          %128 = vsyncadd [#allocation3], %s127
          %s129 = smul.addr %s125, 16
          %s130 = scalar_lea.hbm %s0, %s129
          %s132 = sshll.u32 [#allocation2], 4
          %s133 = int_to_ptr.vmem [resolvable:$true] %s132
          %135 = dma.hbm_to_vmem [thread:$0]  %s130, 48, %s133, [#allocation3]
        $region16: #{tpu_custom_call.1} parent=11 // pred_fallthru
          _
      $region12: #{tpu_custom_call.1} parent=5 // pred_fallthru
        _
      %p136 = scmp.lt.s32.totalorder %s15, 2
      // Predicated region
      $region17: #{tpu_custom_call.1} parent=5 // pred_check
        %p137 = pneg %p136
      $region18: #{tpu_custom_call.1} parent=5 // pred_check_branch
        %139 = sbr.rel (%p137) target = $region20
      $region19: #{tpu_custom_call.1} parent=5 // pred_region
        // Predicated region
        $region21: #{tpu_custom_call.1} parent=19 // pred_check
          %p140 = pneg %p73
        $region22: #{tpu_custom_call.1} parent=19 // pred_check_branch
          %142 = sbr.rel (%p140) target = $region24
        $region23: #{tpu_custom_call.1} parent=19 // pred_region
          %s143 = sand.u32 %s63, 1
          %s144 = scalar_lea.sflag [#allocation6], %s143
          %s145 = sand.u32 %s63, 1
          %s146 = smul.addr %s145, 24
          %s147 = scalar_lea.vmem [#allocation5], %s146
          %s149 = ssub.s32 384, 384
          %150 = vsyncadd %s144, %s149
          %s151 = smul.addr %s22, 3
          %s152 = smul.addr %s151, 128
          %s153 = scalar_lea.hbm %s1, %s152
          %s155 = sshll.u32 %s147, 4
          %s156 = int_to_ptr.vmem [resolvable:$true] %s155
          %158 = dma.hbm_to_vmem [thread:$0]  %s153, 384, %s156, %s144
        $region24: #{tpu_custom_call.1} parent=19 // pred_fallthru
          _
      $region20: #{tpu_custom_call.1} parent=5 // pred_fallthru
        _
      %p159 = scmp.le.s32.totalorder 1, %s15
      %p160 = scmp.lt.s32.totalorder %s15, 3
      %p161 = pnand %p159, %p160
      %p162 = pneg %p161
      // Predicated region
      $region25: #{tpu_custom_call.1} parent=5 // pred_check
        _
      $region26: #{tpu_custom_call.1} parent=5 // pred_check_branch
        %164 = sbr.rel (%p161) target = $region28
      $region27: #{tpu_custom_call.1} parent=5 // pred_region
        %s165 = ssub.s32 %s15, 1
        // Predicated region
        $region29: #{tpu_custom_call.1} parent=27 // pred_check
          %p166 = pneg %p53
        $region30: #{tpu_custom_call.1} parent=27 // pred_check_branch
          %168 = sbr.rel (%p166) target = $region32
        $region31: #{tpu_custom_call.1} parent=27 // pred_region
          %169 = dma.done [#allocation3], 48
        $region32: #{tpu_custom_call.1} parent=27 // pred_fallthru
          _
        %s170 = sand.u32 %s66, 1
        %s171 = scalar_lea.sflag [#allocation6], %s170
        %s172 = sand.u32 %s66, 1
        %s173 = smul.addr %s172, 24
        %s174 = scalar_lea.vmem [#allocation5], %s173
        // Predicated region
        $region33: #{tpu_custom_call.1} parent=27 // pred_check
          %p175 = pneg %p79
        $region34: #{tpu_custom_call.1} parent=27 // pred_check_branch
          %177 = sbr.rel (%p175) target = $region36
        $region35: #{tpu_custom_call.1} parent=27 // pred_region
          %178 = dma.done %s171, 384
        $region36: #{tpu_custom_call.1} parent=27 // pred_fallthru
          _
        %p179 = pneg %p53
        %p180 = pneg %p50
        %s181 = sand.u32 %s66, 1
        %s182 = scalar_lea.sflag [#allocation6], %s181
        %s183 = sand.u32 %s66, 1
        %s184 = smul.addr %s183, 24
        %s185 = scalar_lea.vmem [#allocation5], %s184
        %p186 = pneg %p79
        %p187 = pneg %p76
        %p188 = pneg %p107
        %p189 = pneg %p104
        %s190 = sand.u32 %s94, 1
        %s191 = scalar_lea.sflag [#allocation4], %s190
        %s192 = sand.u32 %s94, 1
        %s193 = smul.addr %s192, 24
        %s194 = scalar_lea.vmem [#allocation7], %s193
        %s195 = smul.u32 3, %s25
        %s196 = smul.u32 3, %s25
        %v197 = vld [vmem:[#allocation2] sm:$0x7]
        %v198 = vld [vmem:[%s174] sm:$0xff]
        %v199 = vld [vmem:[%s174 + $0x8] sm:$0xff]
        %v200 = vld [vmem:[%s174 + $0x10] sm:$0xff]
        %v201 = vlaneseq
        %v202 = vshrl.u32 %v201, 7
        %v203 = vadd.s32 %v202, 8
        %v204 = vadd.s32 %v202, 16
        %v205 = vadd.s32 %v202, 24
        %v206 = vadd.s32 %v202, 32
        %v207 = vadd.s32 %v202, 40
        %v208 = vadd.s32 %v202, 48
        %v209 = vadd.s32 %v202, 56
        %v210 = vadd.s32 %v202, 64
        %v211 = vadd.s32 %v202, 72
        %v212 = vadd.s32 %v202, 80
        %v213 = vadd.s32 %v202, 88
        %v214 = vadd.s32 %v202, 96
        %v215 = vadd.s32 %v202, 104
        %v216 = vadd.s32 %v202, 112
        %v217 = vadd.s32 %v202, 120
        %v218 = vadd.s32 %v202, 128
        %v219 = vadd.s32 %v202, 136
        %v220 = vadd.s32 %v202, 144
        %v221 = vadd.s32 %v202, 152
        %v222 = vadd.s32 %v202, 160
        %v223 = vadd.s32 %v202, 168
        %v224 = vadd.s32 %v202, 176
        %v225 = vadd.s32 %v202, 184
        %v226 = vadd.s32 %v202, 192
        %v227 = vadd.s32 %v202, 200
        %v228 = vadd.s32 %v202, 208
        %v229 = vadd.s32 %v202, 216
        %v230 = vadd.s32 %v202, 224
        %v231 = vadd.s32 %v202, 232
        %v232 = vadd.s32 %v202, 240
        %v233 = vadd.s32 %v202, 248
        %v234 = vadd.s32 %v202, 256
        %v235 = vadd.s32 %v202, 264
        %v236 = vadd.s32 %v202, 272
        %v237 = vadd.s32 %v202, 280
        %v238 = vadd.s32 %v202, 288
        %v239 = vadd.s32 %v202, 296
        %v240 = vadd.s32 %v202, 304
        %v241 = vadd.s32 %v202, 312
        %v242 = vadd.s32 %v202, 320
        %v243 = vadd.s32 %v202, 328
        %v244 = vadd.s32 %v202, 336
        %v245 = vadd.s32 %v202, 344
        %v246 = vadd.s32 %v202, 352
        %v247 = vadd.s32 %v202, 360
        %v248 = vadd.s32 %v202, 368
        %v249 = vadd.s32 %v202, 376
        %v250 = vlaneseq
        %v251 = vshrl.u32 %v250, 7
        %v252 = vsub.s32 0, %v251
        %v253 = vrot.slane %v197, %v252
        %v254 = vlaneseq
        %v255 = vshrl.u32 %v254, 7
        %v256 = vsub.s32 1, %v255
        %v257 = vrot.slane %v197, %v256
        %v258 = vlaneseq
        %v259 = vshrl.u32 %v258, 7
        %v260 = vsub.s32 2, %v259
        %v261 = vrot.slane %v197, %v260
        %vm262 = vcmp.eq.s32.totalorder %v202, %v253
        %vm263 = vcmp.eq.s32.totalorder %v202, %v257
        %vm264 = vcmp.eq.s32.totalorder %v202, %v261
        %vm265 = vcmp.eq.s32.totalorder %v203, %v253
        %vm266 = vcmp.eq.s32.totalorder %v203, %v257
        %vm267 = vcmp.eq.s32.totalorder %v203, %v261
        %vm268 = vcmp.eq.s32.totalorder %v204, %v253
        %vm269 = vcmp.eq.s32.totalorder %v204, %v257
        %vm270 = vcmp.eq.s32.totalorder %v204, %v261
        %vm271 = vcmp.eq.s32.totalorder %v205, %v253
        %vm272 = vcmp.eq.s32.totalorder %v205, %v257
        %vm273 = vcmp.eq.s32.totalorder %v205, %v261
        %vm274 = vcmp.eq.s32.totalorder %v206, %v253
        %vm275 = vcmp.eq.s32.totalorder %v206, %v257
        %vm276 = vcmp.eq.s32.totalorder %v206, %v261
        %vm277 = vcmp.eq.s32.totalorder %v207, %v253
        %vm278 = vcmp.eq.s32.totalorder %v207, %v257
        %vm279 = vcmp.eq.s32.totalorder %v207, %v261
        %vm280 = vcmp.eq.s32.totalorder %v208, %v253
        %vm281 = vcmp.eq.s32.totalorder %v208, %v257
        %vm282 = vcmp.eq.s32.totalorder %v208, %v261
        %vm283 = vcmp.eq.s32.totalorder %v209, %v253
        %vm284 = vcmp.eq.s32.totalorder %v209, %v257
        %vm285 = vcmp.eq.s32.totalorder %v209, %v261
        %vm286 = vcmp.eq.s32.totalorder %v210, %v253
        %vm287 = vcmp.eq.s32.totalorder %v210, %v257
        %vm288 = vcmp.eq.s32.totalorder %v210, %v261
        %vm289 = vcmp.eq.s32.totalorder %v211, %v253
        %vm290 = vcmp.eq.s32.totalorder %v211, %v257
        %vm291 = vcmp.eq.s32.totalorder %v211, %v261
        %vm292 = vcmp.eq.s32.totalorder %v212, %v253
        %vm293 = vcmp.eq.s32.totalorder %v212, %v257
        %vm294 = vcmp.eq.s32.totalorder %v212, %v261
        %vm295 = vcmp.eq.s32.totalorder %v213, %v253
        %vm296 = vcmp.eq.s32.totalorder %v213, %v257
        %vm297 = vcmp.eq.s32.totalorder %v213, %v261
        %vm298 = vcmp.eq.s32.totalorder %v214, %v253
        %vm299 = vcmp.eq.s32.totalorder %v214, %v257
        %vm300 = vcmp.eq.s32.totalorder %v214, %v261
        %vm301 = vcmp.eq.s32.totalorder %v215, %v253
        %vm302 = vcmp.eq.s32.totalorder %v215, %v257
        %vm303 = vcmp.eq.s32.totalorder %v215, %v261
        %vm304 = vcmp.eq.s32.totalorder %v216, %v253
        %vm305 = vcmp.eq.s32.totalorder %v216, %v257
        %vm306 = vcmp.eq.s32.totalorder %v216, %v261
        %vm307 = vcmp.eq.s32.totalorder %v217, %v253
        %vm308 = vcmp.eq.s32.totalorder %v217, %v257
        %vm309 = vcmp.eq.s32.totalorder %v217, %v261
        %vm310 = vcmp.eq.s32.totalorder %v218, %v253
        %vm311 = vcmp.eq.s32.totalorder %v218, %v257
        %vm312 = vcmp.eq.s32.totalorder %v218, %v261
        %vm313 = vcmp.eq.s32.totalorder %v219, %v253
        %vm314 = vcmp.eq.s32.totalorder %v219, %v257
        %vm315 = vcmp.eq.s32.totalorder %v219, %v261
        %vm316 = vcmp.eq.s32.totalorder %v220, %v253
        %vm317 = vcmp.eq.s32.totalorder %v220, %v257
        %vm318 = vcmp.eq.s32.totalorder %v220, %v261
        %vm319 = vcmp.eq.s32.totalorder %v221, %v253
        %vm320 = vcmp.eq.s32.totalorder %v221, %v257
        %vm321 = vcmp.eq.s32.totalorder %v221, %v261
        %vm322 = vcmp.eq.s32.totalorder %v222, %v253
        %vm323 = vcmp.eq.s32.totalorder %v222, %v257
        %vm324 = vcmp.eq.s32.totalorder %v222, %v261
        %vm325 = vcmp.eq.s32.totalorder %v223, %v253
        %vm326 = vcmp.eq.s32.totalorder %v223, %v257
        %vm327 = vcmp.eq.s32.totalorder %v223, %v261
        %vm328 = vcmp.eq.s32.totalorder %v224, %v253
        %vm329 = vcmp.eq.s32.totalorder %v224, %v257
        %vm330 = vcmp.eq.s32.totalorder %v224, %v261
        %vm331 = vcmp.eq.s32.totalorder %v225, %v253
        %vm332 = vcmp.eq.s32.totalorder %v225, %v257
        %vm333 = vcmp.eq.s32.totalorder %v225, %v261
        %vm334 = vcmp.eq.s32.totalorder %v226, %v253
        %vm335 = vcmp.eq.s32.totalorder %v226, %v257
        %vm336 = vcmp.eq.s32.totalorder %v226, %v261
        %vm337 = vcmp.eq.s32.totalorder %v227, %v253
        %vm338 = vcmp.eq.s32.totalorder %v227, %v257
        %vm339 = vcmp.eq.s32.totalorder %v227, %v261
        %vm340 = vcmp.eq.s32.totalorder %v228, %v253
        %vm341 = vcmp.eq.s32.totalorder %v228, %v257
        %vm342 = vcmp.eq.s32.totalorder %v228, %v261
        %vm343 = vcmp.eq.s32.totalorder %v229, %v253
        %vm344 = vcmp.eq.s32.totalorder %v229, %v257
        %vm345 = vcmp.eq.s32.totalorder %v229, %v261
        %vm346 = vcmp.eq.s32.totalorder %v230, %v253
        %vm347 = vcmp.eq.s32.totalorder %v230, %v257
        %vm348 = vcmp.eq.s32.totalorder %v230, %v261
        %vm349 = vcmp.eq.s32.totalorder %v231, %v253
        %vm350 = vcmp.eq.s32.totalorder %v231, %v257
        %vm351 = vcmp.eq.s32.totalorder %v231, %v261
        %vm352 = vcmp.eq.s32.totalorder %v232, %v253
        %vm353 = vcmp.eq.s32.totalorder %v232, %v257
        %vm354 = vcmp.eq.s32.totalorder %v232, %v261
        %vm355 = vcmp.eq.s32.totalorder %v233, %v253
        %vm356 = vcmp.eq.s32.totalorder %v233, %v257
        %vm357 = vcmp.eq.s32.totalorder %v233, %v261
        %vm358 = vcmp.eq.s32.totalorder %v234, %v253
        %vm359 = vcmp.eq.s32.totalorder %v234, %v257
        %vm360 = vcmp.eq.s32.totalorder %v234, %v261
        %vm361 = vcmp.eq.s32.totalorder %v235, %v253
        %vm362 = vcmp.eq.s32.totalorder %v235, %v257
        %vm363 = vcmp.eq.s32.totalorder %v235, %v261
        %vm364 = vcmp.eq.s32.totalorder %v236, %v253
        %vm365 = vcmp.eq.s32.totalorder %v236, %v257
        %vm366 = vcmp.eq.s32.totalorder %v236, %v261
        %vm367 = vcmp.eq.s32.totalorder %v237, %v253
        %vm368 = vcmp.eq.s32.totalorder %v237, %v257
        %vm369 = vcmp.eq.s32.totalorder %v237, %v261
        %vm370 = vcmp.eq.s32.totalorder %v238, %v253
        %vm371 = vcmp.eq.s32.totalorder %v238, %v257
        %vm372 = vcmp.eq.s32.totalorder %v238, %v261
        %vm373 = vcmp.eq.s32.totalorder %v239, %v253
        %vm374 = vcmp.eq.s32.totalorder %v239, %v257
        %vm375 = vcmp.eq.s32.totalorder %v239, %v261
        %vm376 = vcmp.eq.s32.totalorder %v240, %v253
        %vm377 = vcmp.eq.s32.totalorder %v240, %v257
        %vm378 = vcmp.eq.s32.totalorder %v240, %v261
        %vm379 = vcmp.eq.s32.totalorder %v241, %v253
        %vm380 = vcmp.eq.s32.totalorder %v241, %v257
        %vm381 = vcmp.eq.s32.totalorder %v241, %v261
        %vm382 = vcmp.eq.s32.totalorder %v242, %v253
        %vm383 = vcmp.eq.s32.totalorder %v242, %v257
        %vm384 = vcmp.eq.s32.totalorder %v242, %v261
        %vm385 = vcmp.eq.s32.totalorder %v243, %v253
        %vm386 = vcmp.eq.s32.totalorder %v243, %v257
        %vm387 = vcmp.eq.s32.totalorder %v243, %v261
        %vm388 = vcmp.eq.s32.totalorder %v244, %v253
        %vm389 = vcmp.eq.s32.totalorder %v244, %v257
        %vm390 = vcmp.eq.s32.totalorder %v244, %v261
        %vm391 = vcmp.eq.s32.totalorder %v245, %v253
        %vm392 = vcmp.eq.s32.totalorder %v245, %v257
        %vm393 = vcmp.eq.s32.totalorder %v245, %v261
        %vm394 = vcmp.eq.s32.totalorder %v246, %v253
        %vm395 = vcmp.eq.s32.totalorder %v246, %v257
        %vm396 = vcmp.eq.s32.totalorder %v246, %v261
        %vm397 = vcmp.eq.s32.totalorder %v247, %v253
        %vm398 = vcmp.eq.s32.totalorder %v247, %v257
        %vm399 = vcmp.eq.s32.totalorder %v247, %v261
        %vm400 = vcmp.eq.s32.totalorder %v248, %v253
        %vm401 = vcmp.eq.s32.totalorder %v248, %v257
        %vm402 = vcmp.eq.s32.totalorder %v248, %v261
        %vm403 = vcmp.eq.s32.totalorder %v249, %v253
        %vm404 = vcmp.eq.s32.totalorder %v249, %v257
        %vm405 = vcmp.eq.s32.totalorder %v249, %v261
        %v406 = vsel %vm262, 1, 0
        %v407 = vsel %vm263, 1, 0
        %v408 = vsel %vm264, 1, 0
        %v409 = vsel %vm265, 1, 0
        %v410 = vsel %vm266, 1, 0
        %v411 = vsel %vm267, 1, 0
        %v412 = vsel %vm268, 1, 0
        %v413 = vsel %vm269, 1, 0
        %v414 = vsel %vm270, 1, 0
        %v415 = vsel %vm271, 1, 0
        %v416 = vsel %vm272, 1, 0
        %v417 = vsel %vm273, 1, 0
        %v418 = vsel %vm274, 1, 0
        %v419 = vsel %vm275, 1, 0
        %v420 = vsel %vm276, 1, 0
        %v421 = vsel %vm277, 1, 0
        %v422 = vsel %vm278, 1, 0
        %v423 = vsel %vm279, 1, 0
        %v424 = vsel %vm280, 1, 0
        %v425 = vsel %vm281, 1, 0
        %v426 = vsel %vm282, 1, 0
        %v427 = vsel %vm283, 1, 0
        %v428 = vsel %vm284, 1, 0
        %v429 = vsel %vm285, 1, 0
        %v430 = vsel %vm286, 1, 0
        %v431 = vsel %vm287, 1, 0
        %v432 = vsel %vm288, 1, 0
        %v433 = vsel %vm289, 1, 0
        %v434 = vsel %vm290, 1, 0
        %v435 = vsel %vm291, 1, 0
        %v436 = vsel %vm292, 1, 0
        %v437 = vsel %vm293, 1, 0
        %v438 = vsel %vm294, 1, 0
        %v439 = vsel %vm295, 1, 0
        %v440 = vsel %vm296, 1, 0
        %v441 = vsel %vm297, 1, 0
        %v442 = vsel %vm298, 1, 0
        %v443 = vsel %vm299, 1, 0
        %v444 = vsel %vm300, 1, 0
        %v445 = vsel %vm301, 1, 0
        %v446 = vsel %vm302, 1, 0
        %v447 = vsel %vm303, 1, 0
        %v448 = vsel %vm304, 1, 0
        %v449 = vsel %vm305, 1, 0
        %v450 = vsel %vm306, 1, 0
        %v451 = vsel %vm307, 1, 0
        %v452 = vsel %vm308, 1, 0
        %v453 = vsel %vm309, 1, 0
        %v454 = vsel %vm310, 1, 0
        %v455 = vsel %vm311, 1, 0
        %v456 = vsel %vm312, 1, 0
        %v457 = vsel %vm313, 1, 0
        %v458 = vsel %vm314, 1, 0
        %v459 = vsel %vm315, 1, 0
        %v460 = vsel %vm316, 1, 0
        %v461 = vsel %vm317, 1, 0
        %v462 = vsel %vm318, 1, 0
        %v463 = vsel %vm319, 1, 0
        %v464 = vsel %vm320, 1, 0
        %v465 = vsel %vm321, 1, 0
        %v466 = vsel %vm322, 1, 0
        %v467 = vsel %vm323, 1, 0
        %v468 = vsel %vm324, 1, 0
        %v469 = vsel %vm325, 1, 0
        %v470 = vsel %vm326, 1, 0
        %v471 = vsel %vm327, 1, 0
        %v472 = vsel %vm328, 1, 0
        %v473 = vsel %vm329, 1, 0
        %v474 = vsel %vm330, 1, 0
        %v475 = vsel %vm331, 1, 0
        %v476 = vsel %vm332, 1, 0
        %v477 = vsel %vm333, 1, 0
        %v478 = vsel %vm334, 1, 0
        %v479 = vsel %vm335, 1, 0
        %v480 = vsel %vm336, 1, 0
        %v481 = vsel %vm337, 1, 0
        %v482 = vsel %vm338, 1, 0
        %v483 = vsel %vm339, 1, 0
        %v484 = vsel %vm340, 1, 0
        %v485 = vsel %vm341, 1, 0
        %v486 = vsel %vm342, 1, 0
        %v487 = vsel %vm343, 1, 0
        %v488 = vsel %vm344, 1, 0
        %v489 = vsel %vm345, 1, 0
        %v490 = vsel %vm346, 1, 0
        %v491 = vsel %vm347, 1, 0
        %v492 = vsel %vm348, 1, 0
        %v493 = vsel %vm349, 1, 0
        %v494 = vsel %vm350, 1, 0
        %v495 = vsel %vm351, 1, 0
        %v496 = vsel %vm352, 1, 0
        %v497 = vsel %vm353, 1, 0
        %v498 = vsel %vm354, 1, 0
        %v499 = vsel %vm355, 1, 0
        %v500 = vsel %vm356, 1, 0
        %v501 = vsel %vm357, 1, 0
        %v502 = vsel %vm358, 1, 0
        %v503 = vsel %vm359, 1, 0
        %v504 = vsel %vm360, 1, 0
        %v505 = vsel %vm361, 1, 0
        %v506 = vsel %vm362, 1, 0
        %v507 = vsel %vm363, 1, 0
        %v508 = vsel %vm364, 1, 0
        %v509 = vsel %vm365, 1, 0
        %v510 = vsel %vm366, 1, 0
        %v511 = vsel %vm367, 1, 0
        %v512 = vsel %vm368, 1, 0
        %v513 = vsel %vm369, 1, 0
        %v514 = vsel %vm370, 1, 0
        %v515 = vsel %vm371, 1, 0
        %v516 = vsel %vm372, 1, 0
        %v517 = vsel %vm373, 1, 0
        %v518 = vsel %vm374, 1, 0
        %v519 = vsel %vm375, 1, 0
        %v520 = vsel %vm376, 1, 0
        %v521 = vsel %vm377, 1, 0
        %v522 = vsel %vm378, 1, 0
        %v523 = vsel %vm379, 1, 0
        %v524 = vsel %vm380, 1, 0
        %v525 = vsel %vm381, 1, 0
        %v526 = vsel %vm382, 1, 0
        %v527 = vsel %vm383, 1, 0
        %v528 = vsel %vm384, 1, 0
        %v529 = vsel %vm385, 1, 0
        %v530 = vsel %vm386, 1, 0
        %v531 = vsel %vm387, 1, 0
        %v532 = vsel %vm388, 1, 0
        %v533 = vsel %vm389, 1, 0
        %v534 = vsel %vm390, 1, 0
        %v535 = vsel %vm391, 1, 0
        %v536 = vsel %vm392, 1, 0
        %v537 = vsel %vm393, 1, 0
        %v538 = vsel %vm394, 1, 0
        %v539 = vsel %vm395, 1, 0
        %v540 = vsel %vm396, 1, 0
        %v541 = vsel %vm397, 1, 0
        %v542 = vsel %vm398, 1, 0
        %v543 = vsel %vm399, 1, 0
        %v544 = vsel %vm400, 1, 0
        %v545 = vsel %vm401, 1, 0
        %v546 = vsel %vm402, 1, 0
        %v547 = vsel %vm403, 1, 0
        %v548 = vsel %vm404, 1, 0
        %v549 = vsel %vm405, 1, 0
        %v550 = vcvt.s32.f32 %v406
        %v551 = vcvt.s32.f32 %v407
        %v552 = vcvt.s32.f32 %v408
        %v553 = vcvt.s32.f32 %v409
        %v554 = vcvt.s32.f32 %v410
        %v555 = vcvt.s32.f32 %v411
        %v556 = vcvt.s32.f32 %v412
        %v557 = vcvt.s32.f32 %v413
        %v558 = vcvt.s32.f32 %v414
        %v559 = vcvt.s32.f32 %v415
        %v560 = vcvt.s32.f32 %v416
        %v561 = vcvt.s32.f32 %v417
        %v562 = vcvt.s32.f32 %v418
        %v563 = vcvt.s32.f32 %v419
        %v564 = vcvt.s32.f32 %v420
        %v565 = vcvt.s32.f32 %v421
        %v566 = vcvt.s32.f32 %v422
        %v567 = vcvt.s32.f32 %v423
        %v568 = vcvt.s32.f32 %v424
        %v569 = vcvt.s32.f32 %v425
        %v570 = vcvt.s32.f32 %v426
        %v571 = vcvt.s32.f32 %v427
        %v572 = vcvt.s32.f32 %v428
        %v573 = vcvt.s32.f32 %v429
        %v574 = vcvt.s32.f32 %v430
        %v575 = vcvt.s32.f32 %v431
        %v576 = vcvt.s32.f32 %v432
        %v577 = vcvt.s32.f32 %v433
        %v578 = vcvt.s32.f32 %v434
        %v579 = vcvt.s32.f32 %v435
        %v580 = vcvt.s32.f32 %v436
        %v581 = vcvt.s32.f32 %v437
        %v582 = vcvt.s32.f32 %v438
        %v583 = vcvt.s32.f32 %v439
        %v584 = vcvt.s32.f32 %v440
        %v585 = vcvt.s32.f32 %v441
        %v586 = vcvt.s32.f32 %v442
        %v587 = vcvt.s32.f32 %v443
        %v588 = vcvt.s32.f32 %v444
        %v589 = vcvt.s32.f32 %v445
        %v590 = vcvt.s32.f32 %v446
        %v591 = vcvt.s32.f32 %v447
        %v592 = vcvt.s32.f32 %v448
        %v593 = vcvt.s32.f32 %v449
        %v594 = vcvt.s32.f32 %v450
        %v595 = vcvt.s32.f32 %v451
        %v596 = vcvt.s32.f32 %v452
        %v597 = vcvt.s32.f32 %v453
        %v598 = vcvt.s32.f32 %v454
        %v599 = vcvt.s32.f32 %v455
        %v600 = vcvt.s32.f32 %v456
        %v601 = vcvt.s32.f32 %v457
        %v602 = vcvt.s32.f32 %v458
        %v603 = vcvt.s32.f32 %v459
        %v604 = vcvt.s32.f32 %v460
        %v605 = vcvt.s32.f32 %v461
        %v606 = vcvt.s32.f32 %v462
        %v607 = vcvt.s32.f32 %v463
        %v608 = vcvt.s32.f32 %v464
        %v609 = vcvt.s32.f32 %v465
        %v610 = vcvt.s32.f32 %v466
        %v611 = vcvt.s32.f32 %v467
        %v612 = vcvt.s32.f32 %v468
        %v613 = vcvt.s32.f32 %v469
        %v614 = vcvt.s32.f32 %v470
        %v615 = vcvt.s32.f32 %v471
        %v616 = vcvt.s32.f32 %v472
        %v617 = vcvt.s32.f32 %v473
        %v618 = vcvt.s32.f32 %v474
        %v619 = vcvt.s32.f32 %v475
        %v620 = vcvt.s32.f32 %v476
        %v621 = vcvt.s32.f32 %v477
        %v622 = vcvt.s32.f32 %v478
        %v623 = vcvt.s32.f32 %v479
        %v624 = vcvt.s32.f32 %v480
        %v625 = vcvt.s32.f32 %v481
        %v626 = vcvt.s32.f32 %v482
        %v627 = vcvt.s32.f32 %v483
        %v628 = vcvt.s32.f32 %v484
        %v629 = vcvt.s32.f32 %v485
        %v630 = vcvt.s32.f32 %v486
        %v631 = vcvt.s32.f32 %v487
        %v632 = vcvt.s32.f32 %v488
        %v633 = vcvt.s32.f32 %v489
        %v634 = vcvt.s32.f32 %v490
        %v635 = vcvt.s32.f32 %v491
        %v636 = vcvt.s32.f32 %v492
        %v637 = vcvt.s32.f32 %v493
        %v638 = vcvt.s32.f32 %v494
        %v639 = vcvt.s32.f32 %v495
        %v640 = vcvt.s32.f32 %v496
        %v641 = vcvt.s32.f32 %v497
        %v642 = vcvt.s32.f32 %v498
        %v643 = vcvt.s32.f32 %v499
        %v644 = vcvt.s32.f32 %v500
        %v645 = vcvt.s32.f32 %v501
        %v646 = vcvt.s32.f32 %v502
        %v647 = vcvt.s32.f32 %v503
        %v648 = vcvt.s32.f32 %v504
        %v649 = vcvt.s32.f32 %v505
        %v650 = vcvt.s32.f32 %v506
        %v651 = vcvt.s32.f32 %v507
        %v652 = vcvt.s32.f32 %v508
        %v653 = vcvt.s32.f32 %v509
        %v654 = vcvt.s32.f32 %v510
        %v655 = vcvt.s32.f32 %v511
        %v656 = vcvt.s32.f32 %v512
        %v657 = vcvt.s32.f32 %v513
        %v658 = vcvt.s32.f32 %v514
        %v659 = vcvt.s32.f32 %v515
        %v660 = vcvt.s32.f32 %v516
        %v661 = vcvt.s32.f32 %v517
        %v662 = vcvt.s32.f32 %v518
        %v663 = vcvt.s32.f32 %v519
        %v664 = vcvt.s32.f32 %v520
        %v665 = vcvt.s32.f32 %v521
        %v666 = vcvt.s32.f32 %v522
        %v667 = vcvt.s32.f32 %v523
        %v668 = vcvt.s32.f32 %v524
        %v669 = vcvt.s32.f32 %v525
        %v670 = vcvt.s32.f32 %v526
        %v671 = vcvt.s32.f32 %v527
        %v672 = vcvt.s32.f32 %v528
        %v673 = vcvt.s32.f32 %v529
        %v674 = vcvt.s32.f32 %v530
        %v675 = vcvt.s32.f32 %v531
        %v676 = vcvt.s32.f32 %v532
        %v677 = vcvt.s32.f32 %v533
        %v678 = vcvt.s32.f32 %v534
        %v679 = vcvt.s32.f32 %v535
        %v680 = vcvt.s32.f32 %v536
        %v681 = vcvt.s32.f32 %v537
        %v682 = vcvt.s32.f32 %v538
        %v683 = vcvt.s32.f32 %v539
        %v684 = vcvt.s32.f32 %v540
        %v685 = vcvt.s32.f32 %v541
        %v686 = vcvt.s32.f32 %v542
        %v687 = vcvt.s32.f32 %v543
        %v688 = vcvt.s32.f32 %v544
        %v689 = vcvt.s32.f32 %v545
        %v690 = vcvt.s32.f32 %v546
        %v691 = vcvt.s32.f32 %v547
        %v692 = vcvt.s32.f32 %v548
        %v693 = vcvt.s32.f32 %v549
        %v694 = vand.u32 %v596, 4294901760
        %695 = vmatprep.subr.mxu0 %v694
        %v696 = vand.u32 %v595, 4294901760
        %697 = vmatpush1.msra.mxu0 %v696
        %v698 = vand.u32 %v593, 4294901760
        %699 = vmatprep.subr.mxu0 %v698
        %v700 = vand.u32 %v592, 4294901760
        %701 = vmatpush1.msra.mxu0 %v700
        %v702 = vand.u32 %v590, 4294901760
        %703 = vmatprep.subr.mxu0 %v702
        %v704 = vand.u32 %v589, 4294901760
        %705 = vmatpush1.msra.mxu0 %v704
        %v706 = vand.u32 %v587, 4294901760
        %707 = vmatprep.subr.mxu0 %v706
        %v708 = vand.u32 %v586, 4294901760
        %709 = vmatpush1.msra.mxu0 %v708
        %v710 = vand.u32 %v584, 4294901760
        %711 = vmatprep.subr.mxu0 %v710
        %v712 = vand.u32 %v583, 4294901760
        %713 = vmatpush1.msra.mxu0 %v712
        %v714 = vand.u32 %v581, 4294901760
        %715 = vmatprep.subr.mxu0 %v714
        %v716 = vand.u32 %v580, 4294901760
        %717 = vmatpush1.msra.mxu0 %v716
        %v718 = vand.u32 %v578, 4294901760
        %719 = vmatprep.subr.mxu0 %v718
        %v720 = vand.u32 %v577, 4294901760
        %721 = vmatpush1.msra.mxu0 %v720
        %v722 = vand.u32 %v575, 4294901760
        %723 = vmatprep.subr.mxu0 %v722
        %v724 = vand.u32 %v574, 4294901760
        %725 = vmatpush1.msra.mxu0 %v724
        %v726 = vand.u32 %v572, 4294901760
        %727 = vmatprep.subr.mxu0 %v726
        %v728 = vand.u32 %v571, 4294901760
        %729 = vmatpush1.msra.mxu0 %v728
        %v730 = vand.u32 %v569, 4294901760
        %731 = vmatprep.subr.mxu0 %v730
        %v732 = vand.u32 %v568, 4294901760
        %733 = vmatpush1.msra.mxu0 %v732
        %v734 = vand.u32 %v566, 4294901760
        %735 = vmatprep.subr.mxu0 %v734
        %v736 = vand.u32 %v565, 4294901760
        %737 = vmatpush1.msra.mxu0 %v736
        %v738 = vand.u32 %v563, 4294901760
        %739 = vmatprep.subr.mxu0 %v738
        %v740 = vand.u32 %v562, 4294901760
        %741 = vmatpush1.msra.mxu0 %v740
        %v742 = vand.u32 %v560, 4294901760
        %743 = vmatprep.subr.mxu0 %v742
        %v744 = vand.u32 %v559, 4294901760
        %745 = vmatpush1.msra.mxu0 %v744
        %v746 = vand.u32 %v557, 4294901760
        %747 = vmatprep.subr.mxu0 %v746
        %v748 = vand.u32 %v556, 4294901760
        %749 = vmatpush1.msra.mxu0 %v748
        %v750 = vand.u32 %v554, 4294901760
        %751 = vmatprep.subr.mxu0 %v750
        %v752 = vand.u32 %v553, 4294901760
        %753 = vmatpush1.msra.mxu0 %v752
        %v754 = vand.u32 %v551, 4294901760
        %755 = vmatprep.subr.mxu0 %v754
        %v756 = vand.u32 %v550, 4294901760
        %757 = vmatpush1.msra.mxu0 %v756
        %v758 = vand.u32 %v644, 4294901760
        %759 = vmatprep.subr.mxu0 %v758
        %v760 = vand.u32 %v643, 4294901760
        %761 = vmatpush2.msra.mxu0 %v760
        %v762 = vand.u32 %v641, 4294901760
        %763 = vmatprep.subr.mxu0 %v762
        %v764 = vand.u32 %v640, 4294901760
        %765 = vmatpush2.msra.mxu0 %v764
        %v766 = vand.u32 %v638, 4294901760
        %767 = vmatprep.subr.mxu0 %v766
        %v768 = vand.u32 %v637, 4294901760
        %769 = vmatpush2.msra.mxu0 %v768
        %v770 = vand.u32 %v635, 4294901760
        %771 = vmatprep.subr.mxu0 %v770
        %v772 = vand.u32 %v634, 4294901760
        %773 = vmatpush2.msra.mxu0 %v772
        %v774 = vand.u32 %v632, 4294901760
        %775 = vmatprep.subr.mxu0 %v774
        %v776 = vand.u32 %v631, 4294901760
        %777 = vmatpush2.msra.mxu0 %v776
        %v778 = vand.u32 %v629, 4294901760
        %779 = vmatprep.subr.mxu0 %v778
        %v780 = vand.u32 %v628, 4294901760
        %781 = vmatpush2.msra.mxu0 %v780
        %v782 = vand.u32 %v626, 4294901760
        %783 = vmatprep.subr.mxu0 %v782
        %v784 = vand.u32 %v625, 4294901760
        %785 = vmatpush2.msra.mxu0 %v784
        %v786 = vand.u32 %v623, 4294901760
        %787 = vmatprep.subr.mxu0 %v786
        %v788 = vand.u32 %v622, 4294901760
        %789 = vmatpush2.msra.mxu0 %v788
        %v790 = vand.u32 %v620, 4294901760
        %791 = vmatprep.subr.mxu0 %v790
        %v792 = vand.u32 %v619, 4294901760
        %793 = vmatpush2.msra.mxu0 %v792
        %v794 = vand.u32 %v617, 4294901760
        %795 = vmatprep.subr.mxu0 %v794
        %v796 = vand.u32 %v616, 4294901760
        %797 = vmatpush2.msra.mxu0 %v796
        %v798 = vand.u32 %v614, 4294901760
        %799 = vmatprep.subr.mxu0 %v798
        %v800 = vand.u32 %v613, 4294901760
        %801 = vmatpush2.msra.mxu0 %v800
        %v802 = vand.u32 %v611, 4294901760
        %803 = vmatprep.subr.mxu0 %v802
        %v804 = vand.u32 %v610, 4294901760
        %805 = vmatpush2.msra.mxu0 %v804
        %v806 = vand.u32 %v608, 4294901760
        %807 = vmatprep.subr.mxu0 %v806
        %v808 = vand.u32 %v607, 4294901760
        %809 = vmatpush2.msra.mxu0 %v808
        %v810 = vand.u32 %v605, 4294901760
        %811 = vmatprep.subr.mxu0 %v810
        %v812 = vand.u32 %v604, 4294901760
        %813 = vmatpush2.msra.mxu0 %v812
        %v814 = vand.u32 %v602, 4294901760
        %815 = vmatprep.subr.mxu0 %v814
        %v816 = vand.u32 %v601, 4294901760
        %817 = vmatpush2.msra.mxu0 %v816
        %v818 = vand.u32 %v599, 4294901760
        %819 = vmatprep.subr.mxu0 %v818
        %v820 = vand.u32 %v598, 4294901760
        %821 = vmatpush2.msra.mxu0 %v820
        %v822 = vand.u32 %v199, 4294901760
        %v823 = vsub.f32 %v199, %v822
        %v824 = vand.u32 %v823, 4294901760
        %v825 = vsub.f32 %v823, %v824
        %v826 = vand.u32 %v825, 4294901760
        %827 = vmatprep.mubr.f32.mxu0 %v826
        %v828 = vand.u32 %v198, 4294901760
        %v829 = vsub.f32 %v198, %v828
        %v830 = vand.u32 %v829, 4294901760
        %v831 = vsub.f32 %v829, %v830
        %v832 = vand.u32 %v831, 4294901760
        %833 = vmatmul.mubr.f32.gmra.mxu0 %v832
        %v834 = vpop.f32.mrf.mxu0
        %v835 = vadd.f32 0.0, %v834
        %v836 = vpop.f32.mrf.mxu0
        %v837 = vadd.f32 0.0, %v836
        %838 = vdwg.mxu0
        %v839 = vand.u32 %v596, 4294901760
        %v840 = vsub.f32 %v596, %v839
        %v841 = vand.u32 %v840, 4294901760
        %v842 = vsub.f32 %v840, %v841
        %v843 = vand.u32 %v842, 4294901760
        %844 = vmatprep.subr.mxu0 %v843
        %v845 = vand.u32 %v595, 4294901760
        %v846 = vsub.f32 %v595, %v845
        %v847 = vand.u32 %v846, 4294901760
        %v848 = vsub.f32 %v846, %v847
        %v849 = vand.u32 %v848, 4294901760
        %850 = vmatpush1.msra.mxu0 %v849
        %v851 = vand.u32 %v593, 4294901760
        %v852 = vsub.f32 %v593, %v851
        %v853 = vand.u32 %v852, 4294901760
        %v854 = vsub.f32 %v852, %v853
        %v855 = vand.u32 %v854, 4294901760
        %856 = vmatprep.subr.mxu0 %v855
        %v857 = vand.u32 %v592, 4294901760
        %v858 = vsub.f32 %v592, %v857
        %v859 = vand.u32 %v858, 4294901760
        %v860 = vsub.f32 %v858, %v859
        %v861 = vand.u32 %v860, 4294901760
        %862 = vmatpush1.msra.mxu0 %v861
        %v863 = vand.u32 %v590, 4294901760
        %v864 = vsub.f32 %v590, %v863
        %v865 = vand.u32 %v864, 4294901760
        %v866 = vsub.f32 %v864, %v865
        %v867 = vand.u32 %v866, 4294901760
        %868 = vmatprep.subr.mxu0 %v867
        %v869 = vand.u32 %v589, 4294901760
        %v870 = vsub.f32 %v589, %v869
        %v871 = vand.u32 %v870, 4294901760
        %v872 = vsub.f32 %v870, %v871
        %v873 = vand.u32 %v872, 4294901760
        %874 = vmatpush1.msra.mxu0 %v873
        %v875 = vand.u32 %v587, 4294901760
        %v876 = vsub.f32 %v587, %v875
        %v877 = vand.u32 %v876, 4294901760
        %v878 = vsub.f32 %v876, %v877
        %v879 = vand.u32 %v878, 4294901760
        %880 = vmatprep.subr.mxu0 %v879
        %v881 = vand.u32 %v586, 4294901760
        %v882 = vsub.f32 %v586, %v881
        %v883 = vand.u32 %v882, 4294901760
        %v884 = vsub.f32 %v882, %v883
        %v885 = vand.u32 %v884, 4294901760
        %886 = vmatpush1.msra.mxu0 %v885
        %v887 = vand.u32 %v584, 4294901760
        %v888 = vsub.f32 %v584, %v887
        %v889 = vand.u32 %v888, 4294901760
        %v890 = vsub.f32 %v888, %v889
        %v891 = vand.u32 %v890, 4294901760
        %892 = vmatprep.subr.mxu0 %v891
        %v893 = vand.u32 %v583, 4294901760
        %v894 = vsub.f32 %v583, %v893
        %v895 = vand.u32 %v894, 4294901760
        %v896 = vsub.f32 %v894, %v895
        %v897 = vand.u32 %v896, 4294901760
        %898 = vmatpush1.msra.mxu0 %v897
        %v899 = vand.u32 %v581, 4294901760
        %v900 = vsub.f32 %v581, %v899
        %v901 = vand.u32 %v900, 4294901760
        %v902 = vsub.f32 %v900, %v901
        %v903 = vand.u32 %v902, 4294901760
        %904 = vmatprep.subr.mxu0 %v903
        %v905 = vand.u32 %v580, 4294901760
        %v906 = vsub.f32 %v580, %v905
        %v907 = vand.u32 %v906, 4294901760
        %v908 = vsub.f32 %v906, %v907
        %v909 = vand.u32 %v908, 4294901760
        %910 = vmatpush1.msra.mxu0 %v909
        %v911 = vand.u32 %v578, 4294901760
        %v912 = vsub.f32 %v578, %v911
        %v913 = vand.u32 %v912, 4294901760
        %v914 = vsub.f32 %v912, %v913
        %v915 = vand.u32 %v914, 4294901760
        %916 = vmatprep.subr.mxu0 %v915
        %v917 = vand.u32 %v577, 4294901760
        %v918 = vsub.f32 %v577, %v917
        %v919 = vand.u32 %v918, 4294901760
        %v920 = vsub.f32 %v918, %v919
        %v921 = vand.u32 %v920, 4294901760
        %922 = vmatpush1.msra.mxu0 %v921
        %v923 = vand.u32 %v575, 4294901760
        %v924 = vsub.f32 %v575, %v923
        %v925 = vand.u32 %v924, 4294901760
        %v926 = vsub.f32 %v924, %v925
        %v927 = vand.u32 %v926, 4294901760
        %928 = vmatprep.subr.mxu0 %v927
        %v929 = vand.u32 %v574, 4294901760
        %v930 = vsub.f32 %v574, %v929
        %v931 = vand.u32 %v930, 4294901760
        %v932 = vsub.f32 %v930, %v931
        %v933 = vand.u32 %v932, 4294901760
        %934 = vmatpush1.msra.mxu0 %v933
        %v935 = vand.u32 %v572, 4294901760
        %v936 = vsub.f32 %v572, %v935
        %v937 = vand.u32 %v936, 4294901760
        %v938 = vsub.f32 %v936, %v937
        %v939 = vand.u32 %v938, 4294901760
        %940 = vmatprep.subr.mxu0 %v939
        %v941 = vand.u32 %v571, 4294901760
        %v942 = vsub.f32 %v571, %v941
        %v943 = vand.u32 %v942, 4294901760
        %v944 = vsub.f32 %v942, %v943
        %v945 = vand.u32 %v944, 4294901760
        %946 = vmatpush1.msra.mxu0 %v945
        %v947 = vand.u32 %v569, 4294901760
        %v948 = vsub.f32 %v569, %v947
        %v949 = vand.u32 %v948, 4294901760
        %v950 = vsub.f32 %v948, %v949
        %v951 = vand.u32 %v950, 4294901760
        %952 = vmatprep.subr.mxu0 %v951
        %v953 = vand.u32 %v568, 4294901760
        %v954 = vsub.f32 %v568, %v953
        %v955 = vand.u32 %v954, 4294901760
        %v956 = vsub.f32 %v954, %v955
        %v957 = vand.u32 %v956, 4294901760
        %958 = vmatpush1.msra.mxu0 %v957
        %v959 = vand.u32 %v566, 4294901760
        %v960 = vsub.f32 %v566, %v959
        %v961 = vand.u32 %v960, 4294901760
        %v962 = vsub.f32 %v960, %v961
        %v963 = vand.u32 %v962, 4294901760
        %964 = vmatprep.subr.mxu0 %v963
        %v965 = vand.u32 %v565, 4294901760
        %v966 = vsub.f32 %v565, %v965
        %v967 = vand.u32 %v966, 4294901760
        %v968 = vsub.f32 %v966, %v967
        %v969 = vand.u32 %v968, 4294901760
        %970 = vmatpush1.msra.mxu0 %v969
        %v971 = vand.u32 %v563, 4294901760
        %v972 = vsub.f32 %v563, %v971
        %v973 = vand.u32 %v972, 4294901760
        %v974 = vsub.f32 %v972, %v973
        %v975 = vand.u32 %v974, 4294901760
        %976 = vmatprep.subr.mxu0 %v975
        %v977 = vand.u32 %v562, 4294901760
        %v978 = vsub.f32 %v562, %v977
        %v979 = vand.u32 %v978, 4294901760
        %v980 = vsub.f32 %v978, %v979
        %v981 = vand.u32 %v980, 4294901760
        %982 = vmatpush1.msra.mxu0 %v981
        %v983 = vand.u32 %v560, 4294901760
        %v984 = vsub.f32 %v560, %v983
        %v985 = vand.u32 %v984, 4294901760
        %v986 = vsub.f32 %v984, %v985
        %v987 = vand.u32 %v986, 4294901760
        %988 = vmatprep.subr.mxu0 %v987
        %v989 = vand.u32 %v559, 4294901760
        %v990 = vsub.f32 %v559, %v989
        %v991 = vand.u32 %v990, 4294901760
        %v992 = vsub.f32 %v990, %v991
        %v993 = vand.u32 %v992, 4294901760
        %994 = vmatpush1.msra.mxu0 %v993
        %v995 = vand.u32 %v557, 4294901760
        %v996 = vsub.f32 %v557, %v995
        %v997 = vand.u32 %v996, 4294901760
        %v998 = vsub.f32 %v996, %v997
        %v999 = vand.u32 %v998, 4294901760
        %1000 = vmatprep.subr.mxu0 %v999
        %v1001 = vand.u32 %v556, 4294901760
        %v1002 = vsub.f32 %v556, %v1001
        %v1003 = vand.u32 %v1002, 4294901760
        %v1004 = vsub.f32 %v1002, %v1003
        %v1005 = vand.u32 %v1004, 4294901760
        %1006 = vmatpush1.msra.mxu0 %v1005
        %v1007 = vand.u32 %v554, 4294901760
        %v1008 = vsub.f32 %v554, %v1007
        %v1009 = vand.u32 %v1008, 4294901760
        %v1010 = vsub.f32 %v1008, %v1009
        %v1011 = vand.u32 %v1010, 4294901760
        %1012 = vmatprep.subr.mxu0 %v1011
        %v1013 = vand.u32 %v553, 4294901760
        %v1014 = vsub.f32 %v553, %v1013
        %v1015 = vand.u32 %v1014, 4294901760
        %v1016 = vsub.f32 %v1014, %v1015
        %v1017 = vand.u32 %v1016, 4294901760
        %1018 = vmatpush1.msra.mxu0 %v1017
        %v1019 = vand.u32 %v551, 4294901760
        %v1020 = vsub.f32 %v551, %v1019
        %v1021 = vand.u32 %v1020, 4294901760
        %v1022 = vsub.f32 %v1020, %v1021
        %v1023 = vand.u32 %v1022, 4294901760
        %1024 = vmatprep.subr.mxu0 %v1023
        %v1025 = vand.u32 %v550, 4294901760
        %v1026 = vsub.f32 %v550, %v1025
        %v1027 = vand.u32 %v1026, 4294901760
        %v1028 = vsub.f32 %v1026, %v1027
        %v1029 = vand.u32 %v1028, 4294901760
        %1030 = vmatpush1.msra.mxu0 %v1029
        %v1031 = vand.u32 %v644, 4294901760
        %v1032 = vsub.f32 %v644, %v1031
        %v1033 = vand.u32 %v1032, 4294901760
        %v1034 = vsub.f32 %v1032, %v1033
        %v1035 = vand.u32 %v1034, 4294901760
        %1036 = vmatprep.subr.mxu0 %v1035
        %v1037 = vand.u32 %v643, 4294901760
        %v1038 = vsub.f32 %v643, %v1037
        %v1039 = vand.u32 %v1038, 4294901760
        %v1040 = vsub.f32 %v1038, %v1039
        %v1041 = vand.u32 %v1040, 4294901760
        %1042 = vmatpush2.msra.mxu0 %v1041
        %v1043 = vand.u32 %v641, 4294901760
        %v1044 = vsub.f32 %v641, %v1043
        %v1045 = vand.u32 %v1044, 4294901760
        %v1046 = vsub.f32 %v1044, %v1045
        %v1047 = vand.u32 %v1046, 4294901760
        %1048 = vmatprep.subr.mxu0 %v1047
        %v1049 = vand.u32 %v640, 4294901760
        %v1050 = vsub.f32 %v640, %v1049
        %v1051 = vand.u32 %v1050, 4294901760
        %v1052 = vsub.f32 %v1050, %v1051
        %v1053 = vand.u32 %v1052, 4294901760
        %1054 = vmatpush2.msra.mxu0 %v1053
        %v1055 = vand.u32 %v638, 4294901760
        %v1056 = vsub.f32 %v638, %v1055
        %v1057 = vand.u32 %v1056, 4294901760
        %v1058 = vsub.f32 %v1056, %v1057
        %v1059 = vand.u32 %v1058, 4294901760
        %1060 = vmatprep.subr.mxu0 %v1059
        %v1061 = vand.u32 %v637, 4294901760
        %v1062 = vsub.f32 %v637, %v1061
        %v1063 = vand.u32 %v1062, 4294901760
        %v1064 = vsub.f32 %v1062, %v1063
        %v1065 = vand.u32 %v1064, 4294901760
        %1066 = vmatpush2.msra.mxu0 %v1065
        %v1067 = vand.u32 %v635, 4294901760
        %v1068 = vsub.f32 %v635, %v1067
        %v1069 = vand.u32 %v1068, 4294901760
        %v1070 = vsub.f32 %v1068, %v1069
        %v1071 = vand.u32 %v1070, 4294901760
        %1072 = vmatprep.subr.mxu0 %v1071
        %v1073 = vand.u32 %v634, 4294901760
        %v1074 = vsub.f32 %v634, %v1073
        %v1075 = vand.u32 %v1074, 4294901760
        %v1076 = vsub.f32 %v1074, %v1075
        %v1077 = vand.u32 %v1076, 4294901760
        %1078 = vmatpush2.msra.mxu0 %v1077
        %v1079 = vand.u32 %v632, 4294901760
        %v1080 = vsub.f32 %v632, %v1079
        %v1081 = vand.u32 %v1080, 4294901760
        %v1082 = vsub.f32 %v1080, %v1081
        %v1083 = vand.u32 %v1082, 4294901760
        %1084 = vmatprep.subr.mxu0 %v1083
        %v1085 = vand.u32 %v631, 4294901760
        %v1086 = vsub.f32 %v631, %v1085
        %v1087 = vand.u32 %v1086, 4294901760
        %v1088 = vsub.f32 %v1086, %v1087
        %v1089 = vand.u32 %v1088, 4294901760
        %1090 = vmatpush2.msra.mxu0 %v1089
        %v1091 = vand.u32 %v629, 4294901760
        %v1092 = vsub.f32 %v629, %v1091
        %v1093 = vand.u32 %v1092, 4294901760
        %v1094 = vsub.f32 %v1092, %v1093
        %v1095 = vand.u32 %v1094, 4294901760
        %1096 = vmatprep.subr.mxu0 %v1095
        %v1097 = vand.u32 %v628, 4294901760
        %v1098 = vsub.f32 %v628, %v1097
        %v1099 = vand.u32 %v1098, 4294901760
        %v1100 = vsub.f32 %v1098, %v1099
        %v1101 = vand.u32 %v1100, 4294901760
        %1102 = vmatpush2.msra.mxu0 %v1101
        %v1103 = vand.u32 %v626, 4294901760
        %v1104 = vsub.f32 %v626, %v1103
        %v1105 = vand.u32 %v1104, 4294901760
        %v1106 = vsub.f32 %v1104, %v1105
        %v1107 = vand.u32 %v1106, 4294901760
        %1108 = vmatprep.subr.mxu0 %v1107
        %v1109 = vand.u32 %v625, 4294901760
        %v1110 = vsub.f32 %v625, %v1109
        %v1111 = vand.u32 %v1110, 4294901760
        %v1112 = vsub.f32 %v1110, %v1111
        %v1113 = vand.u32 %v1112, 4294901760
        %1114 = vmatpush2.msra.mxu0 %v1113
        %v1115 = vand.u32 %v623, 4294901760
        %v1116 = vsub.f32 %v623, %v1115
        %v1117 = vand.u32 %v1116, 4294901760
        %v1118 = vsub.f32 %v1116, %v1117
        %v1119 = vand.u32 %v1118, 4294901760
        %1120 = vmatprep.subr.mxu0 %v1119
        %v1121 = vand.u32 %v622, 4294901760
        %v1122 = vsub.f32 %v622, %v1121
        %v1123 = vand.u32 %v1122, 4294901760
        %v1124 = vsub.f32 %v1122, %v1123
        %v1125 = vand.u32 %v1124, 4294901760
        %1126 = vmatpush2.msra.mxu0 %v1125
        %v1127 = vand.u32 %v620, 4294901760
        %v1128 = vsub.f32 %v620, %v1127
        %v1129 = vand.u32 %v1128, 4294901760
        %v1130 = vsub.f32 %v1128, %v1129
        %v1131 = vand.u32 %v1130, 4294901760
        %1132 = vmatprep.subr.mxu0 %v1131
        %v1133 = vand.u32 %v619, 4294901760
        %v1134 = vsub.f32 %v619, %v1133
        %v1135 = vand.u32 %v1134, 4294901760
        %v1136 = vsub.f32 %v1134, %v1135
        %v1137 = vand.u32 %v1136, 4294901760
        %1138 = vmatpush2.msra.mxu0 %v1137
        %v1139 = vand.u32 %v617, 4294901760
        %v1140 = vsub.f32 %v617, %v1139
        %v1141 = vand.u32 %v1140, 4294901760
        %v1142 = vsub.f32 %v1140, %v1141
        %v1143 = vand.u32 %v1142, 4294901760
        %1144 = vmatprep.subr.mxu0 %v1143
        %v1145 = vand.u32 %v616, 4294901760
        %v1146 = vsub.f32 %v616, %v1145
        %v1147 = vand.u32 %v1146, 4294901760
        %v1148 = vsub.f32 %v1146, %v1147
        %v1149 = vand.u32 %v1148, 4294901760
        %1150 = vmatpush2.msra.mxu0 %v1149
        %v1151 = vand.u32 %v614, 4294901760
        %v1152 = vsub.f32 %v614, %v1151
        %v1153 = vand.u32 %v1152, 4294901760
        %v1154 = vsub.f32 %v1152, %v1153
        %v1155 = vand.u32 %v1154, 4294901760
        %1156 = vmatprep.subr.mxu0 %v1155
        %v1157 = vand.u32 %v613, 4294901760
        %v1158 = vsub.f32 %v613, %v1157
        %v1159 = vand.u32 %v1158, 4294901760
        %v1160 = vsub.f32 %v1158, %v1159
        %v1161 = vand.u32 %v1160, 4294901760
        %1162 = vmatpush2.msra.mxu0 %v1161
        %v1163 = vand.u32 %v611, 4294901760
        %v1164 = vsub.f32 %v611, %v1163
        %v1165 = vand.u32 %v1164, 4294901760
        %v1166 = vsub.f32 %v1164, %v1165
        %v1167 = vand.u32 %v1166, 4294901760
        %1168 = vmatprep.subr.mxu0 %v1167
        %v1169 = vand.u32 %v610, 4294901760
        %v1170 = vsub.f32 %v610, %v1169
        %v1171 = vand.u32 %v1170, 4294901760
        %v1172 = vsub.f32 %v1170, %v1171
        %v1173 = vand.u32 %v1172, 4294901760
        %1174 = vmatpush2.msra.mxu0 %v1173
        %v1175 = vand.u32 %v608, 4294901760
        %v1176 = vsub.f32 %v608, %v1175
        %v1177 = vand.u32 %v1176, 4294901760
        %v1178 = vsub.f32 %v1176, %v1177
        %v1179 = vand.u32 %v1178, 4294901760
        %1180 = vmatprep.subr.mxu0 %v1179
        %v1181 = vand.u32 %v607, 4294901760
        %v1182 = vsub.f32 %v607, %v1181
        %v1183 = vand.u32 %v1182, 4294901760
        %v1184 = vsub.f32 %v1182, %v1183
        %v1185 = vand.u32 %v1184, 4294901760
        %1186 = vmatpush2.msra.mxu0 %v1185
        %v1187 = vand.u32 %v605, 4294901760
        %v1188 = vsub.f32 %v605, %v1187
        %v1189 = vand.u32 %v1188, 4294901760
        %v1190 = vsub.f32 %v1188, %v1189
        %v1191 = vand.u32 %v1190, 4294901760
        %1192 = vmatprep.subr.mxu0 %v1191
        %v1193 = vand.u32 %v604, 4294901760
        %v1194 = vsub.f32 %v604, %v1193
        %v1195 = vand.u32 %v1194, 4294901760
        %v1196 = vsub.f32 %v1194, %v1195
        %v1197 = vand.u32 %v1196, 4294901760
        %1198 = vmatpush2.msra.mxu0 %v1197
        %v1199 = vand.u32 %v602, 4294901760
        %v1200 = vsub.f32 %v602, %v1199
        %v1201 = vand.u32 %v1200, 4294901760
        %v1202 = vsub.f32 %v1200, %v1201
        %v1203 = vand.u32 %v1202, 4294901760
        %1204 = vmatprep.subr.mxu0 %v1203
        %v1205 = vand.u32 %v601, 4294901760
        %v1206 = vsub.f32 %v601, %v1205
        %v1207 = vand.u32 %v1206, 4294901760
        %v1208 = vsub.f32 %v1206, %v1207
        %v1209 = vand.u32 %v1208, 4294901760
        %1210 = vmatpush2.msra.mxu0 %v1209
        %v1211 = vand.u32 %v599, 4294901760
        %v1212 = vsub.f32 %v599, %v1211
        %v1213 = vand.u32 %v1212, 4294901760
        %v1214 = vsub.f32 %v1212, %v1213
        %v1215 = vand.u32 %v1214, 4294901760
        %1216 = vmatprep.subr.mxu0 %v1215
        %v1217 = vand.u32 %v598, 4294901760
        %v1218 = vsub.f32 %v598, %v1217
        %v1219 = vand.u32 %v1218, 4294901760
        %v1220 = vsub.f32 %v1218, %v1219
        %v1221 = vand.u32 %v1220, 4294901760
        %1222 = vmatpush2.msra.mxu0 %v1221
        %v1223 = vand.u32 %v199, 4294901760
        %1224 = vmatprep.mubr.f32.mxu0 %v1223
        %v1225 = vand.u32 %v198, 4294901760
        %1226 = vmatmul.mubr.f32.gmra.mxu0 %v1225
        %v1227 = vpop.f32.mrf.mxu0
        %v1228 = vadd.f32 %v835, %v1227
        %v1229 = vpop.f32.mrf.mxu0
        %v1230 = vadd.f32 %v837, %v1229
        %1231 = vdwg.mxu0
        %v1232 = vand.u32 %v596, 4294901760
        %v1233 = vsub.f32 %v596, %v1232
        %1234 = vmatprep.subr.mxu0 %v1233
        %v1235 = vand.u32 %v595, 4294901760
        %v1236 = vsub.f32 %v595, %v1235
        %1237 = vmatpush1.msra.mxu0 %v1236
        %v1238 = vand.u32 %v593, 4294901760
        %v1239 = vsub.f32 %v593, %v1238
        %1240 = vmatprep.subr.mxu0 %v1239
        %v1241 = vand.u32 %v592, 4294901760
        %v1242 = vsub.f32 %v592, %v1241
        %1243 = vmatpush1.msra.mxu0 %v1242
        %v1244 = vand.u32 %v590, 4294901760
        %v1245 = vsub.f32 %v590, %v1244
        %1246 = vmatprep.subr.mxu0 %v1245
        %v1247 = vand.u32 %v589, 4294901760
        %v1248 = vsub.f32 %v589, %v1247
        %1249 = vmatpush1.msra.mxu0 %v1248
        %v1250 = vand.u32 %v587, 4294901760
        %v1251 = vsub.f32 %v587, %v1250
        %1252 = vmatprep.subr.mxu0 %v1251
        %v1253 = vand.u32 %v586, 4294901760
        %v1254 = vsub.f32 %v586, %v1253
        %1255 = vmatpush1.msra.mxu0 %v1254
        %v1256 = vand.u32 %v584, 4294901760
        %v1257 = vsub.f32 %v584, %v1256
        %1258 = vmatprep.subr.mxu0 %v1257
        %v1259 = vand.u32 %v583, 4294901760
        %v1260 = vsub.f32 %v583, %v1259
        %1261 = vmatpush1.msra.mxu0 %v1260
        %v1262 = vand.u32 %v581, 4294901760
        %v1263 = vsub.f32 %v581, %v1262
        %1264 = vmatprep.subr.mxu0 %v1263
        %v1265 = vand.u32 %v580, 4294901760
        %v1266 = vsub.f32 %v580, %v1265
        %1267 = vmatpush1.msra.mxu0 %v1266
        %v1268 = vand.u32 %v578, 4294901760
        %v1269 = vsub.f32 %v578, %v1268
        %1270 = vmatprep.subr.mxu0 %v1269
        %v1271 = vand.u32 %v577, 4294901760
        %v1272 = vsub.f32 %v577, %v1271
        %1273 = vmatpush1.msra.mxu0 %v1272
        %v1274 = vand.u32 %v575, 4294901760
        %v1275 = vsub.f32 %v575, %v1274
        %1276 = vmatprep.subr.mxu0 %v1275
        %v1277 = vand.u32 %v574, 4294901760
        %v1278 = vsub.f32 %v574, %v1277
        %1279 = vmatpush1.msra.mxu0 %v1278
        %v1280 = vand.u32 %v572, 4294901760
        %v1281 = vsub.f32 %v572, %v1280
        %1282 = vmatprep.subr.mxu0 %v1281
        %v1283 = vand.u32 %v571, 4294901760
        %v1284 = vsub.f32 %v571, %v1283
        %1285 = vmatpush1.msra.mxu0 %v1284
        %v1286 = vand.u32 %v569, 4294901760
        %v1287 = vsub.f32 %v569, %v1286
        %1288 = vmatprep.subr.mxu0 %v1287
        %v1289 = vand.u32 %v568, 4294901760
        %v1290 = vsub.f32 %v568, %v1289
        %1291 = vmatpush1.msra.mxu0 %v1290
        %v1292 = vand.u32 %v566, 4294901760
        %v1293 = vsub.f32 %v566, %v1292
        %1294 = vmatprep.subr.mxu0 %v1293
        %v1295 = vand.u32 %v565, 4294901760
        %v1296 = vsub.f32 %v565, %v1295
        %1297 = vmatpush1.msra.mxu0 %v1296
        %v1298 = vand.u32 %v563, 4294901760
        %v1299 = vsub.f32 %v563, %v1298
        %1300 = vmatprep.subr.mxu0 %v1299
        %v1301 = vand.u32 %v562, 4294901760
        %v1302 = vsub.f32 %v562, %v1301
        %1303 = vmatpush1.msra.mxu0 %v1302
        %v1304 = vand.u32 %v560, 4294901760
        %v1305 = vsub.f32 %v560, %v1304
        %1306 = vmatprep.subr.mxu0 %v1305
        %v1307 = vand.u32 %v559, 4294901760
        %v1308 = vsub.f32 %v559, %v1307
        %1309 = vmatpush1.msra.mxu0 %v1308
        %v1310 = vand.u32 %v557, 4294901760
        %v1311 = vsub.f32 %v557, %v1310
        %1312 = vmatprep.subr.mxu0 %v1311
        %v1313 = vand.u32 %v556, 4294901760
        %v1314 = vsub.f32 %v556, %v1313
        %1315 = vmatpush1.msra.mxu0 %v1314
        %v1316 = vand.u32 %v554, 4294901760
        %v1317 = vsub.f32 %v554, %v1316
        %1318 = vmatprep.subr.mxu0 %v1317
        %v1319 = vand.u32 %v553, 4294901760
        %v1320 = vsub.f32 %v553, %v1319
        %1321 = vmatpush1.msra.mxu0 %v1320
        %v1322 = vand.u32 %v551, 4294901760
        %v1323 = vsub.f32 %v551, %v1322
        %1324 = vmatprep.subr.mxu0 %v1323
        %v1325 = vand.u32 %v550, 4294901760
        %v1326 = vsub.f32 %v550, %v1325
        %1327 = vmatpush1.msra.mxu0 %v1326
        %v1328 = vand.u32 %v644, 4294901760
        %v1329 = vsub.f32 %v644, %v1328
        %1330 = vmatprep.subr.mxu0 %v1329
        %v1331 = vand.u32 %v643, 4294901760
        %v1332 = vsub.f32 %v643, %v1331
        %1333 = vmatpush2.msra.mxu0 %v1332
        %v1334 = vand.u32 %v641, 4294901760
        %v1335 = vsub.f32 %v641, %v1334
        %1336 = vmatprep.subr.mxu0 %v1335
        %v1337 = vand.u32 %v640, 4294901760
        %v1338 = vsub.f32 %v640, %v1337
        %1339 = vmatpush2.msra.mxu0 %v1338
        %v1340 = vand.u32 %v638, 4294901760
        %v1341 = vsub.f32 %v638, %v1340
        %1342 = vmatprep.subr.mxu0 %v1341
        %v1343 = vand.u32 %v637, 4294901760
        %v1344 = vsub.f32 %v637, %v1343
        %1345 = vmatpush2.msra.mxu0 %v1344
        %v1346 = vand.u32 %v635, 4294901760
        %v1347 = vsub.f32 %v635, %v1346
        %1348 = vmatprep.subr.mxu0 %v1347
        %v1349 = vand.u32 %v634, 4294901760
        %v1350 = vsub.f32 %v634, %v1349
        %1351 = vmatpush2.msra.mxu0 %v1350
        %v1352 = vand.u32 %v632, 4294901760
        %v1353 = vsub.f32 %v632, %v1352
        %1354 = vmatprep.subr.mxu0 %v1353
        %v1355 = vand.u32 %v631, 4294901760
        %v1356 = vsub.f32 %v631, %v1355
        %1357 = vmatpush2.msra.mxu0 %v1356
        %v1358 = vand.u32 %v629, 4294901760
        %v1359 = vsub.f32 %v629, %v1358
        %1360 = vmatprep.subr.mxu0 %v1359
        %v1361 = vand.u32 %v628, 4294901760
        %v1362 = vsub.f32 %v628, %v1361
        %1363 = vmatpush2.msra.mxu0 %v1362
        %v1364 = vand.u32 %v626, 4294901760
        %v1365 = vsub.f32 %v626, %v1364
        %1366 = vmatprep.subr.mxu0 %v1365
        %v1367 = vand.u32 %v625, 4294901760
        %v1368 = vsub.f32 %v625, %v1367
        %1369 = vmatpush2.msra.mxu0 %v1368
        %v1370 = vand.u32 %v623, 4294901760
        %v1371 = vsub.f32 %v623, %v1370
        %1372 = vmatprep.subr.mxu0 %v1371
        %v1373 = vand.u32 %v622, 4294901760
        %v1374 = vsub.f32 %v622, %v1373
        %1375 = vmatpush2.msra.mxu0 %v1374
        %v1376 = vand.u32 %v620, 4294901760
        %v1377 = vsub.f32 %v620, %v1376
        %1378 = vmatprep.subr.mxu0 %v1377
        %v1379 = vand.u32 %v619, 4294901760
        %v1380 = vsub.f32 %v619, %v1379
        %1381 = vmatpush2.msra.mxu0 %v1380
        %v1382 = vand.u32 %v617, 4294901760
        %v1383 = vsub.f32 %v617, %v1382
        %1384 = vmatprep.subr.mxu0 %v1383
        %v1385 = vand.u32 %v616, 4294901760
        %v1386 = vsub.f32 %v616, %v1385
        %1387 = vmatpush2.msra.mxu0 %v1386
        %v1388 = vand.u32 %v614, 4294901760
        %v1389 = vsub.f32 %v614, %v1388
        %1390 = vmatprep.subr.mxu0 %v1389
        %v1391 = vand.u32 %v613, 4294901760
        %v1392 = vsub.f32 %v613, %v1391
        %1393 = vmatpush2.msra.mxu0 %v1392
        %v1394 = vand.u32 %v611, 4294901760
        %v1395 = vsub.f32 %v611, %v1394
        %1396 = vmatprep.subr.mxu0 %v1395
        %v1397 = vand.u32 %v610, 4294901760
        %v1398 = vsub.f32 %v610, %v1397
        %1399 = vmatpush2.msra.mxu0 %v1398
        %v1400 = vand.u32 %v608, 4294901760
        %v1401 = vsub.f32 %v608, %v1400
        %1402 = vmatprep.subr.mxu0 %v1401
        %v1403 = vand.u32 %v607, 4294901760
        %v1404 = vsub.f32 %v607, %v1403
        %1405 = vmatpush2.msra.mxu0 %v1404
        %v1406 = vand.u32 %v605, 4294901760
        %v1407 = vsub.f32 %v605, %v1406
        %1408 = vmatprep.subr.mxu0 %v1407
        %v1409 = vand.u32 %v604, 4294901760
        %v1410 = vsub.f32 %v604, %v1409
        %1411 = vmatpush2.msra.mxu0 %v1410
        %v1412 = vand.u32 %v602, 4294901760
        %v1413 = vsub.f32 %v602, %v1412
        %1414 = vmatprep.subr.mxu0 %v1413
        %v1415 = vand.u32 %v601, 4294901760
        %v1416 = vsub.f32 %v601, %v1415
        %1417 = vmatpush2.msra.mxu0 %v1416
        %v1418 = vand.u32 %v599, 4294901760
        %v1419 = vsub.f32 %v599, %v1418
        %1420 = vmatprep.subr.mxu0 %v1419
        %v1421 = vand.u32 %v598, 4294901760
        %v1422 = vsub.f32 %v598, %v1421
        %1423 = vmatpush2.msra.mxu0 %v1422
        %v1424 = vand.u32 %v199, 4294901760
        %v1425 = vsub.f32 %v199, %v1424
        %1426 = vmatprep.mubr.f32.mxu0 %v1425
        %v1427 = vand.u32 %v198, 4294901760
        %v1428 = vsub.f32 %v198, %v1427
        %1429 = vmatmul.mubr.f32.gmra.mxu0 %v1428
        %v1430 = vpop.f32.mrf.mxu0
        %v1431 = vadd.f32 %v1228, %v1430
        %v1432 = vpop.f32.mrf.mxu0
        %v1433 = vadd.f32 %v1230, %v1432
        %1434 = vdwg.mxu0
        %v1435 = vand.u32 %v596, 4294901760
        %1436 = vmatprep.subr.mxu0 %v1435
        %v1437 = vand.u32 %v595, 4294901760
        %1438 = vmatpush1.msra.mxu0 %v1437
        %v1439 = vand.u32 %v593, 4294901760
        %1440 = vmatprep.subr.mxu0 %v1439
        %v1441 = vand.u32 %v592, 4294901760
        %1442 = vmatpush1.msra.mxu0 %v1441
        %v1443 = vand.u32 %v590, 4294901760
        %1444 = vmatprep.subr.mxu0 %v1443
        %v1445 = vand.u32 %v589, 4294901760
        %1446 = vmatpush1.msra.mxu0 %v1445
        %v1447 = vand.u32 %v587, 4294901760
        %1448 = vmatprep.subr.mxu0 %v1447
        %v1449 = vand.u32 %v586, 4294901760
        %1450 = vmatpush1.msra.mxu0 %v1449
        %v1451 = vand.u32 %v584, 4294901760
        %1452 = vmatprep.subr.mxu0 %v1451
        %v1453 = vand.u32 %v583, 4294901760
        %1454 = vmatpush1.msra.mxu0 %v1453
        %v1455 = vand.u32 %v581, 4294901760
        %1456 = vmatprep.subr.mxu0 %v1455
        %v1457 = vand.u32 %v580, 4294901760
        %1458 = vmatpush1.msra.mxu0 %v1457
        %v1459 = vand.u32 %v578, 4294901760
        %1460 = vmatprep.subr.mxu0 %v1459
        %v1461 = vand.u32 %v577, 4294901760
        %1462 = vmatpush1.msra.mxu0 %v1461
        %v1463 = vand.u32 %v575, 4294901760
        %1464 = vmatprep.subr.mxu0 %v1463
        %v1465 = vand.u32 %v574, 4294901760
        %1466 = vmatpush1.msra.mxu0 %v1465
        %v1467 = vand.u32 %v572, 4294901760
        %1468 = vmatprep.subr.mxu0 %v1467
        %v1469 = vand.u32 %v571, 4294901760
        %1470 = vmatpush1.msra.mxu0 %v1469
        %v1471 = vand.u32 %v569, 4294901760
        %1472 = vmatprep.subr.mxu0 %v1471
        %v1473 = vand.u32 %v568, 4294901760
        %1474 = vmatpush1.msra.mxu0 %v1473
        %v1475 = vand.u32 %v566, 4294901760
        %1476 = vmatprep.subr.mxu0 %v1475
        %v1477 = vand.u32 %v565, 4294901760
        %1478 = vmatpush1.msra.mxu0 %v1477
        %v1479 = vand.u32 %v563, 4294901760
        %1480 = vmatprep.subr.mxu0 %v1479
        %v1481 = vand.u32 %v562, 4294901760
        %1482 = vmatpush1.msra.mxu0 %v1481
        %v1483 = vand.u32 %v560, 4294901760
        %1484 = vmatprep.subr.mxu0 %v1483
        %v1485 = vand.u32 %v559, 4294901760
        %1486 = vmatpush1.msra.mxu0 %v1485
        %v1487 = vand.u32 %v557, 4294901760
        %1488 = vmatprep.subr.mxu0 %v1487
        %v1489 = vand.u32 %v556, 4294901760
        %1490 = vmatpush1.msra.mxu0 %v1489
        %v1491 = vand.u32 %v554, 4294901760
        %1492 = vmatprep.subr.mxu0 %v1491
        %v1493 = vand.u32 %v553, 4294901760
        %1494 = vmatpush1.msra.mxu0 %v1493
        %v1495 = vand.u32 %v551, 4294901760
        %1496 = vmatprep.subr.mxu0 %v1495
        %v1497 = vand.u32 %v550, 4294901760
        %1498 = vmatpush1.msra.mxu0 %v1497
        %v1499 = vand.u32 %v644, 4294901760
        %1500 = vmatprep.subr.mxu0 %v1499
        %v1501 = vand.u32 %v643, 4294901760
        %1502 = vmatpush2.msra.mxu0 %v1501
        %v1503 = vand.u32 %v641, 4294901760
        %1504 = vmatprep.subr.mxu0 %v1503
        %v1505 = vand.u32 %v640, 4294901760
        %1506 = vmatpush2.msra.mxu0 %v1505
        %v1507 = vand.u32 %v638, 4294901760
        %1508 = vmatprep.subr.mxu0 %v1507
        %v1509 = vand.u32 %v637, 4294901760
        %1510 = vmatpush2.msra.mxu0 %v1509
        %v1511 = vand.u32 %v635, 4294901760
        %1512 = vmatprep.subr.mxu0 %v1511
        %v1513 = vand.u32 %v634, 4294901760
        %1514 = vmatpush2.msra.mxu0 %v1513
        %v1515 = vand.u32 %v632, 4294901760
        %1516 = vmatprep.subr.mxu0 %v1515
        %v1517 = vand.u32 %v631, 4294901760
        %1518 = vmatpush2.msra.mxu0 %v1517
        %v1519 = vand.u32 %v629, 4294901760
        %1520 = vmatprep.subr.mxu0 %v1519
        %v1521 = vand.u32 %v628, 4294901760
        %1522 = vmatpush2.msra.mxu0 %v1521
        %v1523 = vand.u32 %v626, 4294901760
        %1524 = vmatprep.subr.mxu0 %v1523
        %v1525 = vand.u32 %v625, 4294901760
        %1526 = vmatpush2.msra.mxu0 %v1525
        %v1527 = vand.u32 %v623, 4294901760
        %1528 = vmatprep.subr.mxu0 %v1527
        %v1529 = vand.u32 %v622, 4294901760
        %1530 = vmatpush2.msra.mxu0 %v1529
        %v1531 = vand.u32 %v620, 4294901760
        %1532 = vmatprep.subr.mxu0 %v1531
        %v1533 = vand.u32 %v619, 4294901760
        %1534 = vmatpush2.msra.mxu0 %v1533
        %v1535 = vand.u32 %v617, 4294901760
        %1536 = vmatprep.subr.mxu0 %v1535
        %v1537 = vand.u32 %v616, 4294901760
        %1538 = vmatpush2.msra.mxu0 %v1537
        %v1539 = vand.u32 %v614, 4294901760
        %1540 = vmatprep.subr.mxu0 %v1539
        %v1541 = vand.u32 %v613, 4294901760
        %1542 = vmatpush2.msra.mxu0 %v1541
        %v1543 = vand.u32 %v611, 4294901760
        %1544 = vmatprep.subr.mxu0 %v1543
        %v1545 = vand.u32 %v610, 4294901760
        %1546 = vmatpush2.msra.mxu0 %v1545
        %v1547 = vand.u32 %v608, 4294901760
        %1548 = vmatprep.subr.mxu0 %v1547
        %v1549 = vand.u32 %v607, 4294901760
        %1550 = vmatpush2.msra.mxu0 %v1549
        %v1551 = vand.u32 %v605, 4294901760
        %1552 = vmatprep.subr.mxu0 %v1551
        %v1553 = vand.u32 %v604, 4294901760
        %1554 = vmatpush2.msra.mxu0 %v1553
        %v1555 = vand.u32 %v602, 4294901760
        %1556 = vmatprep.subr.mxu0 %v1555
        %v1557 = vand.u32 %v601, 4294901760
        %1558 = vmatpush2.msra.mxu0 %v1557
        %v1559 = vand.u32 %v599, 4294901760
        %1560 = vmatprep.subr.mxu0 %v1559
        %v1561 = vand.u32 %v598, 4294901760
        %1562 = vmatpush2.msra.mxu0 %v1561
        %v1563 = vand.u32 %v199, 4294901760
        %v1564 = vsub.f32 %v199, %v1563
        %v1565 = vand.u32 %v1564, 4294901760
        %1566 = vmatprep.mubr.f32.mxu0 %v1565
        %v1567 = vand.u32 %v198, 4294901760
        %v1568 = vsub.f32 %v198, %v1567
        %v1569 = vand.u32 %v1568, 4294901760
        %1570 = vmatmul.mubr.f32.gmra.mxu0 %v1569
        %v1571 = vpop.f32.mrf.mxu0
        %v1572 = vadd.f32 %v1431, %v1571
        %v1573 = vpop.f32.mrf.mxu0
        %v1574 = vadd.f32 %v1433, %v1573
        %1575 = vdwg.mxu0
        %v1576 = vand.u32 %v596, 4294901760
        %v1577 = vsub.f32 %v596, %v1576
        %v1578 = vand.u32 %v1577, 4294901760
        %1579 = vmatprep.subr.mxu0 %v1578
        %v1580 = vand.u32 %v595, 4294901760
        %v1581 = vsub.f32 %v595, %v1580
        %v1582 = vand.u32 %v1581, 4294901760
        %1583 = vmatpush1.msra.mxu0 %v1582
        %v1584 = vand.u32 %v593, 4294901760
        %v1585 = vsub.f32 %v593, %v1584
        %v1586 = vand.u32 %v1585, 4294901760
        %1587 = vmatprep.subr.mxu0 %v1586
        %v1588 = vand.u32 %v592, 4294901760
        %v1589 = vsub.f32 %v592, %v1588
        %v1590 = vand.u32 %v1589, 4294901760
        %1591 = vmatpush1.msra.mxu0 %v1590
        %v1592 = vand.u32 %v590, 4294901760
        %v1593 = vsub.f32 %v590, %v1592
        %v1594 = vand.u32 %v1593, 4294901760
        %1595 = vmatprep.subr.mxu0 %v1594
        %v1596 = vand.u32 %v589, 4294901760
        %v1597 = vsub.f32 %v589, %v1596
        %v1598 = vand.u32 %v1597, 4294901760
        %1599 = vmatpush1.msra.mxu0 %v1598
        %v1600 = vand.u32 %v587, 4294901760
        %v1601 = vsub.f32 %v587, %v1600
        %v1602 = vand.u32 %v1601, 4294901760
        %1603 = vmatprep.subr.mxu0 %v1602
        %v1604 = vand.u32 %v586, 4294901760
        %v1605 = vsub.f32 %v586, %v1604
        %v1606 = vand.u32 %v1605, 4294901760
        %1607 = vmatpush1.msra.mxu0 %v1606
        %v1608 = vand.u32 %v584, 4294901760
        %v1609 = vsub.f32 %v584, %v1608
        %v1610 = vand.u32 %v1609, 4294901760
        %1611 = vmatprep.subr.mxu0 %v1610
        %v1612 = vand.u32 %v583, 4294901760
        %v1613 = vsub.f32 %v583, %v1612
        %v1614 = vand.u32 %v1613, 4294901760
        %1615 = vmatpush1.msra.mxu0 %v1614
        %v1616 = vand.u32 %v581, 4294901760
        %v1617 = vsub.f32 %v581, %v1616
        %v1618 = vand.u32 %v1617, 4294901760
        %1619 = vmatprep.subr.mxu0 %v1618
        %v1620 = vand.u32 %v580, 4294901760
        %v1621 = vsub.f32 %v580, %v1620
        %v1622 = vand.u32 %v1621, 4294901760
        %1623 = vmatpush1.msra.mxu0 %v1622
        %v1624 = vand.u32 %v578, 4294901760
        %v1625 = vsub.f32 %v578, %v1624
        %v1626 = vand.u32 %v1625, 4294901760
        %1627 = vmatprep.subr.mxu0 %v1626
        %v1628 = vand.u32 %v577, 4294901760
        %v1629 = vsub.f32 %v577, %v1628
        %v1630 = vand.u32 %v1629, 4294901760
        %1631 = vmatpush1.msra.mxu0 %v1630
        %v1632 = vand.u32 %v575, 4294901760
        %v1633 = vsub.f32 %v575, %v1632
        %v1634 = vand.u32 %v1633, 4294901760
        %1635 = vmatprep.subr.mxu0 %v1634
        %v1636 = vand.u32 %v574, 4294901760
        %v1637 = vsub.f32 %v574, %v1636
        %v1638 = vand.u32 %v1637, 4294901760
        %1639 = vmatpush1.msra.mxu0 %v1638
        %v1640 = vand.u32 %v572, 4294901760
        %v1641 = vsub.f32 %v572, %v1640
        %v1642 = vand.u32 %v1641, 4294901760
        %1643 = vmatprep.subr.mxu0 %v1642
        %v1644 = vand.u32 %v571, 4294901760
        %v1645 = vsub.f32 %v571, %v1644
        %v1646 = vand.u32 %v1645, 4294901760
        %1647 = vmatpush1.msra.mxu0 %v1646
        %v1648 = vand.u32 %v569, 4294901760
        %v1649 = vsub.f32 %v569, %v1648
        %v1650 = vand.u32 %v1649, 4294901760
        %1651 = vmatprep.subr.mxu0 %v1650
        %v1652 = vand.u32 %v568, 4294901760
        %v1653 = vsub.f32 %v568, %v1652
        %v1654 = vand.u32 %v1653, 4294901760
        %1655 = vmatpush1.msra.mxu0 %v1654
        %v1656 = vand.u32 %v566, 4294901760
        %v1657 = vsub.f32 %v566, %v1656
        %v1658 = vand.u32 %v1657, 4294901760
        %1659 = vmatprep.subr.mxu0 %v1658
        %v1660 = vand.u32 %v565, 4294901760
        %v1661 = vsub.f32 %v565, %v1660
        %v1662 = vand.u32 %v1661, 4294901760
        %1663 = vmatpush1.msra.mxu0 %v1662
        %v1664 = vand.u32 %v563, 4294901760
        %v1665 = vsub.f32 %v563, %v1664
        %v1666 = vand.u32 %v1665, 4294901760
        %1667 = vmatprep.subr.mxu0 %v1666
        %v1668 = vand.u32 %v562, 4294901760
        %v1669 = vsub.f32 %v562, %v1668
        %v1670 = vand.u32 %v1669, 4294901760
        %1671 = vmatpush1.msra.mxu0 %v1670
        %v1672 = vand.u32 %v560, 4294901760
        %v1673 = vsub.f32 %v560, %v1672
        %v1674 = vand.u32 %v1673, 4294901760
        %1675 = vmatprep.subr.mxu0 %v1674
        %v1676 = vand.u32 %v559, 4294901760
        %v1677 = vsub.f32 %v559, %v1676
        %v1678 = vand.u32 %v1677, 4294901760
        %1679 = vmatpush1.msra.mxu0 %v1678
        %v1680 = vand.u32 %v557, 4294901760
        %v1681 = vsub.f32 %v557, %v1680
        %v1682 = vand.u32 %v1681, 4294901760
        %1683 = vmatprep.subr.mxu0 %v1682
        %v1684 = vand.u32 %v556, 4294901760
        %v1685 = vsub.f32 %v556, %v1684
        %v1686 = vand.u32 %v1685, 4294901760
        %1687 = vmatpush1.msra.mxu0 %v1686
        %v1688 = vand.u32 %v554, 4294901760
        %v1689 = vsub.f32 %v554, %v1688
        %v1690 = vand.u32 %v1689, 4294901760
        %1691 = vmatprep.subr.mxu0 %v1690
        %v1692 = vand.u32 %v553, 4294901760
        %v1693 = vsub.f32 %v553, %v1692
        %v1694 = vand.u32 %v1693, 4294901760
        %1695 = vmatpush1.msra.mxu0 %v1694
        %v1696 = vand.u32 %v551, 4294901760
        %v1697 = vsub.f32 %v551, %v1696
        %v1698 = vand.u32 %v1697, 4294901760
        %1699 = vmatprep.subr.mxu0 %v1698
        %v1700 = vand.u32 %v550, 4294901760
        %v1701 = vsub.f32 %v550, %v1700
        %v1702 = vand.u32 %v1701, 4294901760
        %1703 = vmatpush1.msra.mxu0 %v1702
        %v1704 = vand.u32 %v644, 4294901760
        %v1705 = vsub.f32 %v644, %v1704
        %v1706 = vand.u32 %v1705, 4294901760
        %1707 = vmatprep.subr.mxu0 %v1706
        %v1708 = vand.u32 %v643, 4294901760
        %v1709 = vsub.f32 %v643, %v1708
        %v1710 = vand.u32 %v1709, 4294901760
        %1711 = vmatpush2.msra.mxu0 %v1710
        %v1712 = vand.u32 %v641, 4294901760
        %v1713 = vsub.f32 %v641, %v1712
        %v1714 = vand.u32 %v1713, 4294901760
        %1715 = vmatprep.subr.mxu0 %v1714
        %v1716 = vand.u32 %v640, 4294901760
        %v1717 = vsub.f32 %v640, %v1716
        %v1718 = vand.u32 %v1717, 4294901760
        %1719 = vmatpush2.msra.mxu0 %v1718
        %v1720 = vand.u32 %v638, 4294901760
        %v1721 = vsub.f32 %v638, %v1720
        %v1722 = vand.u32 %v1721, 4294901760
        %1723 = vmatprep.subr.mxu0 %v1722
        %v1724 = vand.u32 %v637, 4294901760
        %v1725 = vsub.f32 %v637, %v1724
        %v1726 = vand.u32 %v1725, 4294901760
        %1727 = vmatpush2.msra.mxu0 %v1726
        %v1728 = vand.u32 %v635, 4294901760
        %v1729 = vsub.f32 %v635, %v1728
        %v1730 = vand.u32 %v1729, 4294901760
        %1731 = vmatprep.subr.mxu0 %v1730
        %v1732 = vand.u32 %v634, 4294901760
        %v1733 = vsub.f32 %v634, %v1732
        %v1734 = vand.u32 %v1733, 4294901760
        %1735 = vmatpush2.msra.mxu0 %v1734
        %v1736 = vand.u32 %v632, 4294901760
        %v1737 = vsub.f32 %v632, %v1736
        %v1738 = vand.u32 %v1737, 4294901760
        %1739 = vmatprep.subr.mxu0 %v1738
        %v1740 = vand.u32 %v631, 4294901760
        %v1741 = vsub.f32 %v631, %v1740
        %v1742 = vand.u32 %v1741, 4294901760
        %1743 = vmatpush2.msra.mxu0 %v1742
        %v1744 = vand.u32 %v629, 4294901760
        %v1745 = vsub.f32 %v629, %v1744
        %v1746 = vand.u32 %v1745, 4294901760
        %1747 = vmatprep.subr.mxu0 %v1746
        %v1748 = vand.u32 %v628, 4294901760
        %v1749 = vsub.f32 %v628, %v1748
        %v1750 = vand.u32 %v1749, 4294901760
        %1751 = vmatpush2.msra.mxu0 %v1750
        %v1752 = vand.u32 %v626, 4294901760
        %v1753 = vsub.f32 %v626, %v1752
        %v1754 = vand.u32 %v1753, 4294901760
        %1755 = vmatprep.subr.mxu0 %v1754
        %v1756 = vand.u32 %v625, 4294901760
        %v1757 = vsub.f32 %v625, %v1756
        %v1758 = vand.u32 %v1757, 4294901760
        %1759 = vmatpush2.msra.mxu0 %v1758
        %v1760 = vand.u32 %v623, 4294901760
        %v1761 = vsub.f32 %v623, %v1760
        %v1762 = vand.u32 %v1761, 4294901760
        %1763 = vmatprep.subr.mxu0 %v1762
        %v1764 = vand.u32 %v622, 4294901760
        %v1765 = vsub.f32 %v622, %v1764
        %v1766 = vand.u32 %v1765, 4294901760
        %1767 = vmatpush2.msra.mxu0 %v1766
        %v1768 = vand.u32 %v620, 4294901760
        %v1769 = vsub.f32 %v620, %v1768
        %v1770 = vand.u32 %v1769, 4294901760
        %1771 = vmatprep.subr.mxu0 %v1770
        %v1772 = vand.u32 %v619, 4294901760
        %v1773 = vsub.f32 %v619, %v1772
        %v1774 = vand.u32 %v1773, 4294901760
        %1775 = vmatpush2.msra.mxu0 %v1774
        %v1776 = vand.u32 %v617, 4294901760
        %v1777 = vsub.f32 %v617, %v1776
        %v1778 = vand.u32 %v1777, 4294901760
        %1779 = vmatprep.subr.mxu0 %v1778
        %v1780 = vand.u32 %v616, 4294901760
        %v1781 = vsub.f32 %v616, %v1780
        %v1782 = vand.u32 %v1781, 4294901760
        %1783 = vmatpush2.msra.mxu0 %v1782
        %v1784 = vand.u32 %v614, 4294901760
        %v1785 = vsub.f32 %v614, %v1784
        %v1786 = vand.u32 %v1785, 4294901760
        %1787 = vmatprep.subr.mxu0 %v1786
        %v1788 = vand.u32 %v613, 4294901760
        %v1789 = vsub.f32 %v613, %v1788
        %v1790 = vand.u32 %v1789, 4294901760
        %1791 = vmatpush2.msra.mxu0 %v1790
        %v1792 = vand.u32 %v611, 4294901760
        %v1793 = vsub.f32 %v611, %v1792
        %v1794 = vand.u32 %v1793, 4294901760
        %1795 = vmatprep.subr.mxu0 %v1794
        %v1796 = vand.u32 %v610, 4294901760
        %v1797 = vsub.f32 %v610, %v1796
        %v1798 = vand.u32 %v1797, 4294901760
        %1799 = vmatpush2.msra.mxu0 %v1798
        %v1800 = vand.u32 %v608, 4294901760
        %v1801 = vsub.f32 %v608, %v1800
        %v1802 = vand.u32 %v1801, 4294901760
        %1803 = vmatprep.subr.mxu0 %v1802
        %v1804 = vand.u32 %v607, 4294901760
        %v1805 = vsub.f32 %v607, %v1804
        %v1806 = vand.u32 %v1805, 4294901760
        %1807 = vmatpush2.msra.mxu0 %v1806
        %v1808 = vand.u32 %v605, 4294901760
        %v1809 = vsub.f32 %v605, %v1808
        %v1810 = vand.u32 %v1809, 4294901760
        %1811 = vmatprep.subr.mxu0 %v1810
        %v1812 = vand.u32 %v604, 4294901760
        %v1813 = vsub.f32 %v604, %v1812
        %v1814 = vand.u32 %v1813, 4294901760
        %1815 = vmatpush2.msra.mxu0 %v1814
        %v1816 = vand.u32 %v602, 4294901760
        %v1817 = vsub.f32 %v602, %v1816
        %v1818 = vand.u32 %v1817, 4294901760
        %1819 = vmatprep.subr.mxu0 %v1818
        %v1820 = vand.u32 %v601, 4294901760
        %v1821 = vsub.f32 %v601, %v1820
        %v1822 = vand.u32 %v1821, 4294901760
        %1823 = vmatpush2.msra.mxu0 %v1822
        %v1824 = vand.u32 %v599, 4294901760
        %v1825 = vsub.f32 %v599, %v1824
        %v1826 = vand.u32 %v1825, 4294901760
        %1827 = vmatprep.subr.mxu0 %v1826
        %v1828 = vand.u32 %v598, 4294901760
        %v1829 = vsub.f32 %v598, %v1828
        %v1830 = vand.u32 %v1829, 4294901760
        %1831 = vmatpush2.msra.mxu0 %v1830
        %v1832 = vand.u32 %v199, 4294901760
        %1833 = vmatprep.mubr.f32.mxu0 %v1832
        %v1834 = vand.u32 %v198, 4294901760
        %1835 = vmatmul.mubr.f32.gmra.mxu0 %v1834
        %v1836 = vpop.f32.mrf.mxu0
        %v1837 = vadd.f32 %v1572, %v1836
        %v1838 = vpop.f32.mrf.mxu0
        %v1839 = vadd.f32 %v1574, %v1838
        %1840 = vdwg.mxu0
        %v1841 = vand.u32 %v596, 4294901760
        %1842 = vmatprep.subr.mxu0 %v1841
        %v1843 = vand.u32 %v595, 4294901760
        %1844 = vmatpush1.msra.mxu0 %v1843
        %v1845 = vand.u32 %v593, 4294901760
        %1846 = vmatprep.subr.mxu0 %v1845
        %v1847 = vand.u32 %v592, 4294901760
        %1848 = vmatpush1.msra.mxu0 %v1847
        %v1849 = vand.u32 %v590, 4294901760
        %1850 = vmatprep.subr.mxu0 %v1849
        %v1851 = vand.u32 %v589, 4294901760
        %1852 = vmatpush1.msra.mxu0 %v1851
        %v1853 = vand.u32 %v587, 4294901760
        %1854 = vmatprep.subr.mxu0 %v1853
        %v1855 = vand.u32 %v586, 4294901760
        %1856 = vmatpush1.msra.mxu0 %v1855
        %v1857 = vand.u32 %v584, 4294901760
        %1858 = vmatprep.subr.mxu0 %v1857
        %v1859 = vand.u32 %v583, 4294901760
        %1860 = vmatpush1.msra.mxu0 %v1859
        %v1861 = vand.u32 %v581, 4294901760
        %1862 = vmatprep.subr.mxu0 %v1861
        %v1863 = vand.u32 %v580, 4294901760
        %1864 = vmatpush1.msra.mxu0 %v1863
        %v1865 = vand.u32 %v578, 4294901760
        %1866 = vmatprep.subr.mxu0 %v1865
        %v1867 = vand.u32 %v577, 4294901760
        %1868 = vmatpush1.msra.mxu0 %v1867
        %v1869 = vand.u32 %v575, 4294901760
        %1870 = vmatprep.subr.mxu0 %v1869
        %v1871 = vand.u32 %v574, 4294901760
        %1872 = vmatpush1.msra.mxu0 %v1871
        %v1873 = vand.u32 %v572, 4294901760
        %1874 = vmatprep.subr.mxu0 %v1873
        %v1875 = vand.u32 %v571, 4294901760
        %1876 = vmatpush1.msra.mxu0 %v1875
        %v1877 = vand.u32 %v569, 4294901760
        %1878 = vmatprep.subr.mxu0 %v1877
        %v1879 = vand.u32 %v568, 4294901760
        %1880 = vmatpush1.msra.mxu0 %v1879
        %v1881 = vand.u32 %v566, 4294901760
        %1882 = vmatprep.subr.mxu0 %v1881
        %v1883 = vand.u32 %v565, 4294901760
        %1884 = vmatpush1.msra.mxu0 %v1883
        %v1885 = vand.u32 %v563, 4294901760
        %1886 = vmatprep.subr.mxu0 %v1885
        %v1887 = vand.u32 %v562, 4294901760
        %1888 = vmatpush1.msra.mxu0 %v1887
        %v1889 = vand.u32 %v560, 4294901760
        %1890 = vmatprep.subr.mxu0 %v1889
        %v1891 = vand.u32 %v559, 4294901760
        %1892 = vmatpush1.msra.mxu0 %v1891
        %v1893 = vand.u32 %v557, 4294901760
        %1894 = vmatprep.subr.mxu0 %v1893
        %v1895 = vand.u32 %v556, 4294901760
        %1896 = vmatpush1.msra.mxu0 %v1895
        %v1897 = vand.u32 %v554, 4294901760
        %1898 = vmatprep.subr.mxu0 %v1897
        %v1899 = vand.u32 %v553, 4294901760
        %1900 = vmatpush1.msra.mxu0 %v1899
        %v1901 = vand.u32 %v551, 4294901760
        %1902 = vmatprep.subr.mxu0 %v1901
        %v1903 = vand.u32 %v550, 4294901760
        %1904 = vmatpush1.msra.mxu0 %v1903
        %v1905 = vand.u32 %v644, 4294901760
        %1906 = vmatprep.subr.mxu0 %v1905
        %v1907 = vand.u32 %v643, 4294901760
        %1908 = vmatpush2.msra.mxu0 %v1907
        %v1909 = vand.u32 %v641, 4294901760
        %1910 = vmatprep.subr.mxu0 %v1909
        %v1911 = vand.u32 %v640, 4294901760
        %1912 = vmatpush2.msra.mxu0 %v1911
        %v1913 = vand.u32 %v638, 4294901760
        %1914 = vmatprep.subr.mxu0 %v1913
        %v1915 = vand.u32 %v637, 4294901760
        %1916 = vmatpush2.msra.mxu0 %v1915
        %v1917 = vand.u32 %v635, 4294901760
        %1918 = vmatprep.subr.mxu0 %v1917
        %v1919 = vand.u32 %v634, 4294901760
        %1920 = vmatpush2.msra.mxu0 %v1919
        %v1921 = vand.u32 %v632, 4294901760
        %1922 = vmatprep.subr.mxu0 %v1921
        %v1923 = vand.u32 %v631, 4294901760
        %1924 = vmatpush2.msra.mxu0 %v1923
        %v1925 = vand.u32 %v629, 4294901760
        %1926 = vmatprep.subr.mxu0 %v1925
        %v1927 = vand.u32 %v628, 4294901760
        %1928 = vmatpush2.msra.mxu0 %v1927
        %v1929 = vand.u32 %v626, 4294901760
        %1930 = vmatprep.subr.mxu0 %v1929
        %v1931 = vand.u32 %v625, 4294901760
        %1932 = vmatpush2.msra.mxu0 %v1931
        %v1933 = vand.u32 %v623, 4294901760
        %1934 = vmatprep.subr.mxu0 %v1933
        %v1935 = vand.u32 %v622, 4294901760
        %1936 = vmatpush2.msra.mxu0 %v1935
        %v1937 = vand.u32 %v620, 4294901760
        %1938 = vmatprep.subr.mxu0 %v1937
        %v1939 = vand.u32 %v619, 4294901760
        %1940 = vmatpush2.msra.mxu0 %v1939
        %v1941 = vand.u32 %v617, 4294901760
        %1942 = vmatprep.subr.mxu0 %v1941
        %v1943 = vand.u32 %v616, 4294901760
        %1944 = vmatpush2.msra.mxu0 %v1943
        %v1945 = vand.u32 %v614, 4294901760
        %1946 = vmatprep.subr.mxu0 %v1945
        %v1947 = vand.u32 %v613, 4294901760
        %1948 = vmatpush2.msra.mxu0 %v1947
        %v1949 = vand.u32 %v611, 4294901760
        %1950 = vmatprep.subr.mxu0 %v1949
        %v1951 = vand.u32 %v610, 4294901760
        %1952 = vmatpush2.msra.mxu0 %v1951
        %v1953 = vand.u32 %v608, 4294901760
        %1954 = vmatprep.subr.mxu0 %v1953
        %v1955 = vand.u32 %v607, 4294901760
        %1956 = vmatpush2.msra.mxu0 %v1955
        %v1957 = vand.u32 %v605, 4294901760
        %1958 = vmatprep.subr.mxu0 %v1957
        %v1959 = vand.u32 %v604, 4294901760
        %1960 = vmatpush2.msra.mxu0 %v1959
        %v1961 = vand.u32 %v602, 4294901760
        %1962 = vmatprep.subr.mxu0 %v1961
        %v1963 = vand.u32 %v601, 4294901760
        %1964 = vmatpush2.msra.mxu0 %v1963
        %v1965 = vand.u32 %v599, 4294901760
        %1966 = vmatprep.subr.mxu0 %v1965
        %v1967 = vand.u32 %v598, 4294901760
        %1968 = vmatpush2.msra.mxu0 %v1967
        %v1969 = vand.u32 %v199, 4294901760
        %1970 = vmatprep.mubr.f32.mxu0 %v1969
        %v1971 = vand.u32 %v198, 4294901760
        %1972 = vmatmul.mubr.f32.gmra.mxu0 %v1971
        %v1973 = vpop.f32.mrf.mxu0
        %v1974 = vadd.f32 %v1837, %v1973
        %v1975 = vpop.f32.mrf.mxu0
        %v1976 = vadd.f32 %v1839, %v1975
        %1977 = vdwg.mxu0
        %v1978 = vand.u32 %v692, 4294901760
        %1979 = vmatprep.subr.mxu0 %v1978
        %v1980 = vand.u32 %v691, 4294901760
        %1981 = vmatpush1.msra.mxu0 %v1980
        %v1982 = vand.u32 %v689, 4294901760
        %1983 = vmatprep.subr.mxu0 %v1982
        %v1984 = vand.u32 %v688, 4294901760
        %1985 = vmatpush1.msra.mxu0 %v1984
        %v1986 = vand.u32 %v686, 4294901760
        %1987 = vmatprep.subr.mxu0 %v1986
        %v1988 = vand.u32 %v685, 4294901760
        %1989 = vmatpush1.msra.mxu0 %v1988
        %v1990 = vand.u32 %v683, 4294901760
        %1991 = vmatprep.subr.mxu0 %v1990
        %v1992 = vand.u32 %v682, 4294901760
        %1993 = vmatpush1.msra.mxu0 %v1992
        %v1994 = vand.u32 %v680, 4294901760
        %1995 = vmatprep.subr.mxu0 %v1994
        %v1996 = vand.u32 %v679, 4294901760
        %1997 = vmatpush1.msra.mxu0 %v1996
        %v1998 = vand.u32 %v677, 4294901760
        %1999 = vmatprep.subr.mxu0 %v1998
        %v2000 = vand.u32 %v676, 4294901760
        %2001 = vmatpush1.msra.mxu0 %v2000
        %v2002 = vand.u32 %v674, 4294901760
        %2003 = vmatprep.subr.mxu0 %v2002
        %v2004 = vand.u32 %v673, 4294901760
        %2005 = vmatpush1.msra.mxu0 %v2004
        %v2006 = vand.u32 %v671, 4294901760
        %2007 = vmatprep.subr.mxu0 %v2006
        %v2008 = vand.u32 %v670, 4294901760
        %2009 = vmatpush1.msra.mxu0 %v2008
        %v2010 = vand.u32 %v668, 4294901760
        %2011 = vmatprep.subr.mxu0 %v2010
        %v2012 = vand.u32 %v667, 4294901760
        %2013 = vmatpush1.msra.mxu0 %v2012
        %v2014 = vand.u32 %v665, 4294901760
        %2015 = vmatprep.subr.mxu0 %v2014
        %v2016 = vand.u32 %v664, 4294901760
        %2017 = vmatpush1.msra.mxu0 %v2016
        %v2018 = vand.u32 %v662, 4294901760
        %2019 = vmatprep.subr.mxu0 %v2018
        %v2020 = vand.u32 %v661, 4294901760
        %2021 = vmatpush1.msra.mxu0 %v2020
        %v2022 = vand.u32 %v659, 4294901760
        %2023 = vmatprep.subr.mxu0 %v2022
        %v2024 = vand.u32 %v658, 4294901760
        %2025 = vmatpush1.msra.mxu0 %v2024
        %v2026 = vand.u32 %v656, 4294901760
        %2027 = vmatprep.subr.mxu0 %v2026
        %v2028 = vand.u32 %v655, 4294901760
        %2029 = vmatpush1.msra.mxu0 %v2028
        %v2030 = vand.u32 %v653, 4294901760
        %2031 = vmatprep.subr.mxu0 %v2030
        %v2032 = vand.u32 %v652, 4294901760
        %2033 = vmatpush1.msra.mxu0 %v2032
        %v2034 = vand.u32 %v650, 4294901760
        %2035 = vmatprep.subr.mxu0 %v2034
        %v2036 = vand.u32 %v649, 4294901760
        %2037 = vmatpush1.msra.mxu0 %v2036
        %v2038 = vand.u32 %v647, 4294901760
        %2039 = vmatprep.subr.mxu0 %v2038
        %v2040 = vand.u32 %v646, 4294901760
        %2041 = vmatpush1.msra.mxu0 %v2040
        %2042 = vmatprep.subr.mxu0 0.0
        %2043 = vmatpush2.msra.mxu0 0.0
        %2044 = vmatprep.subr.mxu0 0.0
        %2045 = vmatpush2.msra.mxu0 0.0
        %2046 = vmatprep.subr.mxu0 0.0
        %2047 = vmatpush2.msra.mxu0 0.0
        %2048 = vmatprep.subr.mxu0 0.0
        %2049 = vmatpush2.msra.mxu0 0.0
        %2050 = vmatprep.subr.mxu0 0.0
        %2051 = vmatpush2.msra.mxu0 0.0
        %2052 = vmatprep.subr.mxu0 0.0
        %2053 = vmatpush2.msra.mxu0 0.0
        %2054 = vmatprep.subr.mxu0 0.0
        %2055 = vmatpush2.msra.mxu0 0.0
        %2056 = vmatprep.subr.mxu0 0.0
        %2057 = vmatpush2.msra.mxu0 0.0
        %2058 = vmatprep.subr.mxu0 0.0
        %2059 = vmatpush2.msra.mxu0 0.0
        %2060 = vmatprep.subr.mxu0 0.0
        %2061 = vmatpush2.msra.mxu0 0.0
        %2062 = vmatprep.subr.mxu0 0.0
        %2063 = vmatpush2.msra.mxu0 0.0
        %2064 = vmatprep.subr.mxu0 0.0
        %2065 = vmatpush2.msra.mxu0 0.0
        %2066 = vmatprep.subr.mxu0 0.0
        %2067 = vmatpush2.msra.mxu0 0.0
        %2068 = vmatprep.subr.mxu0 0.0
        %2069 = vmatpush2.msra.mxu0 0.0
        %2070 = vmatprep.subr.mxu0 0.0
        %2071 = vmatpush2.msra.mxu0 0.0
        %2072 = vmatprep.subr.mxu0 0.0
        %2073 = vmatpush2.msra.mxu0 0.0
        %2074 = vmatprep.mubr.f32.mxu0 0.0
        %v2075 = vand.u32 %v200, 4294901760
        %v2076 = vsub.f32 %v200, %v2075
        %v2077 = vand.u32 %v2076, 4294901760
        %v2078 = vsub.f32 %v2076, %v2077
        %v2079 = vand.u32 %v2078, 4294901760
        %2080 = vmatmul.mubr.f32.gmra.mxu0 %v2079
        %v2081 = vpop.f32.mrf.mxu0
        %v2082 = vadd.f32 %v1974, %v2081
        %v2083 = vpop.f32.mrf.mxu0
        %v2084 = vadd.f32 %v1976, %v2083
        %2085 = vdwg.mxu0
        %v2086 = vand.u32 %v692, 4294901760
        %v2087 = vsub.f32 %v692, %v2086
        %v2088 = vand.u32 %v2087, 4294901760
        %v2089 = vsub.f32 %v2087, %v2088
        %v2090 = vand.u32 %v2089, 4294901760
        %2091 = vmatprep.subr.mxu0 %v2090
        %v2092 = vand.u32 %v691, 4294901760
        %v2093 = vsub.f32 %v691, %v2092
        %v2094 = vand.u32 %v2093, 4294901760
        %v2095 = vsub.f32 %v2093, %v2094
        %v2096 = vand.u32 %v2095, 4294901760
        %2097 = vmatpush1.msra.mxu0 %v2096
        %v2098 = vand.u32 %v689, 4294901760
        %v2099 = vsub.f32 %v689, %v2098
        %v2100 = vand.u32 %v2099, 4294901760
        %v2101 = vsub.f32 %v2099, %v2100
        %v2102 = vand.u32 %v2101, 4294901760
        %2103 = vmatprep.subr.mxu0 %v2102
        %v2104 = vand.u32 %v688, 4294901760
        %v2105 = vsub.f32 %v688, %v2104
        %v2106 = vand.u32 %v2105, 4294901760
        %v2107 = vsub.f32 %v2105, %v2106
        %v2108 = vand.u32 %v2107, 4294901760
        %2109 = vmatpush1.msra.mxu0 %v2108
        %v2110 = vand.u32 %v686, 4294901760
        %v2111 = vsub.f32 %v686, %v2110
        %v2112 = vand.u32 %v2111, 4294901760
        %v2113 = vsub.f32 %v2111, %v2112
        %v2114 = vand.u32 %v2113, 4294901760
        %2115 = vmatprep.subr.mxu0 %v2114
        %v2116 = vand.u32 %v685, 4294901760
        %v2117 = vsub.f32 %v685, %v2116
        %v2118 = vand.u32 %v2117, 4294901760
        %v2119 = vsub.f32 %v2117, %v2118
        %v2120 = vand.u32 %v2119, 4294901760
        %2121 = vmatpush1.msra.mxu0 %v2120
        %v2122 = vand.u32 %v683, 4294901760
        %v2123 = vsub.f32 %v683, %v2122
        %v2124 = vand.u32 %v2123, 4294901760
        %v2125 = vsub.f32 %v2123, %v2124
        %v2126 = vand.u32 %v2125, 4294901760
        %2127 = vmatprep.subr.mxu0 %v2126
        %v2128 = vand.u32 %v682, 4294901760
        %v2129 = vsub.f32 %v682, %v2128
        %v2130 = vand.u32 %v2129, 4294901760
        %v2131 = vsub.f32 %v2129, %v2130
        %v2132 = vand.u32 %v2131, 4294901760
        %2133 = vmatpush1.msra.mxu0 %v2132
        %v2134 = vand.u32 %v680, 4294901760
        %v2135 = vsub.f32 %v680, %v2134
        %v2136 = vand.u32 %v2135, 4294901760
        %v2137 = vsub.f32 %v2135, %v2136
        %v2138 = vand.u32 %v2137, 4294901760
        %2139 = vmatprep.subr.mxu0 %v2138
        %v2140 = vand.u32 %v679, 4294901760
        %v2141 = vsub.f32 %v679, %v2140
        %v2142 = vand.u32 %v2141, 4294901760
        %v2143 = vsub.f32 %v2141, %v2142
        %v2144 = vand.u32 %v2143, 4294901760
        %2145 = vmatpush1.msra.mxu0 %v2144
        %v2146 = vand.u32 %v677, 4294901760
        %v2147 = vsub.f32 %v677, %v2146
        %v2148 = vand.u32 %v2147, 4294901760
        %v2149 = vsub.f32 %v2147, %v2148
        %v2150 = vand.u32 %v2149, 4294901760
        %2151 = vmatprep.subr.mxu0 %v2150
        %v2152 = vand.u32 %v676, 4294901760
        %v2153 = vsub.f32 %v676, %v2152
        %v2154 = vand.u32 %v2153, 4294901760
        %v2155 = vsub.f32 %v2153, %v2154
        %v2156 = vand.u32 %v2155, 4294901760
        %2157 = vmatpush1.msra.mxu0 %v2156
        %v2158 = vand.u32 %v674, 4294901760
        %v2159 = vsub.f32 %v674, %v2158
        %v2160 = vand.u32 %v2159, 4294901760
        %v2161 = vsub.f32 %v2159, %v2160
        %v2162 = vand.u32 %v2161, 4294901760
        %2163 = vmatprep.subr.mxu0 %v2162
        %v2164 = vand.u32 %v673, 4294901760
        %v2165 = vsub.f32 %v673, %v2164
        %v2166 = vand.u32 %v2165, 4294901760
        %v2167 = vsub.f32 %v2165, %v2166
        %v2168 = vand.u32 %v2167, 4294901760
        %2169 = vmatpush1.msra.mxu0 %v2168
        %v2170 = vand.u32 %v671, 4294901760
        %v2171 = vsub.f32 %v671, %v2170
        %v2172 = vand.u32 %v2171, 4294901760
        %v2173 = vsub.f32 %v2171, %v2172
        %v2174 = vand.u32 %v2173, 4294901760
        %2175 = vmatprep.subr.mxu0 %v2174
        %v2176 = vand.u32 %v670, 4294901760
        %v2177 = vsub.f32 %v670, %v2176
        %v2178 = vand.u32 %v2177, 4294901760
        %v2179 = vsub.f32 %v2177, %v2178
        %v2180 = vand.u32 %v2179, 4294901760
        %2181 = vmatpush1.msra.mxu0 %v2180
        %v2182 = vand.u32 %v668, 4294901760
        %v2183 = vsub.f32 %v668, %v2182
        %v2184 = vand.u32 %v2183, 4294901760
        %v2185 = vsub.f32 %v2183, %v2184
        %v2186 = vand.u32 %v2185, 4294901760
        %2187 = vmatprep.subr.mxu0 %v2186
        %v2188 = vand.u32 %v667, 4294901760
        %v2189 = vsub.f32 %v667, %v2188
        %v2190 = vand.u32 %v2189, 4294901760
        %v2191 = vsub.f32 %v2189, %v2190
        %v2192 = vand.u32 %v2191, 4294901760
        %2193 = vmatpush1.msra.mxu0 %v2192
        %v2194 = vand.u32 %v665, 4294901760
        %v2195 = vsub.f32 %v665, %v2194
        %v2196 = vand.u32 %v2195, 4294901760
        %v2197 = vsub.f32 %v2195, %v2196
        %v2198 = vand.u32 %v2197, 4294901760
        %2199 = vmatprep.subr.mxu0 %v2198
        %v2200 = vand.u32 %v664, 4294901760
        %v2201 = vsub.f32 %v664, %v2200
        %v2202 = vand.u32 %v2201, 4294901760
        %v2203 = vsub.f32 %v2201, %v2202
        %v2204 = vand.u32 %v2203, 4294901760
        %2205 = vmatpush1.msra.mxu0 %v2204
        %v2206 = vand.u32 %v662, 4294901760
        %v2207 = vsub.f32 %v662, %v2206
        %v2208 = vand.u32 %v2207, 4294901760
        %v2209 = vsub.f32 %v2207, %v2208
        %v2210 = vand.u32 %v2209, 4294901760
        %2211 = vmatprep.subr.mxu0 %v2210
        %v2212 = vand.u32 %v661, 4294901760
        %v2213 = vsub.f32 %v661, %v2212
        %v2214 = vand.u32 %v2213, 4294901760
        %v2215 = vsub.f32 %v2213, %v2214
        %v2216 = vand.u32 %v2215, 4294901760
        %2217 = vmatpush1.msra.mxu0 %v2216
        %v2218 = vand.u32 %v659, 4294901760
        %v2219 = vsub.f32 %v659, %v2218
        %v2220 = vand.u32 %v2219, 4294901760
        %v2221 = vsub.f32 %v2219, %v2220
        %v2222 = vand.u32 %v2221, 4294901760
        %2223 = vmatprep.subr.mxu0 %v2222
        %v2224 = vand.u32 %v658, 4294901760
        %v2225 = vsub.f32 %v658, %v2224
        %v2226 = vand.u32 %v2225, 4294901760
        %v2227 = vsub.f32 %v2225, %v2226
        %v2228 = vand.u32 %v2227, 4294901760
        %2229 = vmatpush1.msra.mxu0 %v2228
        %v2230 = vand.u32 %v656, 4294901760
        %v2231 = vsub.f32 %v656, %v2230
        %v2232 = vand.u32 %v2231, 4294901760
        %v2233 = vsub.f32 %v2231, %v2232
        %v2234 = vand.u32 %v2233, 4294901760
        %2235 = vmatprep.subr.mxu0 %v2234
        %v2236 = vand.u32 %v655, 4294901760
        %v2237 = vsub.f32 %v655, %v2236
        %v2238 = vand.u32 %v2237, 4294901760
        %v2239 = vsub.f32 %v2237, %v2238
        %v2240 = vand.u32 %v2239, 4294901760
        %2241 = vmatpush1.msra.mxu0 %v2240
        %v2242 = vand.u32 %v653, 4294901760
        %v2243 = vsub.f32 %v653, %v2242
        %v2244 = vand.u32 %v2243, 4294901760
        %v2245 = vsub.f32 %v2243, %v2244
        %v2246 = vand.u32 %v2245, 4294901760
        %2247 = vmatprep.subr.mxu0 %v2246
        %v2248 = vand.u32 %v652, 4294901760
        %v2249 = vsub.f32 %v652, %v2248
        %v2250 = vand.u32 %v2249, 4294901760
        %v2251 = vsub.f32 %v2249, %v2250
        %v2252 = vand.u32 %v2251, 4294901760
        %2253 = vmatpush1.msra.mxu0 %v2252
        %v2254 = vand.u32 %v650, 4294901760
        %v2255 = vsub.f32 %v650, %v2254
        %v2256 = vand.u32 %v2255, 4294901760
        %v2257 = vsub.f32 %v2255, %v2256
        %v2258 = vand.u32 %v2257, 4294901760
        %2259 = vmatprep.subr.mxu0 %v2258
        %v2260 = vand.u32 %v649, 4294901760
        %v2261 = vsub.f32 %v649, %v2260
        %v2262 = vand.u32 %v2261, 4294901760
        %v2263 = vsub.f32 %v2261, %v2262
        %v2264 = vand.u32 %v2263, 4294901760
        %2265 = vmatpush1.msra.mxu0 %v2264
        %v2266 = vand.u32 %v647, 4294901760
        %v2267 = vsub.f32 %v647, %v2266
        %v2268 = vand.u32 %v2267, 4294901760
        %v2269 = vsub.f32 %v2267, %v2268
        %v2270 = vand.u32 %v2269, 4294901760
        %2271 = vmatprep.subr.mxu0 %v2270
        %v2272 = vand.u32 %v646, 4294901760
        %v2273 = vsub.f32 %v646, %v2272
        %v2274 = vand.u32 %v2273, 4294901760
        %v2275 = vsub.f32 %v2273, %v2274
        %v2276 = vand.u32 %v2275, 4294901760
        %2277 = vmatpush1.msra.mxu0 %v2276
        %2278 = vmatprep.subr.mxu0 0.0
        %2279 = vmatpush2.msra.mxu0 0.0
        %2280 = vmatprep.subr.mxu0 0.0
        %2281 = vmatpush2.msra.mxu0 0.0
        %2282 = vmatprep.subr.mxu0 0.0
        %2283 = vmatpush2.msra.mxu0 0.0
        %2284 = vmatprep.subr.mxu0 0.0
        %2285 = vmatpush2.msra.mxu0 0.0
        %2286 = vmatprep.subr.mxu0 0.0
        %2287 = vmatpush2.msra.mxu0 0.0
        %2288 = vmatprep.subr.mxu0 0.0
        %2289 = vmatpush2.msra.mxu0 0.0
        %2290 = vmatprep.subr.mxu0 0.0
        %2291 = vmatpush2.msra.mxu0 0.0
        %2292 = vmatprep.subr.mxu0 0.0
        %2293 = vmatpush2.msra.mxu0 0.0
        %2294 = vmatprep.subr.mxu0 0.0
        %2295 = vmatpush2.msra.mxu0 0.0
        %2296 = vmatprep.subr.mxu0 0.0
        %2297 = vmatpush2.msra.mxu0 0.0
        %2298 = vmatprep.subr.mxu0 0.0
        %2299 = vmatpush2.msra.mxu0 0.0
        %2300 = vmatprep.subr.mxu0 0.0
        %2301 = vmatpush2.msra.mxu0 0.0
        %2302 = vmatprep.subr.mxu0 0.0
        %2303 = vmatpush2.msra.mxu0 0.0
        %2304 = vmatprep.subr.mxu0 0.0
        %2305 = vmatpush2.msra.mxu0 0.0
        %2306 = vmatprep.subr.mxu0 0.0
        %2307 = vmatpush2.msra.mxu0 0.0
        %2308 = vmatprep.subr.mxu0 0.0
        %2309 = vmatpush2.msra.mxu0 0.0
        %2310 = vmatprep.mubr.f32.mxu0 0.0
        %v2311 = vand.u32 %v200, 4294901760
        %2312 = vmatmul.mubr.f32.gmra.mxu0 %v2311
        %v2313 = vpop.f32.mrf.mxu0
        %v2314 = vadd.f32 %v2082, %v2313
        %v2315 = vpop.f32.mrf.mxu0
        %v2316 = vadd.f32 %v2084, %v2315
        %2317 = vdwg.mxu0
        %v2318 = vand.u32 %v692, 4294901760
        %v2319 = vsub.f32 %v692, %v2318
        %2320 = vmatprep.subr.mxu0 %v2319
        %v2321 = vand.u32 %v691, 4294901760
        %v2322 = vsub.f32 %v691, %v2321
        %2323 = vmatpush1.msra.mxu0 %v2322
        %v2324 = vand.u32 %v689, 4294901760
        %v2325 = vsub.f32 %v689, %v2324
        %2326 = vmatprep.subr.mxu0 %v2325
        %v2327 = vand.u32 %v688, 4294901760
        %v2328 = vsub.f32 %v688, %v2327
        %2329 = vmatpush1.msra.mxu0 %v2328
        %v2330 = vand.u32 %v686, 4294901760
        %v2331 = vsub.f32 %v686, %v2330
        %2332 = vmatprep.subr.mxu0 %v2331
        %v2333 = vand.u32 %v685, 4294901760
        %v2334 = vsub.f32 %v685, %v2333
        %2335 = vmatpush1.msra.mxu0 %v2334
        %v2336 = vand.u32 %v683, 4294901760
        %v2337 = vsub.f32 %v683, %v2336
        %2338 = vmatprep.subr.mxu0 %v2337
        %v2339 = vand.u32 %v682, 4294901760
        %v2340 = vsub.f32 %v682, %v2339
        %2341 = vmatpush1.msra.mxu0 %v2340
        %v2342 = vand.u32 %v680, 4294901760
        %v2343 = vsub.f32 %v680, %v2342
        %2344 = vmatprep.subr.mxu0 %v2343
        %v2345 = vand.u32 %v679, 4294901760
        %v2346 = vsub.f32 %v679, %v2345
        %2347 = vmatpush1.msra.mxu0 %v2346
        %v2348 = vand.u32 %v677, 4294901760
        %v2349 = vsub.f32 %v677, %v2348
        %2350 = vmatprep.subr.mxu0 %v2349
        %v2351 = vand.u32 %v676, 4294901760
        %v2352 = vsub.f32 %v676, %v2351
        %2353 = vmatpush1.msra.mxu0 %v2352
        %v2354 = vand.u32 %v674, 4294901760
        %v2355 = vsub.f32 %v674, %v2354
        %2356 = vmatprep.subr.mxu0 %v2355
        %v2357 = vand.u32 %v673, 4294901760
        %v2358 = vsub.f32 %v673, %v2357
        %2359 = vmatpush1.msra.mxu0 %v2358
        %v2360 = vand.u32 %v671, 4294901760
        %v2361 = vsub.f32 %v671, %v2360
        %2362 = vmatprep.subr.mxu0 %v2361
        %v2363 = vand.u32 %v670, 4294901760
        %v2364 = vsub.f32 %v670, %v2363
        %2365 = vmatpush1.msra.mxu0 %v2364
        %v2366 = vand.u32 %v668, 4294901760
        %v2367 = vsub.f32 %v668, %v2366
        %2368 = vmatprep.subr.mxu0 %v2367
        %v2369 = vand.u32 %v667, 4294901760
        %v2370 = vsub.f32 %v667, %v2369
        %2371 = vmatpush1.msra.mxu0 %v2370
        %v2372 = vand.u32 %v665, 4294901760
        %v2373 = vsub.f32 %v665, %v2372
        %2374 = vmatprep.subr.mxu0 %v2373
        %v2375 = vand.u32 %v664, 4294901760
        %v2376 = vsub.f32 %v664, %v2375
        %2377 = vmatpush1.msra.mxu0 %v2376
        %v2378 = vand.u32 %v662, 4294901760
        %v2379 = vsub.f32 %v662, %v2378
        %2380 = vmatprep.subr.mxu0 %v2379
        %v2381 = vand.u32 %v661, 4294901760
        %v2382 = vsub.f32 %v661, %v2381
        %2383 = vmatpush1.msra.mxu0 %v2382
        %v2384 = vand.u32 %v659, 4294901760
        %v2385 = vsub.f32 %v659, %v2384
        %2386 = vmatprep.subr.mxu0 %v2385
        %v2387 = vand.u32 %v658, 4294901760
        %v2388 = vsub.f32 %v658, %v2387
        %2389 = vmatpush1.msra.mxu0 %v2388
        %v2390 = vand.u32 %v656, 4294901760
        %v2391 = vsub.f32 %v656, %v2390
        %2392 = vmatprep.subr.mxu0 %v2391
        %v2393 = vand.u32 %v655, 4294901760
        %v2394 = vsub.f32 %v655, %v2393
        %2395 = vmatpush1.msra.mxu0 %v2394
        %v2396 = vand.u32 %v653, 4294901760
        %v2397 = vsub.f32 %v653, %v2396
        %2398 = vmatprep.subr.mxu0 %v2397
        %v2399 = vand.u32 %v652, 4294901760
        %v2400 = vsub.f32 %v652, %v2399
        %2401 = vmatpush1.msra.mxu0 %v2400
        %v2402 = vand.u32 %v650, 4294901760
        %v2403 = vsub.f32 %v650, %v2402
        %2404 = vmatprep.subr.mxu0 %v2403
        %v2405 = vand.u32 %v649, 4294901760
        %v2406 = vsub.f32 %v649, %v2405
        %2407 = vmatpush1.msra.mxu0 %v2406
        %v2408 = vand.u32 %v647, 4294901760
        %v2409 = vsub.f32 %v647, %v2408
        %2410 = vmatprep.subr.mxu0 %v2409
        %v2411 = vand.u32 %v646, 4294901760
        %v2412 = vsub.f32 %v646, %v2411
        %2413 = vmatpush1.msra.mxu0 %v2412
        %2414 = vmatprep.subr.mxu0 0.0
        %2415 = vmatpush2.msra.mxu0 0.0
        %2416 = vmatprep.subr.mxu0 0.0
        %2417 = vmatpush2.msra.mxu0 0.0
        %2418 = vmatprep.subr.mxu0 0.0
        %2419 = vmatpush2.msra.mxu0 0.0
        %2420 = vmatprep.subr.mxu0 0.0
        %2421 = vmatpush2.msra.mxu0 0.0
        %2422 = vmatprep.subr.mxu0 0.0
        %2423 = vmatpush2.msra.mxu0 0.0
        %2424 = vmatprep.subr.mxu0 0.0
        %2425 = vmatpush2.msra.mxu0 0.0
        %2426 = vmatprep.subr.mxu0 0.0
        %2427 = vmatpush2.msra.mxu0 0.0
        %2428 = vmatprep.subr.mxu0 0.0
        %2429 = vmatpush2.msra.mxu0 0.0
        %2430 = vmatprep.subr.mxu0 0.0
        %2431 = vmatpush2.msra.mxu0 0.0
        %2432 = vmatprep.subr.mxu0 0.0
        %2433 = vmatpush2.msra.mxu0 0.0
        %2434 = vmatprep.subr.mxu0 0.0
        %2435 = vmatpush2.msra.mxu0 0.0
        %2436 = vmatprep.subr.mxu0 0.0
        %2437 = vmatpush2.msra.mxu0 0.0
        %2438 = vmatprep.subr.mxu0 0.0
        %2439 = vmatpush2.msra.mxu0 0.0
        %2440 = vmatprep.subr.mxu0 0.0
        %2441 = vmatpush2.msra.mxu0 0.0
        %2442 = vmatprep.subr.mxu0 0.0
        %2443 = vmatpush2.msra.mxu0 0.0
        %2444 = vmatprep.subr.mxu0 0.0
        %2445 = vmatpush2.msra.mxu0 0.0
        %2446 = vmatprep.mubr.f32.mxu0 0.0
        %v2447 = vand.u32 %v200, 4294901760
        %v2448 = vsub.f32 %v200, %v2447
        %2449 = vmatmul.mubr.f32.gmra.mxu0 %v2448
        %v2450 = vpop.f32.mrf.mxu0
        %v2451 = vadd.f32 %v2314, %v2450
        %v2452 = vpop.f32.mrf.mxu0
        %v2453 = vadd.f32 %v2316, %v2452
        %2454 = vdwg.mxu0
        %v2455 = vand.u32 %v692, 4294901760
        %2456 = vmatprep.subr.mxu0 %v2455
        %v2457 = vand.u32 %v691, 4294901760
        %2458 = vmatpush1.msra.mxu0 %v2457
        %v2459 = vand.u32 %v689, 4294901760
        %2460 = vmatprep.subr.mxu0 %v2459
        %v2461 = vand.u32 %v688, 4294901760
        %2462 = vmatpush1.msra.mxu0 %v2461
        %v2463 = vand.u32 %v686, 4294901760
        %2464 = vmatprep.subr.mxu0 %v2463
        %v2465 = vand.u32 %v685, 4294901760
        %2466 = vmatpush1.msra.mxu0 %v2465
        %v2467 = vand.u32 %v683, 4294901760
        %2468 = vmatprep.subr.mxu0 %v2467
        %v2469 = vand.u32 %v682, 4294901760
        %2470 = vmatpush1.msra.mxu0 %v2469
        %v2471 = vand.u32 %v680, 4294901760
        %2472 = vmatprep.subr.mxu0 %v2471
        %v2473 = vand.u32 %v679, 4294901760
        %2474 = vmatpush1.msra.mxu0 %v2473
        %v2475 = vand.u32 %v677, 4294901760
        %2476 = vmatprep.subr.mxu0 %v2475
        %v2477 = vand.u32 %v676, 4294901760
        %2478 = vmatpush1.msra.mxu0 %v2477
        %v2479 = vand.u32 %v674, 4294901760
        %2480 = vmatprep.subr.mxu0 %v2479
        %v2481 = vand.u32 %v673, 4294901760
        %2482 = vmatpush1.msra.mxu0 %v2481
        %v2483 = vand.u32 %v671, 4294901760
        %2484 = vmatprep.subr.mxu0 %v2483
        %v2485 = vand.u32 %v670, 4294901760
        %2486 = vmatpush1.msra.mxu0 %v2485
        %v2487 = vand.u32 %v668, 4294901760
        %2488 = vmatprep.subr.mxu0 %v2487
        %v2489 = vand.u32 %v667, 4294901760
        %2490 = vmatpush1.msra.mxu0 %v2489
        %v2491 = vand.u32 %v665, 4294901760
        %2492 = vmatprep.subr.mxu0 %v2491
        %v2493 = vand.u32 %v664, 4294901760
        %2494 = vmatpush1.msra.mxu0 %v2493
        %v2495 = vand.u32 %v662, 4294901760
        %2496 = vmatprep.subr.mxu0 %v2495
        %v2497 = vand.u32 %v661, 4294901760
        %2498 = vmatpush1.msra.mxu0 %v2497
        %v2499 = vand.u32 %v659, 4294901760
        %2500 = vmatprep.subr.mxu0 %v2499
        %v2501 = vand.u32 %v658, 4294901760
        %2502 = vmatpush1.msra.mxu0 %v2501
        %v2503 = vand.u32 %v656, 4294901760
        %2504 = vmatprep.subr.mxu0 %v2503
        %v2505 = vand.u32 %v655, 4294901760
        %2506 = vmatpush1.msra.mxu0 %v2505
        %v2507 = vand.u32 %v653, 4294901760
        %2508 = vmatprep.subr.mxu0 %v2507
        %v2509 = vand.u32 %v652, 4294901760
        %2510 = vmatpush1.msra.mxu0 %v2509
        %v2511 = vand.u32 %v650, 4294901760
        %2512 = vmatprep.subr.mxu0 %v2511
        %v2513 = vand.u32 %v649, 4294901760
        %2514 = vmatpush1.msra.mxu0 %v2513
        %v2515 = vand.u32 %v647, 4294901760
        %2516 = vmatprep.subr.mxu0 %v2515
        %v2517 = vand.u32 %v646, 4294901760
        %2518 = vmatpush1.msra.mxu0 %v2517
        %2519 = vmatprep.subr.mxu0 0.0
        %2520 = vmatpush2.msra.mxu0 0.0
        %2521 = vmatprep.subr.mxu0 0.0
        %2522 = vmatpush2.msra.mxu0 0.0
        %2523 = vmatprep.subr.mxu0 0.0
        %2524 = vmatpush2.msra.mxu0 0.0
        %2525 = vmatprep.subr.mxu0 0.0
        %2526 = vmatpush2.msra.mxu0 0.0
        %2527 = vmatprep.subr.mxu0 0.0
        %2528 = vmatpush2.msra.mxu0 0.0
        %2529 = vmatprep.subr.mxu0 0.0
        %2530 = vmatpush2.msra.mxu0 0.0
        %2531 = vmatprep.subr.mxu0 0.0
        %2532 = vmatpush2.msra.mxu0 0.0
        %2533 = vmatprep.subr.mxu0 0.0
        %2534 = vmatpush2.msra.mxu0 0.0
        %2535 = vmatprep.subr.mxu0 0.0
        %2536 = vmatpush2.msra.mxu0 0.0
        %2537 = vmatprep.subr.mxu0 0.0
        %2538 = vmatpush2.msra.mxu0 0.0
        %2539 = vmatprep.subr.mxu0 0.0
        %2540 = vmatpush2.msra.mxu0 0.0
        %2541 = vmatprep.subr.mxu0 0.0
        %2542 = vmatpush2.msra.mxu0 0.0
        %2543 = vmatprep.subr.mxu0 0.0
        %2544 = vmatpush2.msra.mxu0 0.0
        %2545 = vmatprep.subr.mxu0 0.0
        %2546 = vmatpush2.msra.mxu0 0.0
        %2547 = vmatprep.subr.mxu0 0.0
        %2548 = vmatpush2.msra.mxu0 0.0
        %2549 = vmatprep.subr.mxu0 0.0
        %2550 = vmatpush2.msra.mxu0 0.0
        %2551 = vmatprep.mubr.f32.mxu0 0.0
        %v2552 = vand.u32 %v200, 4294901760
        %v2553 = vsub.f32 %v200, %v2552
        %v2554 = vand.u32 %v2553, 4294901760
        %2555 = vmatmul.mubr.f32.gmra.mxu0 %v2554
        %v2556 = vpop.f32.mrf.mxu0
        %v2557 = vadd.f32 %v2451, %v2556
        %v2558 = vpop.f32.mrf.mxu0
        %v2559 = vadd.f32 %v2453, %v2558
        %2560 = vdwg.mxu0
        %v2561 = vand.u32 %v692, 4294901760
        %v2562 = vsub.f32 %v692, %v2561
        %v2563 = vand.u32 %v2562, 4294901760
        %2564 = vmatprep.subr.mxu0 %v2563
        %v2565 = vand.u32 %v691, 4294901760
        %v2566 = vsub.f32 %v691, %v2565
        %v2567 = vand.u32 %v2566, 4294901760
        %2568 = vmatpush1.msra.mxu0 %v2567
        %v2569 = vand.u32 %v689, 4294901760
        %v2570 = vsub.f32 %v689, %v2569
        %v2571 = vand.u32 %v2570, 4294901760
        %2572 = vmatprep.subr.mxu0 %v2571
        %v2573 = vand.u32 %v688, 4294901760
        %v2574 = vsub.f32 %v688, %v2573
        %v2575 = vand.u32 %v2574, 4294901760
        %2576 = vmatpush1.msra.mxu0 %v2575
        %v2577 = vand.u32 %v686, 4294901760
        %v2578 = vsub.f32 %v686, %v2577
        %v2579 = vand.u32 %v2578, 4294901760
        %2580 = vmatprep.subr.mxu0 %v2579
        %v2581 = vand.u32 %v685, 4294901760
        %v2582 = vsub.f32 %v685, %v2581
        %v2583 = vand.u32 %v2582, 4294901760
        %2584 = vmatpush1.msra.mxu0 %v2583
        %v2585 = vand.u32 %v683, 4294901760
        %v2586 = vsub.f32 %v683, %v2585
        %v2587 = vand.u32 %v2586, 4294901760
        %2588 = vmatprep.subr.mxu0 %v2587
        %v2589 = vand.u32 %v682, 4294901760
        %v2590 = vsub.f32 %v682, %v2589
        %v2591 = vand.u32 %v2590, 4294901760
        %2592 = vmatpush1.msra.mxu0 %v2591
        %v2593 = vand.u32 %v680, 4294901760
        %v2594 = vsub.f32 %v680, %v2593
        %v2595 = vand.u32 %v2594, 4294901760
        %2596 = vmatprep.subr.mxu0 %v2595
        %v2597 = vand.u32 %v679, 4294901760
        %v2598 = vsub.f32 %v679, %v2597
        %v2599 = vand.u32 %v2598, 4294901760
        %2600 = vmatpush1.msra.mxu0 %v2599
        %v2601 = vand.u32 %v677, 4294901760
        %v2602 = vsub.f32 %v677, %v2601
        %v2603 = vand.u32 %v2602, 4294901760
        %2604 = vmatprep.subr.mxu0 %v2603
        %v2605 = vand.u32 %v676, 4294901760
        %v2606 = vsub.f32 %v676, %v2605
        %v2607 = vand.u32 %v2606, 4294901760
        %2608 = vmatpush1.msra.mxu0 %v2607
        %v2609 = vand.u32 %v674, 4294901760
        %v2610 = vsub.f32 %v674, %v2609
        %v2611 = vand.u32 %v2610, 4294901760
        %2612 = vmatprep.subr.mxu0 %v2611
        %v2613 = vand.u32 %v673, 4294901760
        %v2614 = vsub.f32 %v673, %v2613
        %v2615 = vand.u32 %v2614, 4294901760
        %2616 = vmatpush1.msra.mxu0 %v2615
        %v2617 = vand.u32 %v671, 4294901760
        %v2618 = vsub.f32 %v671, %v2617
        %v2619 = vand.u32 %v2618, 4294901760
        %2620 = vmatprep.subr.mxu0 %v2619
        %v2621 = vand.u32 %v670, 4294901760
        %v2622 = vsub.f32 %v670, %v2621
        %v2623 = vand.u32 %v2622, 4294901760
        %2624 = vmatpush1.msra.mxu0 %v2623
        %v2625 = vand.u32 %v668, 4294901760
        %v2626 = vsub.f32 %v668, %v2625
        %v2627 = vand.u32 %v2626, 4294901760
        %2628 = vmatprep.subr.mxu0 %v2627
        %v2629 = vand.u32 %v667, 4294901760
        %v2630 = vsub.f32 %v667, %v2629
        %v2631 = vand.u32 %v2630, 4294901760
        %2632 = vmatpush1.msra.mxu0 %v2631
        %v2633 = vand.u32 %v665, 4294901760
        %v2634 = vsub.f32 %v665, %v2633
        %v2635 = vand.u32 %v2634, 4294901760
        %2636 = vmatprep.subr.mxu0 %v2635
        %v2637 = vand.u32 %v664, 4294901760
        %v2638 = vsub.f32 %v664, %v2637
        %v2639 = vand.u32 %v2638, 4294901760
        %2640 = vmatpush1.msra.mxu0 %v2639
        %v2641 = vand.u32 %v662, 4294901760
        %v2642 = vsub.f32 %v662, %v2641
        %v2643 = vand.u32 %v2642, 4294901760
        %2644 = vmatprep.subr.mxu0 %v2643
        %v2645 = vand.u32 %v661, 4294901760
        %v2646 = vsub.f32 %v661, %v2645
        %v2647 = vand.u32 %v2646, 4294901760
        %2648 = vmatpush1.msra.mxu0 %v2647
        %v2649 = vand.u32 %v659, 4294901760
        %v2650 = vsub.f32 %v659, %v2649
        %v2651 = vand.u32 %v2650, 4294901760
        %2652 = vmatprep.subr.mxu0 %v2651
        %v2653 = vand.u32 %v658, 4294901760
        %v2654 = vsub.f32 %v658, %v2653
        %v2655 = vand.u32 %v2654, 4294901760
        %2656 = vmatpush1.msra.mxu0 %v2655
        %v2657 = vand.u32 %v656, 4294901760
        %v2658 = vsub.f32 %v656, %v2657
        %v2659 = vand.u32 %v2658, 4294901760
        %2660 = vmatprep.subr.mxu0 %v2659
        %v2661 = vand.u32 %v655, 4294901760
        %v2662 = vsub.f32 %v655, %v2661
        %v2663 = vand.u32 %v2662, 4294901760
        %2664 = vmatpush1.msra.mxu0 %v2663
        %v2665 = vand.u32 %v653, 4294901760
        %v2666 = vsub.f32 %v653, %v2665
        %v2667 = vand.u32 %v2666, 4294901760
        %2668 = vmatprep.subr.mxu0 %v2667
        %v2669 = vand.u32 %v652, 4294901760
        %v2670 = vsub.f32 %v652, %v2669
        %v2671 = vand.u32 %v2670, 4294901760
        %2672 = vmatpush1.msra.mxu0 %v2671
        %v2673 = vand.u32 %v650, 4294901760
        %v2674 = vsub.f32 %v650, %v2673
        %v2675 = vand.u32 %v2674, 4294901760
        %2676 = vmatprep.subr.mxu0 %v2675
        %v2677 = vand.u32 %v649, 4294901760
        %v2678 = vsub.f32 %v649, %v2677
        %v2679 = vand.u32 %v2678, 4294901760
        %2680 = vmatpush1.msra.mxu0 %v2679
        %v2681 = vand.u32 %v647, 4294901760
        %v2682 = vsub.f32 %v647, %v2681
        %v2683 = vand.u32 %v2682, 4294901760
        %2684 = vmatprep.subr.mxu0 %v2683
        %v2685 = vand.u32 %v646, 4294901760
        %v2686 = vsub.f32 %v646, %v2685
        %v2687 = vand.u32 %v2686, 4294901760
        %2688 = vmatpush1.msra.mxu0 %v2687
        %2689 = vmatprep.subr.mxu0 0.0
        %2690 = vmatpush2.msra.mxu0 0.0
        %2691 = vmatprep.subr.mxu0 0.0
        %2692 = vmatpush2.msra.mxu0 0.0
        %2693 = vmatprep.subr.mxu0 0.0
        %2694 = vmatpush2.msra.mxu0 0.0
        %2695 = vmatprep.subr.mxu0 0.0
        %2696 = vmatpush2.msra.mxu0 0.0
        %2697 = vmatprep.subr.mxu0 0.0
        %2698 = vmatpush2.msra.mxu0 0.0
        %2699 = vmatprep.subr.mxu0 0.0
        %2700 = vmatpush2.msra.mxu0 0.0
        %2701 = vmatprep.subr.mxu0 0.0
        %2702 = vmatpush2.msra.mxu0 0.0
        %2703 = vmatprep.subr.mxu0 0.0
        %2704 = vmatpush2.msra.mxu0 0.0
        %2705 = vmatprep.subr.mxu0 0.0
        %2706 = vmatpush2.msra.mxu0 0.0
        %2707 = vmatprep.subr.mxu0 0.0
        %2708 = vmatpush2.msra.mxu0 0.0
        %2709 = vmatprep.subr.mxu0 0.0
        %2710 = vmatpush2.msra.mxu0 0.0
        %2711 = vmatprep.subr.mxu0 0.0
        %2712 = vmatpush2.msra.mxu0 0.0
        %2713 = vmatprep.subr.mxu0 0.0
        %2714 = vmatpush2.msra.mxu0 0.0
        %2715 = vmatprep.subr.mxu0 0.0
        %2716 = vmatpush2.msra.mxu0 0.0
        %2717 = vmatprep.subr.mxu0 0.0
        %2718 = vmatpush2.msra.mxu0 0.0
        %2719 = vmatprep.subr.mxu0 0.0
        %2720 = vmatpush2.msra.mxu0 0.0
        %2721 = vmatprep.mubr.f32.mxu0 0.0
        %v2722 = vand.u32 %v200, 4294901760
        %2723 = vmatmul.mubr.f32.gmra.mxu0 %v2722
        %v2724 = vpop.f32.mrf.mxu0
        %v2725 = vadd.f32 %v2557, %v2724
        %v2726 = vpop.f32.mrf.mxu0
        %v2727 = vadd.f32 %v2559, %v2726
        %2728 = vdwg.mxu0
        %v2729 = vand.u32 %v692, 4294901760
        %2730 = vmatprep.subr.mxu0 %v2729
        %v2731 = vand.u32 %v691, 4294901760
        %2732 = vmatpush1.msra.mxu0 %v2731
        %v2733 = vand.u32 %v689, 4294901760
        %2734 = vmatprep.subr.mxu0 %v2733
        %v2735 = vand.u32 %v688, 4294901760
        %2736 = vmatpush1.msra.mxu0 %v2735
        %v2737 = vand.u32 %v686, 4294901760
        %2738 = vmatprep.subr.mxu0 %v2737
        %v2739 = vand.u32 %v685, 4294901760
        %2740 = vmatpush1.msra.mxu0 %v2739
        %v2741 = vand.u32 %v683, 4294901760
        %2742 = vmatprep.subr.mxu0 %v2741
        %v2743 = vand.u32 %v682, 4294901760
        %2744 = vmatpush1.msra.mxu0 %v2743
        %v2745 = vand.u32 %v680, 4294901760
        %2746 = vmatprep.subr.mxu0 %v2745
        %v2747 = vand.u32 %v679, 4294901760
        %2748 = vmatpush1.msra.mxu0 %v2747
        %v2749 = vand.u32 %v677, 4294901760
        %2750 = vmatprep.subr.mxu0 %v2749
        %v2751 = vand.u32 %v676, 4294901760
        %2752 = vmatpush1.msra.mxu0 %v2751
        %v2753 = vand.u32 %v674, 4294901760
        %2754 = vmatprep.subr.mxu0 %v2753
        %v2755 = vand.u32 %v673, 4294901760
        %2756 = vmatpush1.msra.mxu0 %v2755
        %v2757 = vand.u32 %v671, 4294901760
        %2758 = vmatprep.subr.mxu0 %v2757
        %v2759 = vand.u32 %v670, 4294901760
        %2760 = vmatpush1.msra.mxu0 %v2759
        %v2761 = vand.u32 %v668, 4294901760
        %2762 = vmatprep.subr.mxu0 %v2761
        %v2763 = vand.u32 %v667, 4294901760
        %2764 = vmatpush1.msra.mxu0 %v2763
        %v2765 = vand.u32 %v665, 4294901760
        %2766 = vmatprep.subr.mxu0 %v2765
        %v2767 = vand.u32 %v664, 4294901760
        %2768 = vmatpush1.msra.mxu0 %v2767
        %v2769 = vand.u32 %v662, 4294901760
        %2770 = vmatprep.subr.mxu0 %v2769
        %v2771 = vand.u32 %v661, 4294901760
        %2772 = vmatpush1.msra.mxu0 %v2771
        %v2773 = vand.u32 %v659, 4294901760
        %2774 = vmatprep.subr.mxu0 %v2773
        %v2775 = vand.u32 %v658, 4294901760
        %2776 = vmatpush1.msra.mxu0 %v2775
        %v2777 = vand.u32 %v656, 4294901760
        %2778 = vmatprep.subr.mxu0 %v2777
        %v2779 = vand.u32 %v655, 4294901760
        %2780 = vmatpush1.msra.mxu0 %v2779
        %v2781 = vand.u32 %v653, 4294901760
        %2782 = vmatprep.subr.mxu0 %v2781
        %v2783 = vand.u32 %v652, 4294901760
        %2784 = vmatpush1.msra.mxu0 %v2783
        %v2785 = vand.u32 %v650, 4294901760
        %2786 = vmatprep.subr.mxu0 %v2785
        %v2787 = vand.u32 %v649, 4294901760
        %2788 = vmatpush1.msra.mxu0 %v2787
        %v2789 = vand.u32 %v647, 4294901760
        %2790 = vmatprep.subr.mxu0 %v2789
        %v2791 = vand.u32 %v646, 4294901760
        %2792 = vmatpush1.msra.mxu0 %v2791
        %2793 = vmatprep.subr.mxu0 0.0
        %2794 = vmatpush2.msra.mxu0 0.0
        %2795 = vmatprep.subr.mxu0 0.0
        %2796 = vmatpush2.msra.mxu0 0.0
        %2797 = vmatprep.subr.mxu0 0.0
        %2798 = vmatpush2.msra.mxu0 0.0
        %2799 = vmatprep.subr.mxu0 0.0
        %2800 = vmatpush2.msra.mxu0 0.0
        %2801 = vmatprep.subr.mxu0 0.0
        %2802 = vmatpush2.msra.mxu0 0.0
        %2803 = vmatprep.subr.mxu0 0.0
        %2804 = vmatpush2.msra.mxu0 0.0
        %2805 = vmatprep.subr.mxu0 0.0
        %2806 = vmatpush2.msra.mxu0 0.0
        %2807 = vmatprep.subr.mxu0 0.0
        %2808 = vmatpush2.msra.mxu0 0.0
        %2809 = vmatprep.subr.mxu0 0.0
        %2810 = vmatpush2.msra.mxu0 0.0
        %2811 = vmatprep.subr.mxu0 0.0
        %2812 = vmatpush2.msra.mxu0 0.0
        %2813 = vmatprep.subr.mxu0 0.0
        %2814 = vmatpush2.msra.mxu0 0.0
        %2815 = vmatprep.subr.mxu0 0.0
        %2816 = vmatpush2.msra.mxu0 0.0
        %2817 = vmatprep.subr.mxu0 0.0
        %2818 = vmatpush2.msra.mxu0 0.0
        %2819 = vmatprep.subr.mxu0 0.0
        %2820 = vmatpush2.msra.mxu0 0.0
        %2821 = vmatprep.subr.mxu0 0.0
        %2822 = vmatpush2.msra.mxu0 0.0
        %2823 = vmatprep.subr.mxu0 0.0
        %2824 = vmatpush2.msra.mxu0 0.0
        %2825 = vmatprep.mubr.f32.mxu0 0.0
        %v2826 = vand.u32 %v200, 4294901760
        %2827 = vmatmul.mubr.f32.gmra.mxu0 %v2826
        %v2828 = vpop.f32.mrf.mxu0
        %v2829 = vadd.f32 %v2725, %v2828
        %v2830 = vpop.f32.mrf.mxu0
        %v2831 = vadd.f32 %v2727, %v2830
        %2832 = vdwg.mxu0
        %2833 = vmatprep.subr.mxu0 0.0
        %v2834 = vand.u32 %v597, 4294901760
        %2835 = vmatpush1.msra.mxu0 %v2834
        %2836 = vmatprep.subr.mxu0 0.0
        %v2837 = vand.u32 %v594, 4294901760
        %2838 = vmatpush1.msra.mxu0 %v2837
        %2839 = vmatprep.subr.mxu0 0.0
        %v2840 = vand.u32 %v591, 4294901760
        %2841 = vmatpush1.msra.mxu0 %v2840
        %2842 = vmatprep.subr.mxu0 0.0
        %v2843 = vand.u32 %v588, 4294901760
        %2844 = vmatpush1.msra.mxu0 %v2843
        %2845 = vmatprep.subr.mxu0 0.0
        %v2846 = vand.u32 %v585, 4294901760
        %2847 = vmatpush1.msra.mxu0 %v2846
        %2848 = vmatprep.subr.mxu0 0.0
        %v2849 = vand.u32 %v582, 4294901760
        %2850 = vmatpush1.msra.mxu0 %v2849
        %2851 = vmatprep.subr.mxu0 0.0
        %v2852 = vand.u32 %v579, 4294901760
        %2853 = vmatpush1.msra.mxu0 %v2852
        %2854 = vmatprep.subr.mxu0 0.0
        %v2855 = vand.u32 %v576, 4294901760
        %2856 = vmatpush1.msra.mxu0 %v2855
        %2857 = vmatprep.subr.mxu0 0.0
        %v2858 = vand.u32 %v573, 4294901760
        %2859 = vmatpush1.msra.mxu0 %v2858
        %2860 = vmatprep.subr.mxu0 0.0
        %v2861 = vand.u32 %v570, 4294901760
        %2862 = vmatpush1.msra.mxu0 %v2861
        %2863 = vmatprep.subr.mxu0 0.0
        %v2864 = vand.u32 %v567, 4294901760
        %2865 = vmatpush1.msra.mxu0 %v2864
        %2866 = vmatprep.subr.mxu0 0.0
        %v2867 = vand.u32 %v564, 4294901760
        %2868 = vmatpush1.msra.mxu0 %v2867
        %2869 = vmatprep.subr.mxu0 0.0
        %v2870 = vand.u32 %v561, 4294901760
        %2871 = vmatpush1.msra.mxu0 %v2870
        %2872 = vmatprep.subr.mxu0 0.0
        %v2873 = vand.u32 %v558, 4294901760
        %2874 = vmatpush1.msra.mxu0 %v2873
        %2875 = vmatprep.subr.mxu0 0.0
        %v2876 = vand.u32 %v555, 4294901760
        %2877 = vmatpush1.msra.mxu0 %v2876
        %2878 = vmatprep.subr.mxu0 0.0
        %v2879 = vand.u32 %v552, 4294901760
        %2880 = vmatpush1.msra.mxu0 %v2879
        %2881 = vmatprep.subr.mxu0 0.0
        %v2882 = vand.u32 %v645, 4294901760
        %2883 = vmatpush2.msra.mxu0 %v2882
        %2884 = vmatprep.subr.mxu0 0.0
        %v2885 = vand.u32 %v642, 4294901760
        %2886 = vmatpush2.msra.mxu0 %v2885
        %2887 = vmatprep.subr.mxu0 0.0
        %v2888 = vand.u32 %v639, 4294901760
        %2889 = vmatpush2.msra.mxu0 %v2888
        %2890 = vmatprep.subr.mxu0 0.0
        %v2891 = vand.u32 %v636, 4294901760
        %2892 = vmatpush2.msra.mxu0 %v2891
        %2893 = vmatprep.subr.mxu0 0.0
        %v2894 = vand.u32 %v633, 4294901760
        %2895 = vmatpush2.msra.mxu0 %v2894
        %2896 = vmatprep.subr.mxu0 0.0
        %v2897 = vand.u32 %v630, 4294901760
        %2898 = vmatpush2.msra.mxu0 %v2897
        %2899 = vmatprep.subr.mxu0 0.0
        %v2900 = vand.u32 %v627, 4294901760
        %2901 = vmatpush2.msra.mxu0 %v2900
        %2902 = vmatprep.subr.mxu0 0.0
        %v2903 = vand.u32 %v624, 4294901760
        %2904 = vmatpush2.msra.mxu0 %v2903
        %2905 = vmatprep.subr.mxu0 0.0
        %v2906 = vand.u32 %v621, 4294901760
        %2907 = vmatpush2.msra.mxu0 %v2906
        %2908 = vmatprep.subr.mxu0 0.0
        %v2909 = vand.u32 %v618, 4294901760
        %2910 = vmatpush2.msra.mxu0 %v2909
        %2911 = vmatprep.subr.mxu0 0.0
        %v2912 = vand.u32 %v615, 4294901760
        %2913 = vmatpush2.msra.mxu0 %v2912
        %2914 = vmatprep.subr.mxu0 0.0
        %v2915 = vand.u32 %v612, 4294901760
        %2916 = vmatpush2.msra.mxu0 %v2915
        %2917 = vmatprep.subr.mxu0 0.0
        %v2918 = vand.u32 %v609, 4294901760
        %2919 = vmatpush2.msra.mxu0 %v2918
        %2920 = vmatprep.subr.mxu0 0.0
        %v2921 = vand.u32 %v606, 4294901760
        %2922 = vmatpush2.msra.mxu0 %v2921
        %2923 = vmatprep.subr.mxu0 0.0
        %v2924 = vand.u32 %v603, 4294901760
        %2925 = vmatpush2.msra.mxu0 %v2924
        %2926 = vmatprep.subr.mxu0 0.0
        %v2927 = vand.u32 %v600, 4294901760
        %2928 = vmatpush2.msra.mxu0 %v2927
        %v2929 = vand.u32 %v199, 4294901760
        %v2930 = vsub.f32 %v199, %v2929
        %v2931 = vand.u32 %v2930, 4294901760
        %v2932 = vsub.f32 %v2930, %v2931
        %v2933 = vand.u32 %v2932, 4294901760
        %2934 = vmatprep.mubr.f32.mxu0 %v2933
        %v2935 = vand.u32 %v198, 4294901760
        %v2936 = vsub.f32 %v198, %v2935
        %v2937 = vand.u32 %v2936, 4294901760
        %v2938 = vsub.f32 %v2936, %v2937
        %v2939 = vand.u32 %v2938, 4294901760
        %2940 = vmatmul.mubr.f32.gmra.mxu0 %v2939
        %v2941 = vpop.f32.mrf.mxu0
        %v2942 = vadd.f32 0.0, %v2941
        %v2943 = vpop.f32.mrf.mxu0
        %2944 = vdwg.mxu0
        %2945 = vmatprep.subr.mxu0 0.0
        %v2946 = vand.u32 %v597, 4294901760
        %v2947 = vsub.f32 %v597, %v2946
        %v2948 = vand.u32 %v2947, 4294901760
        %v2949 = vsub.f32 %v2947, %v2948
        %v2950 = vand.u32 %v2949, 4294901760
        %2951 = vmatpush1.msra.mxu0 %v2950
        %2952 = vmatprep.subr.mxu0 0.0
        %v2953 = vand.u32 %v594, 4294901760
        %v2954 = vsub.f32 %v594, %v2953
        %v2955 = vand.u32 %v2954, 4294901760
        %v2956 = vsub.f32 %v2954, %v2955
        %v2957 = vand.u32 %v2956, 4294901760
        %2958 = vmatpush1.msra.mxu0 %v2957
        %2959 = vmatprep.subr.mxu0 0.0
        %v2960 = vand.u32 %v591, 4294901760
        %v2961 = vsub.f32 %v591, %v2960
        %v2962 = vand.u32 %v2961, 4294901760
        %v2963 = vsub.f32 %v2961, %v2962
        %v2964 = vand.u32 %v2963, 4294901760
        %2965 = vmatpush1.msra.mxu0 %v2964
        %2966 = vmatprep.subr.mxu0 0.0
        %v2967 = vand.u32 %v588, 4294901760
        %v2968 = vsub.f32 %v588, %v2967
        %v2969 = vand.u32 %v2968, 4294901760
        %v2970 = vsub.f32 %v2968, %v2969
        %v2971 = vand.u32 %v2970, 4294901760
        %2972 = vmatpush1.msra.mxu0 %v2971
        %2973 = vmatprep.subr.mxu0 0.0
        %v2974 = vand.u32 %v585, 4294901760
        %v2975 = vsub.f32 %v585, %v2974
        %v2976 = vand.u32 %v2975, 4294901760
        %v2977 = vsub.f32 %v2975, %v2976
        %v2978 = vand.u32 %v2977, 4294901760
        %2979 = vmatpush1.msra.mxu0 %v2978
        %2980 = vmatprep.subr.mxu0 0.0
        %v2981 = vand.u32 %v582, 4294901760
        %v2982 = vsub.f32 %v582, %v2981
        %v2983 = vand.u32 %v2982, 4294901760
        %v2984 = vsub.f32 %v2982, %v2983
        %v2985 = vand.u32 %v2984, 4294901760
        %2986 = vmatpush1.msra.mxu0 %v2985
        %2987 = vmatprep.subr.mxu0 0.0
        %v2988 = vand.u32 %v579, 4294901760
        %v2989 = vsub.f32 %v579, %v2988
        %v2990 = vand.u32 %v2989, 4294901760
        %v2991 = vsub.f32 %v2989, %v2990
        %v2992 = vand.u32 %v2991, 4294901760
        %2993 = vmatpush1.msra.mxu0 %v2992
        %2994 = vmatprep.subr.mxu0 0.0
        %v2995 = vand.u32 %v576, 4294901760
        %v2996 = vsub.f32 %v576, %v2995
        %v2997 = vand.u32 %v2996, 4294901760
        %v2998 = vsub.f32 %v2996, %v2997
        %v2999 = vand.u32 %v2998, 4294901760
        %3000 = vmatpush1.msra.mxu0 %v2999
        %3001 = vmatprep.subr.mxu0 0.0
        %v3002 = vand.u32 %v573, 4294901760
        %v3003 = vsub.f32 %v573, %v3002
        %v3004 = vand.u32 %v3003, 4294901760
        %v3005 = vsub.f32 %v3003, %v3004
        %v3006 = vand.u32 %v3005, 4294901760
        %3007 = vmatpush1.msra.mxu0 %v3006
        %3008 = vmatprep.subr.mxu0 0.0
        %v3009 = vand.u32 %v570, 4294901760
        %v3010 = vsub.f32 %v570, %v3009
        %v3011 = vand.u32 %v3010, 4294901760
        %v3012 = vsub.f32 %v3010, %v3011
        %v3013 = vand.u32 %v3012, 4294901760
        %3014 = vmatpush1.msra.mxu0 %v3013
        %3015 = vmatprep.subr.mxu0 0.0
        %v3016 = vand.u32 %v567, 4294901760
        %v3017 = vsub.f32 %v567, %v3016
        %v3018 = vand.u32 %v3017, 4294901760
        %v3019 = vsub.f32 %v3017, %v3018
        %v3020 = vand.u32 %v3019, 4294901760
        %3021 = vmatpush1.msra.mxu0 %v3020
        %3022 = vmatprep.subr.mxu0 0.0
        %v3023 = vand.u32 %v564, 4294901760
        %v3024 = vsub.f32 %v564, %v3023
        %v3025 = vand.u32 %v3024, 4294901760
        %v3026 = vsub.f32 %v3024, %v3025
        %v3027 = vand.u32 %v3026, 4294901760
        %3028 = vmatpush1.msra.mxu0 %v3027
        %3029 = vmatprep.subr.mxu0 0.0
        %v3030 = vand.u32 %v561, 4294901760
        %v3031 = vsub.f32 %v561, %v3030
        %v3032 = vand.u32 %v3031, 4294901760
        %v3033 = vsub.f32 %v3031, %v3032
        %v3034 = vand.u32 %v3033, 4294901760
        %3035 = vmatpush1.msra.mxu0 %v3034
        %3036 = vmatprep.subr.mxu0 0.0
        %v3037 = vand.u32 %v558, 4294901760
        %v3038 = vsub.f32 %v558, %v3037
        %v3039 = vand.u32 %v3038, 4294901760
        %v3040 = vsub.f32 %v3038, %v3039
        %v3041 = vand.u32 %v3040, 4294901760
        %3042 = vmatpush1.msra.mxu0 %v3041
        %3043 = vmatprep.subr.mxu0 0.0
        %v3044 = vand.u32 %v555, 4294901760
        %v3045 = vsub.f32 %v555, %v3044
        %v3046 = vand.u32 %v3045, 4294901760
        %v3047 = vsub.f32 %v3045, %v3046
        %v3048 = vand.u32 %v3047, 4294901760
        %3049 = vmatpush1.msra.mxu0 %v3048
        %3050 = vmatprep.subr.mxu0 0.0
        %v3051 = vand.u32 %v552, 4294901760
        %v3052 = vsub.f32 %v552, %v3051
        %v3053 = vand.u32 %v3052, 4294901760
        %v3054 = vsub.f32 %v3052, %v3053
        %v3055 = vand.u32 %v3054, 4294901760
        %3056 = vmatpush1.msra.mxu0 %v3055
        %3057 = vmatprep.subr.mxu0 0.0
        %v3058 = vand.u32 %v645, 4294901760
        %v3059 = vsub.f32 %v645, %v3058
        %v3060 = vand.u32 %v3059, 4294901760
        %v3061 = vsub.f32 %v3059, %v3060
        %v3062 = vand.u32 %v3061, 4294901760
        %3063 = vmatpush2.msra.mxu0 %v3062
        %3064 = vmatprep.subr.mxu0 0.0
        %v3065 = vand.u32 %v642, 4294901760
        %v3066 = vsub.f32 %v642, %v3065
        %v3067 = vand.u32 %v3066, 4294901760
        %v3068 = vsub.f32 %v3066, %v3067
        %v3069 = vand.u32 %v3068, 4294901760
        %3070 = vmatpush2.msra.mxu0 %v3069
        %3071 = vmatprep.subr.mxu0 0.0
        %v3072 = vand.u32 %v639, 4294901760
        %v3073 = vsub.f32 %v639, %v3072
        %v3074 = vand.u32 %v3073, 4294901760
        %v3075 = vsub.f32 %v3073, %v3074
        %v3076 = vand.u32 %v3075, 4294901760
        %3077 = vmatpush2.msra.mxu0 %v3076
        %3078 = vmatprep.subr.mxu0 0.0
        %v3079 = vand.u32 %v636, 4294901760
        %v3080 = vsub.f32 %v636, %v3079
        %v3081 = vand.u32 %v3080, 4294901760
        %v3082 = vsub.f32 %v3080, %v3081
        %v3083 = vand.u32 %v3082, 4294901760
        %3084 = vmatpush2.msra.mxu0 %v3083
        %3085 = vmatprep.subr.mxu0 0.0
        %v3086 = vand.u32 %v633, 4294901760
        %v3087 = vsub.f32 %v633, %v3086
        %v3088 = vand.u32 %v3087, 4294901760
        %v3089 = vsub.f32 %v3087, %v3088
        %v3090 = vand.u32 %v3089, 4294901760
        %3091 = vmatpush2.msra.mxu0 %v3090
        %3092 = vmatprep.subr.mxu0 0.0
        %v3093 = vand.u32 %v630, 4294901760
        %v3094 = vsub.f32 %v630, %v3093
        %v3095 = vand.u32 %v3094, 4294901760
        %v3096 = vsub.f32 %v3094, %v3095
        %v3097 = vand.u32 %v3096, 4294901760
        %3098 = vmatpush2.msra.mxu0 %v3097
        %3099 = vmatprep.subr.mxu0 0.0
        %v3100 = vand.u32 %v627, 4294901760
        %v3101 = vsub.f32 %v627, %v3100
        %v3102 = vand.u32 %v3101, 4294901760
        %v3103 = vsub.f32 %v3101, %v3102
        %v3104 = vand.u32 %v3103, 4294901760
        %3105 = vmatpush2.msra.mxu0 %v3104
        %3106 = vmatprep.subr.mxu0 0.0
        %v3107 = vand.u32 %v624, 4294901760
        %v3108 = vsub.f32 %v624, %v3107
        %v3109 = vand.u32 %v3108, 4294901760
        %v3110 = vsub.f32 %v3108, %v3109
        %v3111 = vand.u32 %v3110, 4294901760
        %3112 = vmatpush2.msra.mxu0 %v3111
        %3113 = vmatprep.subr.mxu0 0.0
        %v3114 = vand.u32 %v621, 4294901760
        %v3115 = vsub.f32 %v621, %v3114
        %v3116 = vand.u32 %v3115, 4294901760
        %v3117 = vsub.f32 %v3115, %v3116
        %v3118 = vand.u32 %v3117, 4294901760
        %3119 = vmatpush2.msra.mxu0 %v3118
        %3120 = vmatprep.subr.mxu0 0.0
        %v3121 = vand.u32 %v618, 4294901760
        %v3122 = vsub.f32 %v618, %v3121
        %v3123 = vand.u32 %v3122, 4294901760
        %v3124 = vsub.f32 %v3122, %v3123
        %v3125 = vand.u32 %v3124, 4294901760
        %3126 = vmatpush2.msra.mxu0 %v3125
        %3127 = vmatprep.subr.mxu0 0.0
        %v3128 = vand.u32 %v615, 4294901760
        %v3129 = vsub.f32 %v615, %v3128
        %v3130 = vand.u32 %v3129, 4294901760
        %v3131 = vsub.f32 %v3129, %v3130
        %v3132 = vand.u32 %v3131, 4294901760
        %3133 = vmatpush2.msra.mxu0 %v3132
        %3134 = vmatprep.subr.mxu0 0.0
        %v3135 = vand.u32 %v612, 4294901760
        %v3136 = vsub.f32 %v612, %v3135
        %v3137 = vand.u32 %v3136, 4294901760
        %v3138 = vsub.f32 %v3136, %v3137
        %v3139 = vand.u32 %v3138, 4294901760
        %3140 = vmatpush2.msra.mxu0 %v3139
        %3141 = vmatprep.subr.mxu0 0.0
        %v3142 = vand.u32 %v609, 4294901760
        %v3143 = vsub.f32 %v609, %v3142
        %v3144 = vand.u32 %v3143, 4294901760
        %v3145 = vsub.f32 %v3143, %v3144
        %v3146 = vand.u32 %v3145, 4294901760
        %3147 = vmatpush2.msra.mxu0 %v3146
        %3148 = vmatprep.subr.mxu0 0.0
        %v3149 = vand.u32 %v606, 4294901760
        %v3150 = vsub.f32 %v606, %v3149
        %v3151 = vand.u32 %v3150, 4294901760
        %v3152 = vsub.f32 %v3150, %v3151
        %v3153 = vand.u32 %v3152, 4294901760
        %3154 = vmatpush2.msra.mxu0 %v3153
        %3155 = vmatprep.subr.mxu0 0.0
        %v3156 = vand.u32 %v603, 4294901760
        %v3157 = vsub.f32 %v603, %v3156
        %v3158 = vand.u32 %v3157, 4294901760
        %v3159 = vsub.f32 %v3157, %v3158
        %v3160 = vand.u32 %v3159, 4294901760
        %3161 = vmatpush2.msra.mxu0 %v3160
        %3162 = vmatprep.subr.mxu0 0.0
        %v3163 = vand.u32 %v600, 4294901760
        %v3164 = vsub.f32 %v600, %v3163
        %v3165 = vand.u32 %v3164, 4294901760
        %v3166 = vsub.f32 %v3164, %v3165
        %v3167 = vand.u32 %v3166, 4294901760
        %3168 = vmatpush2.msra.mxu0 %v3167
        %v3169 = vand.u32 %v199, 4294901760
        %3170 = vmatprep.mubr.f32.mxu0 %v3169
        %v3171 = vand.u32 %v198, 4294901760
        %3172 = vmatmul.mubr.f32.gmra.mxu0 %v3171
        %v3173 = vpop.f32.mrf.mxu0
        %v3174 = vadd.f32 %v2942, %v3173
        %v3175 = vpop.f32.mrf.mxu0
        %3176 = vdwg.mxu0
        %3177 = vmatprep.subr.mxu0 0.0
        %v3178 = vand.u32 %v597, 4294901760
        %v3179 = vsub.f32 %v597, %v3178
        %3180 = vmatpush1.msra.mxu0 %v3179
        %3181 = vmatprep.subr.mxu0 0.0
        %v3182 = vand.u32 %v594, 4294901760
        %v3183 = vsub.f32 %v594, %v3182
        %3184 = vmatpush1.msra.mxu0 %v3183
        %3185 = vmatprep.subr.mxu0 0.0
        %v3186 = vand.u32 %v591, 4294901760
        %v3187 = vsub.f32 %v591, %v3186
        %3188 = vmatpush1.msra.mxu0 %v3187
        %3189 = vmatprep.subr.mxu0 0.0
        %v3190 = vand.u32 %v588, 4294901760
        %v3191 = vsub.f32 %v588, %v3190
        %3192 = vmatpush1.msra.mxu0 %v3191
        %3193 = vmatprep.subr.mxu0 0.0
        %v3194 = vand.u32 %v585, 4294901760
        %v3195 = vsub.f32 %v585, %v3194
        %3196 = vmatpush1.msra.mxu0 %v3195
        %3197 = vmatprep.subr.mxu0 0.0
        %v3198 = vand.u32 %v582, 4294901760
        %v3199 = vsub.f32 %v582, %v3198
        %3200 = vmatpush1.msra.mxu0 %v3199
        %3201 = vmatprep.subr.mxu0 0.0
        %v3202 = vand.u32 %v579, 4294901760
        %v3203 = vsub.f32 %v579, %v3202
        %3204 = vmatpush1.msra.mxu0 %v3203
        %3205 = vmatprep.subr.mxu0 0.0
        %v3206 = vand.u32 %v576, 4294901760
        %v3207 = vsub.f32 %v576, %v3206
        %3208 = vmatpush1.msra.mxu0 %v3207
        %3209 = vmatprep.subr.mxu0 0.0
        %v3210 = vand.u32 %v573, 4294901760
        %v3211 = vsub.f32 %v573, %v3210
        %3212 = vmatpush1.msra.mxu0 %v3211
        %3213 = vmatprep.subr.mxu0 0.0
        %v3214 = vand.u32 %v570, 4294901760
        %v3215 = vsub.f32 %v570, %v3214
        %3216 = vmatpush1.msra.mxu0 %v3215
        %3217 = vmatprep.subr.mxu0 0.0
        %v3218 = vand.u32 %v567, 4294901760
        %v3219 = vsub.f32 %v567, %v3218
        %3220 = vmatpush1.msra.mxu0 %v3219
        %3221 = vmatprep.subr.mxu0 0.0
        %v3222 = vand.u32 %v564, 4294901760
        %v3223 = vsub.f32 %v564, %v3222
        %3224 = vmatpush1.msra.mxu0 %v3223
        %3225 = vmatprep.subr.mxu0 0.0
        %v3226 = vand.u32 %v561, 4294901760
        %v3227 = vsub.f32 %v561, %v3226
        %3228 = vmatpush1.msra.mxu0 %v3227
        %3229 = vmatprep.subr.mxu0 0.0
        %v3230 = vand.u32 %v558, 4294901760
        %v3231 = vsub.f32 %v558, %v3230
        %3232 = vmatpush1.msra.mxu0 %v3231
        %3233 = vmatprep.subr.mxu0 0.0
        %v3234 = vand.u32 %v555, 4294901760
        %v3235 = vsub.f32 %v555, %v3234
        %3236 = vmatpush1.msra.mxu0 %v3235
        %3237 = vmatprep.subr.mxu0 0.0
        %v3238 = vand.u32 %v552, 4294901760
        %v3239 = vsub.f32 %v552, %v3238
        %3240 = vmatpush1.msra.mxu0 %v3239
        %3241 = vmatprep.subr.mxu0 0.0
        %v3242 = vand.u32 %v645, 4294901760
        %v3243 = vsub.f32 %v645, %v3242
        %3244 = vmatpush2.msra.mxu0 %v3243
        %3245 = vmatprep.subr.mxu0 0.0
        %v3246 = vand.u32 %v642, 4294901760
        %v3247 = vsub.f32 %v642, %v3246
        %3248 = vmatpush2.msra.mxu0 %v3247
        %3249 = vmatprep.subr.mxu0 0.0
        %v3250 = vand.u32 %v639, 4294901760
        %v3251 = vsub.f32 %v639, %v3250
        %3252 = vmatpush2.msra.mxu0 %v3251
        %3253 = vmatprep.subr.mxu0 0.0
        %v3254 = vand.u32 %v636, 4294901760
        %v3255 = vsub.f32 %v636, %v3254
        %3256 = vmatpush2.msra.mxu0 %v3255
        %3257 = vmatprep.subr.mxu0 0.0
        %v3258 = vand.u32 %v633, 4294901760
        %v3259 = vsub.f32 %v633, %v3258
        %3260 = vmatpush2.msra.mxu0 %v3259
        %3261 = vmatprep.subr.mxu0 0.0
        %v3262 = vand.u32 %v630, 4294901760
        %v3263 = vsub.f32 %v630, %v3262
        %3264 = vmatpush2.msra.mxu0 %v3263
        %3265 = vmatprep.subr.mxu0 0.0
        %v3266 = vand.u32 %v627, 4294901760
        %v3267 = vsub.f32 %v627, %v3266
        %3268 = vmatpush2.msra.mxu0 %v3267
        %3269 = vmatprep.subr.mxu0 0.0
        %v3270 = vand.u32 %v624, 4294901760
        %v3271 = vsub.f32 %v624, %v3270
        %3272 = vmatpush2.msra.mxu0 %v3271
        %3273 = vmatprep.subr.mxu0 0.0
        %v3274 = vand.u32 %v621, 4294901760
        %v3275 = vsub.f32 %v621, %v3274
        %3276 = vmatpush2.msra.mxu0 %v3275
        %3277 = vmatprep.subr.mxu0 0.0
        %v3278 = vand.u32 %v618, 4294901760
        %v3279 = vsub.f32 %v618, %v3278
        %3280 = vmatpush2.msra.mxu0 %v3279
        %3281 = vmatprep.subr.mxu0 0.0
        %v3282 = vand.u32 %v615, 4294901760
        %v3283 = vsub.f32 %v615, %v3282
        %3284 = vmatpush2.msra.mxu0 %v3283
        %3285 = vmatprep.subr.mxu0 0.0
        %v3286 = vand.u32 %v612, 4294901760
        %v3287 = vsub.f32 %v612, %v3286
        %3288 = vmatpush2.msra.mxu0 %v3287
        %3289 = vmatprep.subr.mxu0 0.0
        %v3290 = vand.u32 %v609, 4294901760
        %v3291 = vsub.f32 %v609, %v3290
        %3292 = vmatpush2.msra.mxu0 %v3291
        %3293 = vmatprep.subr.mxu0 0.0
        %v3294 = vand.u32 %v606, 4294901760
        %v3295 = vsub.f32 %v606, %v3294
        %3296 = vmatpush2.msra.mxu0 %v3295
        %3297 = vmatprep.subr.mxu0 0.0
        %v3298 = vand.u32 %v603, 4294901760
        %v3299 = vsub.f32 %v603, %v3298
        %3300 = vmatpush2.msra.mxu0 %v3299
        %3301 = vmatprep.subr.mxu0 0.0
        %v3302 = vand.u32 %v600, 4294901760
        %v3303 = vsub.f32 %v600, %v3302
        %3304 = vmatpush2.msra.mxu0 %v3303
        %v3305 = vand.u32 %v199, 4294901760
        %v3306 = vsub.f32 %v199, %v3305
        %3307 = vmatprep.mubr.f32.mxu0 %v3306
        %v3308 = vand.u32 %v198, 4294901760
        %v3309 = vsub.f32 %v198, %v3308
        %3310 = vmatmul.mubr.f32.gmra.mxu0 %v3309
        %v3311 = vpop.f32.mrf.mxu0
        %v3312 = vadd.f32 %v3174, %v3311
        %v3313 = vpop.f32.mrf.mxu0
        %3314 = vdwg.mxu0
        %3315 = vmatprep.subr.mxu0 0.0
        %v3316 = vand.u32 %v597, 4294901760
        %3317 = vmatpush1.msra.mxu0 %v3316
        %3318 = vmatprep.subr.mxu0 0.0
        %v3319 = vand.u32 %v594, 4294901760
        %3320 = vmatpush1.msra.mxu0 %v3319
        %3321 = vmatprep.subr.mxu0 0.0
        %v3322 = vand.u32 %v591, 4294901760
        %3323 = vmatpush1.msra.mxu0 %v3322
        %3324 = vmatprep.subr.mxu0 0.0
        %v3325 = vand.u32 %v588, 4294901760
        %3326 = vmatpush1.msra.mxu0 %v3325
        %3327 = vmatprep.subr.mxu0 0.0
        %v3328 = vand.u32 %v585, 4294901760
        %3329 = vmatpush1.msra.mxu0 %v3328
        %3330 = vmatprep.subr.mxu0 0.0
        %v3331 = vand.u32 %v582, 4294901760
        %3332 = vmatpush1.msra.mxu0 %v3331
        %3333 = vmatprep.subr.mxu0 0.0
        %v3334 = vand.u32 %v579, 4294901760
        %3335 = vmatpush1.msra.mxu0 %v3334
        %3336 = vmatprep.subr.mxu0 0.0
        %v3337 = vand.u32 %v576, 4294901760
        %3338 = vmatpush1.msra.mxu0 %v3337
        %3339 = vmatprep.subr.mxu0 0.0
        %v3340 = vand.u32 %v573, 4294901760
        %3341 = vmatpush1.msra.mxu0 %v3340
        %3342 = vmatprep.subr.mxu0 0.0
        %v3343 = vand.u32 %v570, 4294901760
        %3344 = vmatpush1.msra.mxu0 %v3343
        %3345 = vmatprep.subr.mxu0 0.0
        %v3346 = vand.u32 %v567, 4294901760
        %3347 = vmatpush1.msra.mxu0 %v3346
        %3348 = vmatprep.subr.mxu0 0.0
        %v3349 = vand.u32 %v564, 4294901760
        %3350 = vmatpush1.msra.mxu0 %v3349
        %3351 = vmatprep.subr.mxu0 0.0
        %v3352 = vand.u32 %v561, 4294901760
        %3353 = vmatpush1.msra.mxu0 %v3352
        %3354 = vmatprep.subr.mxu0 0.0
        %v3355 = vand.u32 %v558, 4294901760
        %3356 = vmatpush1.msra.mxu0 %v3355
        %3357 = vmatprep.subr.mxu0 0.0
        %v3358 = vand.u32 %v555, 4294901760
        %3359 = vmatpush1.msra.mxu0 %v3358
        %3360 = vmatprep.subr.mxu0 0.0
        %v3361 = vand.u32 %v552, 4294901760
        %3362 = vmatpush1.msra.mxu0 %v3361
        %3363 = vmatprep.subr.mxu0 0.0
        %v3364 = vand.u32 %v645, 4294901760
        %3365 = vmatpush2.msra.mxu0 %v3364
        %3366 = vmatprep.subr.mxu0 0.0
        %v3367 = vand.u32 %v642, 4294901760
        %3368 = vmatpush2.msra.mxu0 %v3367
        %3369 = vmatprep.subr.mxu0 0.0
        %v3370 = vand.u32 %v639, 4294901760
        %3371 = vmatpush2.msra.mxu0 %v3370
        %3372 = vmatprep.subr.mxu0 0.0
        %v3373 = vand.u32 %v636, 4294901760
        %3374 = vmatpush2.msra.mxu0 %v3373
        %3375 = vmatprep.subr.mxu0 0.0
        %v3376 = vand.u32 %v633, 4294901760
        %3377 = vmatpush2.msra.mxu0 %v3376
        %3378 = vmatprep.subr.mxu0 0.0
        %v3379 = vand.u32 %v630, 4294901760
        %3380 = vmatpush2.msra.mxu0 %v3379
        %3381 = vmatprep.subr.mxu0 0.0
        %v3382 = vand.u32 %v627, 4294901760
        %3383 = vmatpush2.msra.mxu0 %v3382
        %3384 = vmatprep.subr.mxu0 0.0
        %v3385 = vand.u32 %v624, 4294901760
        %3386 = vmatpush2.msra.mxu0 %v3385
        %3387 = vmatprep.subr.mxu0 0.0
        %v3388 = vand.u32 %v621, 4294901760
        %3389 = vmatpush2.msra.mxu0 %v3388
        %3390 = vmatprep.subr.mxu0 0.0
        %v3391 = vand.u32 %v618, 4294901760
        %3392 = vmatpush2.msra.mxu0 %v3391
        %3393 = vmatprep.subr.mxu0 0.0
        %v3394 = vand.u32 %v615, 4294901760
        %3395 = vmatpush2.msra.mxu0 %v3394
        %3396 = vmatprep.subr.mxu0 0.0
        %v3397 = vand.u32 %v612, 4294901760
        %3398 = vmatpush2.msra.mxu0 %v3397
        %3399 = vmatprep.subr.mxu0 0.0
        %v3400 = vand.u32 %v609, 4294901760
        %3401 = vmatpush2.msra.mxu0 %v3400
        %3402 = vmatprep.subr.mxu0 0.0
        %v3403 = vand.u32 %v606, 4294901760
        %3404 = vmatpush2.msra.mxu0 %v3403
        %3405 = vmatprep.subr.mxu0 0.0
        %v3406 = vand.u32 %v603, 4294901760
        %3407 = vmatpush2.msra.mxu0 %v3406
        %3408 = vmatprep.subr.mxu0 0.0
        %v3409 = vand.u32 %v600, 4294901760
        %3410 = vmatpush2.msra.mxu0 %v3409
        %v3411 = vand.u32 %v199, 4294901760
        %v3412 = vsub.f32 %v199, %v3411
        %v3413 = vand.u32 %v3412, 4294901760
        %3414 = vmatprep.mubr.f32.mxu0 %v3413
        %v3415 = vand.u32 %v198, 4294901760
        %v3416 = vsub.f32 %v198, %v3415
        %v3417 = vand.u32 %v3416, 4294901760
        %3418 = vmatmul.mubr.f32.gmra.mxu0 %v3417
        %v3419 = vpop.f32.mrf.mxu0
        %v3420 = vadd.f32 %v3312, %v3419
        %v3421 = vpop.f32.mrf.mxu0
        %3422 = vdwg.mxu0
        %3423 = vmatprep.subr.mxu0 0.0
        %v3424 = vand.u32 %v597, 4294901760
        %v3425 = vsub.f32 %v597, %v3424
        %v3426 = vand.u32 %v3425, 4294901760
        %3427 = vmatpush1.msra.mxu0 %v3426
        %3428 = vmatprep.subr.mxu0 0.0
        %v3429 = vand.u32 %v594, 4294901760
        %v3430 = vsub.f32 %v594, %v3429
        %v3431 = vand.u32 %v3430, 4294901760
        %3432 = vmatpush1.msra.mxu0 %v3431
        %3433 = vmatprep.subr.mxu0 0.0
        %v3434 = vand.u32 %v591, 4294901760
        %v3435 = vsub.f32 %v591, %v3434
        %v3436 = vand.u32 %v3435, 4294901760
        %3437 = vmatpush1.msra.mxu0 %v3436
        %3438 = vmatprep.subr.mxu0 0.0
        %v3439 = vand.u32 %v588, 4294901760
        %v3440 = vsub.f32 %v588, %v3439
        %v3441 = vand.u32 %v3440, 4294901760
        %3442 = vmatpush1.msra.mxu0 %v3441
        %3443 = vmatprep.subr.mxu0 0.0
        %v3444 = vand.u32 %v585, 4294901760
        %v3445 = vsub.f32 %v585, %v3444
        %v3446 = vand.u32 %v3445, 4294901760
        %3447 = vmatpush1.msra.mxu0 %v3446
        %3448 = vmatprep.subr.mxu0 0.0
        %v3449 = vand.u32 %v582, 4294901760
        %v3450 = vsub.f32 %v582, %v3449
        %v3451 = vand.u32 %v3450, 4294901760
        %3452 = vmatpush1.msra.mxu0 %v3451
        %3453 = vmatprep.subr.mxu0 0.0
        %v3454 = vand.u32 %v579, 4294901760
        %v3455 = vsub.f32 %v579, %v3454
        %v3456 = vand.u32 %v3455, 4294901760
        %3457 = vmatpush1.msra.mxu0 %v3456
        %3458 = vmatprep.subr.mxu0 0.0
        %v3459 = vand.u32 %v576, 4294901760
        %v3460 = vsub.f32 %v576, %v3459
        %v3461 = vand.u32 %v3460, 4294901760
        %3462 = vmatpush1.msra.mxu0 %v3461
        %3463 = vmatprep.subr.mxu0 0.0
        %v3464 = vand.u32 %v573, 4294901760
        %v3465 = vsub.f32 %v573, %v3464
        %v3466 = vand.u32 %v3465, 4294901760
        %3467 = vmatpush1.msra.mxu0 %v3466
        %3468 = vmatprep.subr.mxu0 0.0
        %v3469 = vand.u32 %v570, 4294901760
        %v3470 = vsub.f32 %v570, %v3469
        %v3471 = vand.u32 %v3470, 4294901760
        %3472 = vmatpush1.msra.mxu0 %v3471
        %3473 = vmatprep.subr.mxu0 0.0
        %v3474 = vand.u32 %v567, 4294901760
        %v3475 = vsub.f32 %v567, %v3474
        %v3476 = vand.u32 %v3475, 4294901760
        %3477 = vmatpush1.msra.mxu0 %v3476
        %3478 = vmatprep.subr.mxu0 0.0
        %v3479 = vand.u32 %v564, 4294901760
        %v3480 = vsub.f32 %v564, %v3479
        %v3481 = vand.u32 %v3480, 4294901760
        %3482 = vmatpush1.msra.mxu0 %v3481
        %3483 = vmatprep.subr.mxu0 0.0
        %v3484 = vand.u32 %v561, 4294901760
        %v3485 = vsub.f32 %v561, %v3484
        %v3486 = vand.u32 %v3485, 4294901760
        %3487 = vmatpush1.msra.mxu0 %v3486
        %3488 = vmatprep.subr.mxu0 0.0
        %v3489 = vand.u32 %v558, 4294901760
        %v3490 = vsub.f32 %v558, %v3489
        %v3491 = vand.u32 %v3490, 4294901760
        %3492 = vmatpush1.msra.mxu0 %v3491
        %3493 = vmatprep.subr.mxu0 0.0
        %v3494 = vand.u32 %v555, 4294901760
        %v3495 = vsub.f32 %v555, %v3494
        %v3496 = vand.u32 %v3495, 4294901760
        %3497 = vmatpush1.msra.mxu0 %v3496
        %3498 = vmatprep.subr.mxu0 0.0
        %v3499 = vand.u32 %v552, 4294901760
        %v3500 = vsub.f32 %v552, %v3499
        %v3501 = vand.u32 %v3500, 4294901760
        %3502 = vmatpush1.msra.mxu0 %v3501
        %3503 = vmatprep.subr.mxu0 0.0
        %v3504 = vand.u32 %v645, 4294901760
        %v3505 = vsub.f32 %v645, %v3504
        %v3506 = vand.u32 %v3505, 4294901760
        %3507 = vmatpush2.msra.mxu0 %v3506
        %3508 = vmatprep.subr.mxu0 0.0
        %v3509 = vand.u32 %v642, 4294901760
        %v3510 = vsub.f32 %v642, %v3509
        %v3511 = vand.u32 %v3510, 4294901760
        %3512 = vmatpush2.msra.mxu0 %v3511
        %3513 = vmatprep.subr.mxu0 0.0
        %v3514 = vand.u32 %v639, 4294901760
        %v3515 = vsub.f32 %v639, %v3514
        %v3516 = vand.u32 %v3515, 4294901760
        %3517 = vmatpush2.msra.mxu0 %v3516
        %3518 = vmatprep.subr.mxu0 0.0
        %v3519 = vand.u32 %v636, 4294901760
        %v3520 = vsub.f32 %v636, %v3519
        %v3521 = vand.u32 %v3520, 4294901760
        %3522 = vmatpush2.msra.mxu0 %v3521
        %3523 = vmatprep.subr.mxu0 0.0
        %v3524 = vand.u32 %v633, 4294901760
        %v3525 = vsub.f32 %v633, %v3524
        %v3526 = vand.u32 %v3525, 4294901760
        %3527 = vmatpush2.msra.mxu0 %v3526
        %3528 = vmatprep.subr.mxu0 0.0
        %v3529 = vand.u32 %v630, 4294901760
        %v3530 = vsub.f32 %v630, %v3529
        %v3531 = vand.u32 %v3530, 4294901760
        %3532 = vmatpush2.msra.mxu0 %v3531
        %3533 = vmatprep.subr.mxu0 0.0
        %v3534 = vand.u32 %v627, 4294901760
        %v3535 = vsub.f32 %v627, %v3534
        %v3536 = vand.u32 %v3535, 4294901760
        %3537 = vmatpush2.msra.mxu0 %v3536
        %3538 = vmatprep.subr.mxu0 0.0
        %v3539 = vand.u32 %v624, 4294901760
        %v3540 = vsub.f32 %v624, %v3539
        %v3541 = vand.u32 %v3540, 4294901760
        %3542 = vmatpush2.msra.mxu0 %v3541
        %3543 = vmatprep.subr.mxu0 0.0
        %v3544 = vand.u32 %v621, 4294901760
        %v3545 = vsub.f32 %v621, %v3544
        %v3546 = vand.u32 %v3545, 4294901760
        %3547 = vmatpush2.msra.mxu0 %v3546
        %3548 = vmatprep.subr.mxu0 0.0
        %v3549 = vand.u32 %v618, 4294901760
        %v3550 = vsub.f32 %v618, %v3549
        %v3551 = vand.u32 %v3550, 4294901760
        %3552 = vmatpush2.msra.mxu0 %v3551
        %3553 = vmatprep.subr.mxu0 0.0
        %v3554 = vand.u32 %v615, 4294901760
        %v3555 = vsub.f32 %v615, %v3554
        %v3556 = vand.u32 %v3555, 4294901760
        %3557 = vmatpush2.msra.mxu0 %v3556
        %3558 = vmatprep.subr.mxu0 0.0
        %v3559 = vand.u32 %v612, 4294901760
        %v3560 = vsub.f32 %v612, %v3559
        %v3561 = vand.u32 %v3560, 4294901760
        %3562 = vmatpush2.msra.mxu0 %v3561
        %3563 = vmatprep.subr.mxu0 0.0
        %v3564 = vand.u32 %v609, 4294901760
        %v3565 = vsub.f32 %v609, %v3564
        %v3566 = vand.u32 %v3565, 4294901760
        %3567 = vmatpush2.msra.mxu0 %v3566
        %3568 = vmatprep.subr.mxu0 0.0
        %v3569 = vand.u32 %v606, 4294901760
        %v3570 = vsub.f32 %v606, %v3569
        %v3571 = vand.u32 %v3570, 4294901760
        %3572 = vmatpush2.msra.mxu0 %v3571
        %3573 = vmatprep.subr.mxu0 0.0
        %v3574 = vand.u32 %v603, 4294901760
        %v3575 = vsub.f32 %v603, %v3574
        %v3576 = vand.u32 %v3575, 4294901760
        %3577 = vmatpush2.msra.mxu0 %v3576
        %3578 = vmatprep.subr.mxu0 0.0
        %v3579 = vand.u32 %v600, 4294901760
        %v3580 = vsub.f32 %v600, %v3579
        %v3581 = vand.u32 %v3580, 4294901760
        %3582 = vmatpush2.msra.mxu0 %v3581
        %v3583 = vand.u32 %v199, 4294901760
        %3584 = vmatprep.mubr.f32.mxu0 %v3583
        %v3585 = vand.u32 %v198, 4294901760
        %3586 = vmatmul.mubr.f32.gmra.mxu0 %v3585
        %v3587 = vpop.f32.mrf.mxu0
        %v3588 = vadd.f32 %v3420, %v3587
        %v3589 = vpop.f32.mrf.mxu0
        %3590 = vdwg.mxu0
        %3591 = vmatprep.subr.mxu0 0.0
        %v3592 = vand.u32 %v597, 4294901760
        %3593 = vmatpush1.msra.mxu0 %v3592
        %3594 = vmatprep.subr.mxu0 0.0
        %v3595 = vand.u32 %v594, 4294901760
        %3596 = vmatpush1.msra.mxu0 %v3595
        %3597 = vmatprep.subr.mxu0 0.0
        %v3598 = vand.u32 %v591, 4294901760
        %3599 = vmatpush1.msra.mxu0 %v3598
        %3600 = vmatprep.subr.mxu0 0.0
        %v3601 = vand.u32 %v588, 4294901760
        %3602 = vmatpush1.msra.mxu0 %v3601
        %3603 = vmatprep.subr.mxu0 0.0
        %v3604 = vand.u32 %v585, 4294901760
        %3605 = vmatpush1.msra.mxu0 %v3604
        %3606 = vmatprep.subr.mxu0 0.0
        %v3607 = vand.u32 %v582, 4294901760
        %3608 = vmatpush1.msra.mxu0 %v3607
        %3609 = vmatprep.subr.mxu0 0.0
        %v3610 = vand.u32 %v579, 4294901760
        %3611 = vmatpush1.msra.mxu0 %v3610
        %3612 = vmatprep.subr.mxu0 0.0
        %v3613 = vand.u32 %v576, 4294901760
        %3614 = vmatpush1.msra.mxu0 %v3613
        %3615 = vmatprep.subr.mxu0 0.0
        %v3616 = vand.u32 %v573, 4294901760
        %3617 = vmatpush1.msra.mxu0 %v3616
        %3618 = vmatprep.subr.mxu0 0.0
        %v3619 = vand.u32 %v570, 4294901760
        %3620 = vmatpush1.msra.mxu0 %v3619
        %3621 = vmatprep.subr.mxu0 0.0
        %v3622 = vand.u32 %v567, 4294901760
        %3623 = vmatpush1.msra.mxu0 %v3622
        %3624 = vmatprep.subr.mxu0 0.0
        %v3625 = vand.u32 %v564, 4294901760
        %3626 = vmatpush1.msra.mxu0 %v3625
        %3627 = vmatprep.subr.mxu0 0.0
        %v3628 = vand.u32 %v561, 4294901760
        %3629 = vmatpush1.msra.mxu0 %v3628
        %3630 = vmatprep.subr.mxu0 0.0
        %v3631 = vand.u32 %v558, 4294901760
        %3632 = vmatpush1.msra.mxu0 %v3631
        %3633 = vmatprep.subr.mxu0 0.0
        %v3634 = vand.u32 %v555, 4294901760
        %3635 = vmatpush1.msra.mxu0 %v3634
        %3636 = vmatprep.subr.mxu0 0.0
        %v3637 = vand.u32 %v552, 4294901760
        %3638 = vmatpush1.msra.mxu0 %v3637
        %3639 = vmatprep.subr.mxu0 0.0
        %v3640 = vand.u32 %v645, 4294901760
        %3641 = vmatpush2.msra.mxu0 %v3640
        %3642 = vmatprep.subr.mxu0 0.0
        %v3643 = vand.u32 %v642, 4294901760
        %3644 = vmatpush2.msra.mxu0 %v3643
        %3645 = vmatprep.subr.mxu0 0.0
        %v3646 = vand.u32 %v639, 4294901760
        %3647 = vmatpush2.msra.mxu0 %v3646
        %3648 = vmatprep.subr.mxu0 0.0
        %v3649 = vand.u32 %v636, 4294901760
        %3650 = vmatpush2.msra.mxu0 %v3649
        %3651 = vmatprep.subr.mxu0 0.0
        %v3652 = vand.u32 %v633, 4294901760
        %3653 = vmatpush2.msra.mxu0 %v3652
        %3654 = vmatprep.subr.mxu0 0.0
        %v3655 = vand.u32 %v630, 4294901760
        %3656 = vmatpush2.msra.mxu0 %v3655
        %3657 = vmatprep.subr.mxu0 0.0
        %v3658 = vand.u32 %v627, 4294901760
        %3659 = vmatpush2.msra.mxu0 %v3658
        %3660 = vmatprep.subr.mxu0 0.0
        %v3661 = vand.u32 %v624, 4294901760
        %3662 = vmatpush2.msra.mxu0 %v3661
        %3663 = vmatprep.subr.mxu0 0.0
        %v3664 = vand.u32 %v621, 4294901760
        %3665 = vmatpush2.msra.mxu0 %v3664
        %3666 = vmatprep.subr.mxu0 0.0
        %v3667 = vand.u32 %v618, 4294901760
        %3668 = vmatpush2.msra.mxu0 %v3667
        %3669 = vmatprep.subr.mxu0 0.0
        %v3670 = vand.u32 %v615, 4294901760
        %3671 = vmatpush2.msra.mxu0 %v3670
        %3672 = vmatprep.subr.mxu0 0.0
        %v3673 = vand.u32 %v612, 4294901760
        %3674 = vmatpush2.msra.mxu0 %v3673
        %3675 = vmatprep.subr.mxu0 0.0
        %v3676 = vand.u32 %v609, 4294901760
        %3677 = vmatpush2.msra.mxu0 %v3676
        %3678 = vmatprep.subr.mxu0 0.0
        %v3679 = vand.u32 %v606, 4294901760
        %3680 = vmatpush2.msra.mxu0 %v3679
        %3681 = vmatprep.subr.mxu0 0.0
        %v3682 = vand.u32 %v603, 4294901760
        %3683 = vmatpush2.msra.mxu0 %v3682
        %3684 = vmatprep.subr.mxu0 0.0
        %v3685 = vand.u32 %v600, 4294901760
        %3686 = vmatpush2.msra.mxu0 %v3685
        %v3687 = vand.u32 %v199, 4294901760
        %3688 = vmatprep.mubr.f32.mxu0 %v3687
        %v3689 = vand.u32 %v198, 4294901760
        %3690 = vmatmul.mubr.f32.gmra.mxu0 %v3689
        %v3691 = vpop.f32.mrf.mxu0
        %v3692 = vadd.f32 %v3588, %v3691
        %v3693 = vpop.f32.mrf.mxu0
        %3694 = vdwg.mxu0
        %3695 = vmatprep.subr.mxu0 0.0
        %v3696 = vand.u32 %v693, 4294901760
        %3697 = vmatpush1.msra.mxu0 %v3696
        %3698 = vmatprep.subr.mxu0 0.0
        %v3699 = vand.u32 %v690, 4294901760
        %3700 = vmatpush1.msra.mxu0 %v3699
        %3701 = vmatprep.subr.mxu0 0.0
        %v3702 = vand.u32 %v687, 4294901760
        %3703 = vmatpush1.msra.mxu0 %v3702
        %3704 = vmatprep.subr.mxu0 0.0
        %v3705 = vand.u32 %v684, 4294901760
        %3706 = vmatpush1.msra.mxu0 %v3705
        %3707 = vmatprep.subr.mxu0 0.0
        %v3708 = vand.u32 %v681, 4294901760
        %3709 = vmatpush1.msra.mxu0 %v3708
        %3710 = vmatprep.subr.mxu0 0.0
        %v3711 = vand.u32 %v678, 4294901760
        %3712 = vmatpush1.msra.mxu0 %v3711
        %3713 = vmatprep.subr.mxu0 0.0
        %v3714 = vand.u32 %v675, 4294901760
        %3715 = vmatpush1.msra.mxu0 %v3714
        %3716 = vmatprep.subr.mxu0 0.0
        %v3717 = vand.u32 %v672, 4294901760
        %3718 = vmatpush1.msra.mxu0 %v3717
        %3719 = vmatprep.subr.mxu0 0.0
        %v3720 = vand.u32 %v669, 4294901760
        %3721 = vmatpush1.msra.mxu0 %v3720
        %3722 = vmatprep.subr.mxu0 0.0
        %v3723 = vand.u32 %v666, 4294901760
        %3724 = vmatpush1.msra.mxu0 %v3723
        %3725 = vmatprep.subr.mxu0 0.0
        %v3726 = vand.u32 %v663, 4294901760
        %3727 = vmatpush1.msra.mxu0 %v3726
        %3728 = vmatprep.subr.mxu0 0.0
        %v3729 = vand.u32 %v660, 4294901760
        %3730 = vmatpush1.msra.mxu0 %v3729
        %3731 = vmatprep.subr.mxu0 0.0
        %v3732 = vand.u32 %v657, 4294901760
        %3733 = vmatpush1.msra.mxu0 %v3732
        %3734 = vmatprep.subr.mxu0 0.0
        %v3735 = vand.u32 %v654, 4294901760
        %3736 = vmatpush1.msra.mxu0 %v3735
        %3737 = vmatprep.subr.mxu0 0.0
        %v3738 = vand.u32 %v651, 4294901760
        %3739 = vmatpush1.msra.mxu0 %v3738
        %3740 = vmatprep.subr.mxu0 0.0
        %v3741 = vand.u32 %v648, 4294901760
        %3742 = vmatpush1.msra.mxu0 %v3741
        %3743 = vmatprep.subr.mxu0 0.0
        %3744 = vmatpush2.msra.mxu0 0.0
        %3745 = vmatprep.subr.mxu0 0.0
        %3746 = vmatpush2.msra.mxu0 0.0
        %3747 = vmatprep.subr.mxu0 0.0
        %3748 = vmatpush2.msra.mxu0 0.0
        %3749 = vmatprep.subr.mxu0 0.0
        %3750 = vmatpush2.msra.mxu0 0.0
        %3751 = vmatprep.subr.mxu0 0.0
        %3752 = vmatpush2.msra.mxu0 0.0
        %3753 = vmatprep.subr.mxu0 0.0
        %3754 = vmatpush2.msra.mxu0 0.0
        %3755 = vmatprep.subr.mxu0 0.0
        %3756 = vmatpush2.msra.mxu0 0.0
        %3757 = vmatprep.subr.mxu0 0.0
        %3758 = vmatpush2.msra.mxu0 0.0
        %3759 = vmatprep.subr.mxu0 0.0
        %3760 = vmatpush2.msra.mxu0 0.0
        %3761 = vmatprep.subr.mxu0 0.0
        %3762 = vmatpush2.msra.mxu0 0.0
        %3763 = vmatprep.subr.mxu0 0.0
        %3764 = vmatpush2.msra.mxu0 0.0
        %3765 = vmatprep.subr.mxu0 0.0
        %3766 = vmatpush2.msra.mxu0 0.0
        %3767 = vmatprep.subr.mxu0 0.0
        %3768 = vmatpush2.msra.mxu0 0.0
        %3769 = vmatprep.subr.mxu0 0.0
        %3770 = vmatpush2.msra.mxu0 0.0
        %3771 = vmatprep.subr.mxu0 0.0
        %3772 = vmatpush2.msra.mxu0 0.0
        %3773 = vmatprep.subr.mxu0 0.0
        %3774 = vmatpush2.msra.mxu0 0.0
        %3775 = vmatprep.mubr.f32.mxu0 0.0
        %v3776 = vand.u32 %v200, 4294901760
        %v3777 = vsub.f32 %v200, %v3776
        %v3778 = vand.u32 %v3777, 4294901760
        %v3779 = vsub.f32 %v3777, %v3778
        %v3780 = vand.u32 %v3779, 4294901760
        %3781 = vmatmul.mubr.f32.gmra.mxu0 %v3780
        %v3782 = vpop.f32.mrf.mxu0
        %v3783 = vadd.f32 %v3692, %v3782
        %v3784 = vpop.f32.mrf.mxu0
        %3785 = vdwg.mxu0
        %3786 = vmatprep.subr.mxu0 0.0
        %v3787 = vand.u32 %v693, 4294901760
        %v3788 = vsub.f32 %v693, %v3787
        %v3789 = vand.u32 %v3788, 4294901760
        %v3790 = vsub.f32 %v3788, %v3789
        %v3791 = vand.u32 %v3790, 4294901760
        %3792 = vmatpush1.msra.mxu0 %v3791
        %3793 = vmatprep.subr.mxu0 0.0
        %v3794 = vand.u32 %v690, 4294901760
        %v3795 = vsub.f32 %v690, %v3794
        %v3796 = vand.u32 %v3795, 4294901760
        %v3797 = vsub.f32 %v3795, %v3796
        %v3798 = vand.u32 %v3797, 4294901760
        %3799 = vmatpush1.msra.mxu0 %v3798
        %3800 = vmatprep.subr.mxu0 0.0
        %v3801 = vand.u32 %v687, 4294901760
        %v3802 = vsub.f32 %v687, %v3801
        %v3803 = vand.u32 %v3802, 4294901760
        %v3804 = vsub.f32 %v3802, %v3803
        %v3805 = vand.u32 %v3804, 4294901760
        %3806 = vmatpush1.msra.mxu0 %v3805
        %3807 = vmatprep.subr.mxu0 0.0
        %v3808 = vand.u32 %v684, 4294901760
        %v3809 = vsub.f32 %v684, %v3808
        %v3810 = vand.u32 %v3809, 4294901760
        %v3811 = vsub.f32 %v3809, %v3810
        %v3812 = vand.u32 %v3811, 4294901760
        %3813 = vmatpush1.msra.mxu0 %v3812
        %3814 = vmatprep.subr.mxu0 0.0
        %v3815 = vand.u32 %v681, 4294901760
        %v3816 = vsub.f32 %v681, %v3815
        %v3817 = vand.u32 %v3816, 4294901760
        %v3818 = vsub.f32 %v3816, %v3817
        %v3819 = vand.u32 %v3818, 4294901760
        %3820 = vmatpush1.msra.mxu0 %v3819
        %3821 = vmatprep.subr.mxu0 0.0
        %v3822 = vand.u32 %v678, 4294901760
        %v3823 = vsub.f32 %v678, %v3822
        %v3824 = vand.u32 %v3823, 4294901760
        %v3825 = vsub.f32 %v3823, %v3824
        %v3826 = vand.u32 %v3825, 4294901760
        %3827 = vmatpush1.msra.mxu0 %v3826
        %3828 = vmatprep.subr.mxu0 0.0
        %v3829 = vand.u32 %v675, 4294901760
        %v3830 = vsub.f32 %v675, %v3829
        %v3831 = vand.u32 %v3830, 4294901760
        %v3832 = vsub.f32 %v3830, %v3831
        %v3833 = vand.u32 %v3832, 4294901760
        %3834 = vmatpush1.msra.mxu0 %v3833
        %3835 = vmatprep.subr.mxu0 0.0
        %v3836 = vand.u32 %v672, 4294901760
        %v3837 = vsub.f32 %v672, %v3836
        %v3838 = vand.u32 %v3837, 4294901760
        %v3839 = vsub.f32 %v3837, %v3838
        %v3840 = vand.u32 %v3839, 4294901760
        %3841 = vmatpush1.msra.mxu0 %v3840
        %3842 = vmatprep.subr.mxu0 0.0
        %v3843 = vand.u32 %v669, 4294901760
        %v3844 = vsub.f32 %v669, %v3843
        %v3845 = vand.u32 %v3844, 4294901760
        %v3846 = vsub.f32 %v3844, %v3845
        %v3847 = vand.u32 %v3846, 4294901760
        %3848 = vmatpush1.msra.mxu0 %v3847
        %3849 = vmatprep.subr.mxu0 0.0
        %v3850 = vand.u32 %v666, 4294901760
        %v3851 = vsub.f32 %v666, %v3850
        %v3852 = vand.u32 %v3851, 4294901760
        %v3853 = vsub.f32 %v3851, %v3852
        %v3854 = vand.u32 %v3853, 4294901760
        %3855 = vmatpush1.msra.mxu0 %v3854
        %3856 = vmatprep.subr.mxu0 0.0
        %v3857 = vand.u32 %v663, 4294901760
        %v3858 = vsub.f32 %v663, %v3857
        %v3859 = vand.u32 %v3858, 4294901760
        %v3860 = vsub.f32 %v3858, %v3859
        %v3861 = vand.u32 %v3860, 4294901760
        %3862 = vmatpush1.msra.mxu0 %v3861
        %3863 = vmatprep.subr.mxu0 0.0
        %v3864 = vand.u32 %v660, 4294901760
        %v3865 = vsub.f32 %v660, %v3864
        %v3866 = vand.u32 %v3865, 4294901760
        %v3867 = vsub.f32 %v3865, %v3866
        %v3868 = vand.u32 %v3867, 4294901760
        %3869 = vmatpush1.msra.mxu0 %v3868
        %3870 = vmatprep.subr.mxu0 0.0
        %v3871 = vand.u32 %v657, 4294901760
        %v3872 = vsub.f32 %v657, %v3871
        %v3873 = vand.u32 %v3872, 4294901760
        %v3874 = vsub.f32 %v3872, %v3873
        %v3875 = vand.u32 %v3874, 4294901760
        %3876 = vmatpush1.msra.mxu0 %v3875
        %3877 = vmatprep.subr.mxu0 0.0
        %v3878 = vand.u32 %v654, 4294901760
        %v3879 = vsub.f32 %v654, %v3878
        %v3880 = vand.u32 %v3879, 4294901760
        %v3881 = vsub.f32 %v3879, %v3880
        %v3882 = vand.u32 %v3881, 4294901760
        %3883 = vmatpush1.msra.mxu0 %v3882
        %3884 = vmatprep.subr.mxu0 0.0
        %v3885 = vand.u32 %v651, 4294901760
        %v3886 = vsub.f32 %v651, %v3885
        %v3887 = vand.u32 %v3886, 4294901760
        %v3888 = vsub.f32 %v3886, %v3887
        %v3889 = vand.u32 %v3888, 4294901760
        %3890 = vmatpush1.msra.mxu0 %v3889
        %3891 = vmatprep.subr.mxu0 0.0
        %v3892 = vand.u32 %v648, 4294901760
        %v3893 = vsub.f32 %v648, %v3892
        %v3894 = vand.u32 %v3893, 4294901760
        %v3895 = vsub.f32 %v3893, %v3894
        %v3896 = vand.u32 %v3895, 4294901760
        %3897 = vmatpush1.msra.mxu0 %v3896
        %3898 = vmatprep.subr.mxu0 0.0
        %3899 = vmatpush2.msra.mxu0 0.0
        %3900 = vmatprep.subr.mxu0 0.0
        %3901 = vmatpush2.msra.mxu0 0.0
        %3902 = vmatprep.subr.mxu0 0.0
        %3903 = vmatpush2.msra.mxu0 0.0
        %3904 = vmatprep.subr.mxu0 0.0
        %3905 = vmatpush2.msra.mxu0 0.0
        %3906 = vmatprep.subr.mxu0 0.0
        %3907 = vmatpush2.msra.mxu0 0.0
        %3908 = vmatprep.subr.mxu0 0.0
        %3909 = vmatpush2.msra.mxu0 0.0
        %3910 = vmatprep.subr.mxu0 0.0
        %3911 = vmatpush2.msra.mxu0 0.0
        %3912 = vmatprep.subr.mxu0 0.0
        %3913 = vmatpush2.msra.mxu0 0.0
        %3914 = vmatprep.subr.mxu0 0.0
        %3915 = vmatpush2.msra.mxu0 0.0
        %3916 = vmatprep.subr.mxu0 0.0
        %3917 = vmatpush2.msra.mxu0 0.0
        %3918 = vmatprep.subr.mxu0 0.0
        %3919 = vmatpush2.msra.mxu0 0.0
        %3920 = vmatprep.subr.mxu0 0.0
        %3921 = vmatpush2.msra.mxu0 0.0
        %3922 = vmatprep.subr.mxu0 0.0
        %3923 = vmatpush2.msra.mxu0 0.0
        %3924 = vmatprep.subr.mxu0 0.0
        %3925 = vmatpush2.msra.mxu0 0.0
        %3926 = vmatprep.subr.mxu0 0.0
        %3927 = vmatpush2.msra.mxu0 0.0
        %3928 = vmatprep.subr.mxu0 0.0
        %3929 = vmatpush2.msra.mxu0 0.0
        %3930 = vmatprep.mubr.f32.mxu0 0.0
        %v3931 = vand.u32 %v200, 4294901760
        %3932 = vmatmul.mubr.f32.gmra.mxu0 %v3931
        %v3933 = vpop.f32.mrf.mxu0
        %v3934 = vadd.f32 %v3783, %v3933
        %v3935 = vpop.f32.mrf.mxu0
        %3936 = vdwg.mxu0
        %3937 = vmatprep.subr.mxu0 0.0
        %v3938 = vand.u32 %v693, 4294901760
        %v3939 = vsub.f32 %v693, %v3938
        %3940 = vmatpush1.msra.mxu0 %v3939
        %3941 = vmatprep.subr.mxu0 0.0
        %v3942 = vand.u32 %v690, 4294901760
        %v3943 = vsub.f32 %v690, %v3942
        %3944 = vmatpush1.msra.mxu0 %v3943
        %3945 = vmatprep.subr.mxu0 0.0
        %v3946 = vand.u32 %v687, 4294901760
        %v3947 = vsub.f32 %v687, %v3946
        %3948 = vmatpush1.msra.mxu0 %v3947
        %3949 = vmatprep.subr.mxu0 0.0
        %v3950 = vand.u32 %v684, 4294901760
        %v3951 = vsub.f32 %v684, %v3950
        %3952 = vmatpush1.msra.mxu0 %v3951
        %3953 = vmatprep.subr.mxu0 0.0
        %v3954 = vand.u32 %v681, 4294901760
        %v3955 = vsub.f32 %v681, %v3954
        %3956 = vmatpush1.msra.mxu0 %v3955
        %3957 = vmatprep.subr.mxu0 0.0
        %v3958 = vand.u32 %v678, 4294901760
        %v3959 = vsub.f32 %v678, %v3958
        %3960 = vmatpush1.msra.mxu0 %v3959
        %3961 = vmatprep.subr.mxu0 0.0
        %v3962 = vand.u32 %v675, 4294901760
        %v3963 = vsub.f32 %v675, %v3962
        %3964 = vmatpush1.msra.mxu0 %v3963
        %3965 = vmatprep.subr.mxu0 0.0
        %v3966 = vand.u32 %v672, 4294901760
        %v3967 = vsub.f32 %v672, %v3966
        %3968 = vmatpush1.msra.mxu0 %v3967
        %3969 = vmatprep.subr.mxu0 0.0
        %v3970 = vand.u32 %v669, 4294901760
        %v3971 = vsub.f32 %v669, %v3970
        %3972 = vmatpush1.msra.mxu0 %v3971
        %3973 = vmatprep.subr.mxu0 0.0
        %v3974 = vand.u32 %v666, 4294901760
        %v3975 = vsub.f32 %v666, %v3974
        %3976 = vmatpush1.msra.mxu0 %v3975
        %3977 = vmatprep.subr.mxu0 0.0
        %v3978 = vand.u32 %v663, 4294901760
        %v3979 = vsub.f32 %v663, %v3978
        %3980 = vmatpush1.msra.mxu0 %v3979
        %3981 = vmatprep.subr.mxu0 0.0
        %v3982 = vand.u32 %v660, 4294901760
        %v3983 = vsub.f32 %v660, %v3982
        %3984 = vmatpush1.msra.mxu0 %v3983
        %3985 = vmatprep.subr.mxu0 0.0
        %v3986 = vand.u32 %v657, 4294901760
        %v3987 = vsub.f32 %v657, %v3986
        %3988 = vmatpush1.msra.mxu0 %v3987
        %3989 = vmatprep.subr.mxu0 0.0
        %v3990 = vand.u32 %v654, 4294901760
        %v3991 = vsub.f32 %v654, %v3990
        %3992 = vmatpush1.msra.mxu0 %v3991
        %3993 = vmatprep.subr.mxu0 0.0
        %v3994 = vand.u32 %v651, 4294901760
        %v3995 = vsub.f32 %v651, %v3994
        %3996 = vmatpush1.msra.mxu0 %v3995
        %3997 = vmatprep.subr.mxu0 0.0
        %v3998 = vand.u32 %v648, 4294901760
        %v3999 = vsub.f32 %v648, %v3998
        %4000 = vmatpush1.msra.mxu0 %v3999
        %4001 = vmatprep.subr.mxu0 0.0
        %4002 = vmatpush2.msra.mxu0 0.0
        %4003 = vmatprep.subr.mxu0 0.0
        %4004 = vmatpush2.msra.mxu0 0.0
        %4005 = vmatprep.subr.mxu0 0.0
        %4006 = vmatpush2.msra.mxu0 0.0
        %4007 = vmatprep.subr.mxu0 0.0
        %4008 = vmatpush2.msra.mxu0 0.0
        %4009 = vmatprep.subr.mxu0 0.0
        %4010 = vmatpush2.msra.mxu0 0.0
        %4011 = vmatprep.subr.mxu0 0.0
        %4012 = vmatpush2.msra.mxu0 0.0
        %4013 = vmatprep.subr.mxu0 0.0
        %4014 = vmatpush2.msra.mxu0 0.0
        %4015 = vmatprep.subr.mxu0 0.0
        %4016 = vmatpush2.msra.mxu0 0.0
        %4017 = vmatprep.subr.mxu0 0.0
        %4018 = vmatpush2.msra.mxu0 0.0
        %4019 = vmatprep.subr.mxu0 0.0
        %4020 = vmatpush2.msra.mxu0 0.0
        %4021 = vmatprep.subr.mxu0 0.0
        %4022 = vmatpush2.msra.mxu0 0.0
        %4023 = vmatprep.subr.mxu0 0.0
        %4024 = vmatpush2.msra.mxu0 0.0
        %4025 = vmatprep.subr.mxu0 0.0
        %4026 = vmatpush2.msra.mxu0 0.0
        %4027 = vmatprep.subr.mxu0 0.0
        %4028 = vmatpush2.msra.mxu0 0.0
        %4029 = vmatprep.subr.mxu0 0.0
        %4030 = vmatpush2.msra.mxu0 0.0
        %4031 = vmatprep.subr.mxu0 0.0
        %4032 = vmatpush2.msra.mxu0 0.0
        %4033 = vmatprep.mubr.f32.mxu0 0.0
        %v4034 = vand.u32 %v200, 4294901760
        %v4035 = vsub.f32 %v200, %v4034
        %4036 = vmatmul.mubr.f32.gmra.mxu0 %v4035
        %v4037 = vpop.f32.mrf.mxu0
        %v4038 = vadd.f32 %v3934, %v4037
        %v4039 = vpop.f32.mrf.mxu0
        %4040 = vdwg.mxu0
        %4041 = vmatprep.subr.mxu0 0.0
        %v4042 = vand.u32 %v693, 4294901760
        %4043 = vmatpush1.msra.mxu0 %v4042
        %4044 = vmatprep.subr.mxu0 0.0
        %v4045 = vand.u32 %v690, 4294901760
        %4046 = vmatpush1.msra.mxu0 %v4045
        %4047 = vmatprep.subr.mxu0 0.0
        %v4048 = vand.u32 %v687, 4294901760
        %4049 = vmatpush1.msra.mxu0 %v4048
        %4050 = vmatprep.subr.mxu0 0.0
        %v4051 = vand.u32 %v684, 4294901760
        %4052 = vmatpush1.msra.mxu0 %v4051
        %4053 = vmatprep.subr.mxu0 0.0
        %v4054 = vand.u32 %v681, 4294901760
        %4055 = vmatpush1.msra.mxu0 %v4054
        %4056 = vmatprep.subr.mxu0 0.0
        %v4057 = vand.u32 %v678, 4294901760
        %4058 = vmatpush1.msra.mxu0 %v4057
        %4059 = vmatprep.subr.mxu0 0.0
        %v4060 = vand.u32 %v675, 4294901760
        %4061 = vmatpush1.msra.mxu0 %v4060
        %4062 = vmatprep.subr.mxu0 0.0
        %v4063 = vand.u32 %v672, 4294901760
        %4064 = vmatpush1.msra.mxu0 %v4063
        %4065 = vmatprep.subr.mxu0 0.0
        %v4066 = vand.u32 %v669, 4294901760
        %4067 = vmatpush1.msra.mxu0 %v4066
        %4068 = vmatprep.subr.mxu0 0.0
        %v4069 = vand.u32 %v666, 4294901760
        %4070 = vmatpush1.msra.mxu0 %v4069
        %4071 = vmatprep.subr.mxu0 0.0
        %v4072 = vand.u32 %v663, 4294901760
        %4073 = vmatpush1.msra.mxu0 %v4072
        %4074 = vmatprep.subr.mxu0 0.0
        %v4075 = vand.u32 %v660, 4294901760
        %4076 = vmatpush1.msra.mxu0 %v4075
        %4077 = vmatprep.subr.mxu0 0.0
        %v4078 = vand.u32 %v657, 4294901760
        %4079 = vmatpush1.msra.mxu0 %v4078
        %4080 = vmatprep.subr.mxu0 0.0
        %v4081 = vand.u32 %v654, 4294901760
        %4082 = vmatpush1.msra.mxu0 %v4081
        %4083 = vmatprep.subr.mxu0 0.0
        %v4084 = vand.u32 %v651, 4294901760
        %4085 = vmatpush1.msra.mxu0 %v4084
        %4086 = vmatprep.subr.mxu0 0.0
        %v4087 = vand.u32 %v648, 4294901760
        %4088 = vmatpush1.msra.mxu0 %v4087
        %4089 = vmatprep.subr.mxu0 0.0
        %4090 = vmatpush2.msra.mxu0 0.0
        %4091 = vmatprep.subr.mxu0 0.0
        %4092 = vmatpush2.msra.mxu0 0.0
        %4093 = vmatprep.subr.mxu0 0.0
        %4094 = vmatpush2.msra.mxu0 0.0
        %4095 = vmatprep.subr.mxu0 0.0
        %4096 = vmatpush2.msra.mxu0 0.0
        %4097 = vmatprep.subr.mxu0 0.0
        %4098 = vmatpush2.msra.mxu0 0.0
        %4099 = vmatprep.subr.mxu0 0.0
        %4100 = vmatpush2.msra.mxu0 0.0
        %4101 = vmatprep.subr.mxu0 0.0
        %4102 = vmatpush2.msra.mxu0 0.0
        %4103 = vmatprep.subr.mxu0 0.0
        %4104 = vmatpush2.msra.mxu0 0.0
        %4105 = vmatprep.subr.mxu0 0.0
        %4106 = vmatpush2.msra.mxu0 0.0
        %4107 = vmatprep.subr.mxu0 0.0
        %4108 = vmatpush2.msra.mxu0 0.0
        %4109 = vmatprep.subr.mxu0 0.0
        %4110 = vmatpush2.msra.mxu0 0.0
        %4111 = vmatprep.subr.mxu0 0.0
        %4112 = vmatpush2.msra.mxu0 0.0
        %4113 = vmatprep.subr.mxu0 0.0
        %4114 = vmatpush2.msra.mxu0 0.0
        %4115 = vmatprep.subr.mxu0 0.0
        %4116 = vmatpush2.msra.mxu0 0.0
        %4117 = vmatprep.subr.mxu0 0.0
        %4118 = vmatpush2.msra.mxu0 0.0
        %4119 = vmatprep.subr.mxu0 0.0
        %4120 = vmatpush2.msra.mxu0 0.0
        %4121 = vmatprep.mubr.f32.mxu0 0.0
        %v4122 = vand.u32 %v200, 4294901760
        %v4123 = vsub.f32 %v200, %v4122
        %v4124 = vand.u32 %v4123, 4294901760
        %4125 = vmatmul.mubr.f32.gmra.mxu0 %v4124
        %v4126 = vpop.f32.mrf.mxu0
        %v4127 = vadd.f32 %v4038, %v4126
        %v4128 = vpop.f32.mrf.mxu0
        %4129 = vdwg.mxu0
        %4130 = vmatprep.subr.mxu0 0.0
        %v4131 = vand.u32 %v693, 4294901760
        %v4132 = vsub.f32 %v693, %v4131
        %v4133 = vand.u32 %v4132, 4294901760
        %4134 = vmatpush1.msra.mxu0 %v4133
        %4135 = vmatprep.subr.mxu0 0.0
        %v4136 = vand.u32 %v690, 4294901760
        %v4137 = vsub.f32 %v690, %v4136
        %v4138 = vand.u32 %v4137, 4294901760
        %4139 = vmatpush1.msra.mxu0 %v4138
        %4140 = vmatprep.subr.mxu0 0.0
        %v4141 = vand.u32 %v687, 4294901760
        %v4142 = vsub.f32 %v687, %v4141
        %v4143 = vand.u32 %v4142, 4294901760
        %4144 = vmatpush1.msra.mxu0 %v4143
        %4145 = vmatprep.subr.mxu0 0.0
        %v4146 = vand.u32 %v684, 4294901760
        %v4147 = vsub.f32 %v684, %v4146
        %v4148 = vand.u32 %v4147, 4294901760
        %4149 = vmatpush1.msra.mxu0 %v4148
        %4150 = vmatprep.subr.mxu0 0.0
        %v4151 = vand.u32 %v681, 4294901760
        %v4152 = vsub.f32 %v681, %v4151
        %v4153 = vand.u32 %v4152, 4294901760
        %4154 = vmatpush1.msra.mxu0 %v4153
        %4155 = vmatprep.subr.mxu0 0.0
        %v4156 = vand.u32 %v678, 4294901760
        %v4157 = vsub.f32 %v678, %v4156
        %v4158 = vand.u32 %v4157, 4294901760
        %4159 = vmatpush1.msra.mxu0 %v4158
        %4160 = vmatprep.subr.mxu0 0.0
        %v4161 = vand.u32 %v675, 4294901760
        %v4162 = vsub.f32 %v675, %v4161
        %v4163 = vand.u32 %v4162, 4294901760
        %4164 = vmatpush1.msra.mxu0 %v4163
        %4165 = vmatprep.subr.mxu0 0.0
        %v4166 = vand.u32 %v672, 4294901760
        %v4167 = vsub.f32 %v672, %v4166
        %v4168 = vand.u32 %v4167, 4294901760
        %4169 = vmatpush1.msra.mxu0 %v4168
        %4170 = vmatprep.subr.mxu0 0.0
        %v4171 = vand.u32 %v669, 4294901760
        %v4172 = vsub.f32 %v669, %v4171
        %v4173 = vand.u32 %v4172, 4294901760
        %4174 = vmatpush1.msra.mxu0 %v4173
        %4175 = vmatprep.subr.mxu0 0.0
        %v4176 = vand.u32 %v666, 4294901760
        %v4177 = vsub.f32 %v666, %v4176
        %v4178 = vand.u32 %v4177, 4294901760
        %4179 = vmatpush1.msra.mxu0 %v4178
        %4180 = vmatprep.subr.mxu0 0.0
        %v4181 = vand.u32 %v663, 4294901760
        %v4182 = vsub.f32 %v663, %v4181
        %v4183 = vand.u32 %v4182, 4294901760
        %4184 = vmatpush1.msra.mxu0 %v4183
        %4185 = vmatprep.subr.mxu0 0.0
        %v4186 = vand.u32 %v660, 4294901760
        %v4187 = vsub.f32 %v660, %v4186
        %v4188 = vand.u32 %v4187, 4294901760
        %4189 = vmatpush1.msra.mxu0 %v4188
        %4190 = vmatprep.subr.mxu0 0.0
        %v4191 = vand.u32 %v657, 4294901760
        %v4192 = vsub.f32 %v657, %v4191
        %v4193 = vand.u32 %v4192, 4294901760
        %4194 = vmatpush1.msra.mxu0 %v4193
        %4195 = vmatprep.subr.mxu0 0.0
        %v4196 = vand.u32 %v654, 4294901760
        %v4197 = vsub.f32 %v654, %v4196
        %v4198 = vand.u32 %v4197, 4294901760
        %4199 = vmatpush1.msra.mxu0 %v4198
        %4200 = vmatprep.subr.mxu0 0.0
        %v4201 = vand.u32 %v651, 4294901760
        %v4202 = vsub.f32 %v651, %v4201
        %v4203 = vand.u32 %v4202, 4294901760
        %4204 = vmatpush1.msra.mxu0 %v4203
        %4205 = vmatprep.subr.mxu0 0.0
        %v4206 = vand.u32 %v648, 4294901760
        %v4207 = vsub.f32 %v648, %v4206
        %v4208 = vand.u32 %v4207, 4294901760
        %4209 = vmatpush1.msra.mxu0 %v4208
        %4210 = vmatprep.subr.mxu0 0.0
        %4211 = vmatpush2.msra.mxu0 0.0
        %4212 = vmatprep.subr.mxu0 0.0
        %4213 = vmatpush2.msra.mxu0 0.0
        %4214 = vmatprep.subr.mxu0 0.0
        %4215 = vmatpush2.msra.mxu0 0.0
        %4216 = vmatprep.subr.mxu0 0.0
        %4217 = vmatpush2.msra.mxu0 0.0
        %4218 = vmatprep.subr.mxu0 0.0
        %4219 = vmatpush2.msra.mxu0 0.0
        %4220 = vmatprep.subr.mxu0 0.0
        %4221 = vmatpush2.msra.mxu0 0.0
        %4222 = vmatprep.subr.mxu0 0.0
        %4223 = vmatpush2.msra.mxu0 0.0
        %4224 = vmatprep.subr.mxu0 0.0
        %4225 = vmatpush2.msra.mxu0 0.0
        %4226 = vmatprep.subr.mxu0 0.0
        %4227 = vmatpush2.msra.mxu0 0.0
        %4228 = vmatprep.subr.mxu0 0.0
        %4229 = vmatpush2.msra.mxu0 0.0
        %4230 = vmatprep.subr.mxu0 0.0
        %4231 = vmatpush2.msra.mxu0 0.0
        %4232 = vmatprep.subr.mxu0 0.0
        %4233 = vmatpush2.msra.mxu0 0.0
        %4234 = vmatprep.subr.mxu0 0.0
        %4235 = vmatpush2.msra.mxu0 0.0
        %4236 = vmatprep.subr.mxu0 0.0
        %4237 = vmatpush2.msra.mxu0 0.0
        %4238 = vmatprep.subr.mxu0 0.0
        %4239 = vmatpush2.msra.mxu0 0.0
        %4240 = vmatprep.subr.mxu0 0.0
        %4241 = vmatpush2.msra.mxu0 0.0
        %4242 = vmatprep.mubr.f32.mxu0 0.0
        %v4243 = vand.u32 %v200, 4294901760
        %4244 = vmatmul.mubr.f32.gmra.mxu0 %v4243
        %v4245 = vpop.f32.mrf.mxu0
        %v4246 = vadd.f32 %v4127, %v4245
        %v4247 = vpop.f32.mrf.mxu0
        %4248 = vdwg.mxu0
        %4249 = vmatprep.subr.mxu0 0.0
        %v4250 = vand.u32 %v693, 4294901760
        %4251 = vmatpush1.msra.mxu0 %v4250
        %4252 = vmatprep.subr.mxu0 0.0
        %v4253 = vand.u32 %v690, 4294901760
        %4254 = vmatpush1.msra.mxu0 %v4253
        %4255 = vmatprep.subr.mxu0 0.0
        %v4256 = vand.u32 %v687, 4294901760
        %4257 = vmatpush1.msra.mxu0 %v4256
        %4258 = vmatprep.subr.mxu0 0.0
        %v4259 = vand.u32 %v684, 4294901760
        %4260 = vmatpush1.msra.mxu0 %v4259
        %4261 = vmatprep.subr.mxu0 0.0
        %v4262 = vand.u32 %v681, 4294901760
        %4263 = vmatpush1.msra.mxu0 %v4262
        %4264 = vmatprep.subr.mxu0 0.0
        %v4265 = vand.u32 %v678, 4294901760
        %4266 = vmatpush1.msra.mxu0 %v4265
        %4267 = vmatprep.subr.mxu0 0.0
        %v4268 = vand.u32 %v675, 4294901760
        %4269 = vmatpush1.msra.mxu0 %v4268
        %4270 = vmatprep.subr.mxu0 0.0
        %v4271 = vand.u32 %v672, 4294901760
        %4272 = vmatpush1.msra.mxu0 %v4271
        %4273 = vmatprep.subr.mxu0 0.0
        %v4274 = vand.u32 %v669, 4294901760
        %4275 = vmatpush1.msra.mxu0 %v4274
        %4276 = vmatprep.subr.mxu0 0.0
        %v4277 = vand.u32 %v666, 4294901760
        %4278 = vmatpush1.msra.mxu0 %v4277
        %4279 = vmatprep.subr.mxu0 0.0
        %v4280 = vand.u32 %v663, 4294901760
        %4281 = vmatpush1.msra.mxu0 %v4280
        %4282 = vmatprep.subr.mxu0 0.0
        %v4283 = vand.u32 %v660, 4294901760
        %4284 = vmatpush1.msra.mxu0 %v4283
        %4285 = vmatprep.subr.mxu0 0.0
        %v4286 = vand.u32 %v657, 4294901760
        %4287 = vmatpush1.msra.mxu0 %v4286
        %4288 = vmatprep.subr.mxu0 0.0
        %v4289 = vand.u32 %v654, 4294901760
        %4290 = vmatpush1.msra.mxu0 %v4289
        %4291 = vmatprep.subr.mxu0 0.0
        %v4292 = vand.u32 %v651, 4294901760
        %4293 = vmatpush1.msra.mxu0 %v4292
        %4294 = vmatprep.subr.mxu0 0.0
        %v4295 = vand.u32 %v648, 4294901760
        %4296 = vmatpush1.msra.mxu0 %v4295
        %4297 = vmatprep.subr.mxu0 0.0
        %4298 = vmatpush2.msra.mxu0 0.0
        %4299 = vmatprep.subr.mxu0 0.0
        %4300 = vmatpush2.msra.mxu0 0.0
        %4301 = vmatprep.subr.mxu0 0.0
        %4302 = vmatpush2.msra.mxu0 0.0
        %4303 = vmatprep.subr.mxu0 0.0
        %4304 = vmatpush2.msra.mxu0 0.0
        %4305 = vmatprep.subr.mxu0 0.0
        %4306 = vmatpush2.msra.mxu0 0.0
        %4307 = vmatprep.subr.mxu0 0.0
        %4308 = vmatpush2.msra.mxu0 0.0
        %4309 = vmatprep.subr.mxu0 0.0
        %4310 = vmatpush2.msra.mxu0 0.0
        %4311 = vmatprep.subr.mxu0 0.0
        %4312 = vmatpush2.msra.mxu0 0.0
        %4313 = vmatprep.subr.mxu0 0.0
        %4314 = vmatpush2.msra.mxu0 0.0
        %4315 = vmatprep.subr.mxu0 0.0
        %4316 = vmatpush2.msra.mxu0 0.0
        %4317 = vmatprep.subr.mxu0 0.0
        %4318 = vmatpush2.msra.mxu0 0.0
        %4319 = vmatprep.subr.mxu0 0.0
        %4320 = vmatpush2.msra.mxu0 0.0
        %4321 = vmatprep.subr.mxu0 0.0
        %4322 = vmatpush2.msra.mxu0 0.0
        %4323 = vmatprep.subr.mxu0 0.0
        %4324 = vmatpush2.msra.mxu0 0.0
        %4325 = vmatprep.subr.mxu0 0.0
        %4326 = vmatpush2.msra.mxu0 0.0
        %4327 = vmatprep.subr.mxu0 0.0
        %4328 = vmatpush2.msra.mxu0 0.0
        %4329 = vmatprep.mubr.f32.mxu0 0.0
        %v4330 = vand.u32 %v200, 4294901760
        %4331 = vmatmul.mubr.f32.gmra.mxu0 %v4330
        %v4332 = vpop.f32.mrf.mxu0
        %v4333 = vadd.f32 %v4246, %v4332
        %v4334 = vpop.f32.mrf.mxu0
        %4335 = vdwg.mxu0
        %4336 = vst [vmem:[%s194] sm:$0xff] %v2829
        %4337 = vst [vmem:[%s194 + $0x8] sm:$0xff] %v2831
        %4338 = vst [vmem:[%s194 + $0x10] sm:$0xff] %v4333
        %s4339 = sand.u32 %s94, 1
        %s4340 = scalar_lea.sflag [#allocation4], %s4339
        %s4341 = sand.u32 %s94, 1
        %s4342 = smul.addr %s4341, 24
        %s4343 = scalar_lea.vmem [#allocation7], %s4342
        // Predicated region
        $region37: #{tpu_custom_call.1} parent=27 // pred_check
          %p4344 = pneg %p104
        $region38: #{tpu_custom_call.1} parent=27 // pred_check_branch
          %4346 = sbr.rel (%p4344) target = $region40
        $region39: #{tpu_custom_call.1} parent=27 // pred_region
          %s4347 = smul.u32 3, %s25
          %s4349 = ssub.s32 384, 384
          %4350 = vsyncadd %s4340, %s4349
          %s4351 = smul.addr %s24, 3
          %s4352 = sadd.s32 %s4347, %s4351
          %s4353 = smul.addr %s4352, 128
          %s4354 = scalar_lea.hbm %s2, %s4353
          %s4356 = sshll.u32 %s4343, 4
          %s4357 = int_to_ptr.vmem [resolvable:$true] %s4356
          %4359 = dma.vmem_to_hbm [thread:$0]  %s4357, 384, %s4354, %s4340
        $region40: #{tpu_custom_call.1} parent=27 // pred_fallthru
          _
      $region28: #{tpu_custom_call.1} parent=5 // pred_fallthru
        _
      %p4360 = scmp.le.s32.totalorder 2, %s15
      // Predicated region
      $region41: #{tpu_custom_call.1} parent=5 // pred_check
        %p4361 = pneg %p4360
      $region42: #{tpu_custom_call.1} parent=5 // pred_check_branch
        %4363 = sbr.rel (%p4361) target = $region44
      $region43: #{tpu_custom_call.1} parent=5 // pred_region
        %s4364 = ssub.s32 %s15, 2
        // Predicated region
        $region45: #{tpu_custom_call.1} parent=43 // pred_check
          %p4365 = pneg %p110
        $region46: #{tpu_custom_call.1} parent=43 // pred_check_branch
          %4367 = sbr.rel (%p4365) target = $region48
        $region47: #{tpu_custom_call.1} parent=43 // pred_region
          %s4368 = sand.u32 %s95, 1
          %s4369 = scalar_lea.sflag [#allocation4], %s4368
          %s4370 = sand.u32 %s95, 1
          %s4371 = smul.addr %s4370, 24
          %s4372 = scalar_lea.vmem [#allocation7], %s4371
          %4373 = dma.done %s4369, 384
        $region48: #{tpu_custom_call.1} parent=43 // pred_fallthru
          _
      $region44: #{tpu_custom_call.1} parent=5 // pred_fallthru
        _
    $region6: #{tpu_custom_call.1} parent=1 // loop_footer
      %s19 = sadd.s32 1, %s15
    $region7: #{tpu_custom_call.1} parent=1 // loop_footer_branch
      %14 = sbr.rel target = $region3
    $region8: #{tpu_custom_call.1} parent=1 // loop_exit
      _
    %4374 = vsyncpa [#allocation3], 1
    %s4375 = scalar_lea.sflag [#allocation3], 1
    %4376 = vsyncpa %s4375, 1
    %4377 = vsyncpa [#allocation6], 1
    %s4378 = scalar_lea.sflag [#allocation6], 1
    %4379 = vsyncpa %s4378, 1
    %4380 = vsyncpa [#allocation4], 1
    %s4381 = scalar_lea.sflag [#allocation4], 1
    %4382 = vsyncpa %s4381, 1

</llo_original>
